<compile_context>
chip_gen: v6e
topology: v6e:2x2x1
jax: 0.10.0
libtpu: 0.0.40
codegen_flags: <defaults>
</compile_context>

<pallas_src>
import functools

import jax
import jax.numpy as jnp
from jax import lax
from jax.experimental import pallas as pl
from jax.experimental.pallas import tpu as pltpu

STAT_ROWS = 8  # sublane-aligned rows for the per-tile partial-stats output


def _round_up(x, m):
    return (x + m - 1) // m * m


def _pick_row_tile(hout, w):
    """Largest divisor TH of Hout with TH*W <= 2048 rows (keeps the f32 acc and
    double-buffered bf16 y tiles comfortably inside v7x's 64 MiB VMEM while
    still amortizing the ~0.35us/grid-step overhead)."""
    if w % 8 != 0:
        return hout          # row tiling needs sublane-aligned tile heights
    max_rows = 2048
    for th in range(hout, 0, -1):
        if hout % th == 0 and th * w <= max_rows:
            return th
    return 1


def _conv_stats_kernel(*refs, kk, W, Wout, thw, cpad, tiled):
    """Conv as ONE matmul with K = kk^3*Cin, plus per-tile BN partial sums."""
    x_refs = refs[:kk]            # kk depth-plane refs, each (L, Cin) bf16
    w_ref = refs[kk]              # (kk^3*Cin, CPAD) bf16
    y_ref = refs[kk + 1]          # (thw, CPAD) bf16 raw conv output tile
    stats_ref = refs[kk + 2]      # (STAT_ROWS, CPAD) f32 partial stats

    if tiled:
        row0 = pl.multiple_of(pl.program_id(2) * thw, 8)
    else:
        row0 = 0                  # single row tile -> fully static slices

    # Build the folded LHS: concat the kk^3 shifted row-slices along channels.
    pieces = []
    for kd in range(kk):
        plane_ref = x_refs[kd]
        for kh in range(kk):
            for kw in range(kk):
                pieces.append(plane_ref[pl.ds(row0 + kh * W + kw, thw), :])
    lhs = jnp.concatenate(pieces, axis=1)          # (thw, kk^3*Cin) bf16

    # Single MXU matmul, f32 accumulation.
    acc = jnp.dot(lhs, w_ref[...], preferred_element_type=jnp.float32)

    # Store the conv intermediate in bf16 (HBM traffic), stats from f32 acc.
    y_ref[...] = acc.astype(y_ref.dtype)

    # Mask the (W - Wout) junk columns of each collapsed row out of the stats.
    col = lax.broadcasted_iota(jnp.int32, (thw, 1), 0) % W
    yv = jnp.where(col < Wout, acc, 0.0)
    s = jnp.sum(yv, axis=0, keepdims=True)         # (1, CPAD)
    sq = jnp.sum(yv * yv, axis=0, keepdims=True)   # (1, CPAD)
    stats_ref[...] = jnp.concatenate(
        [s, sq, jnp.zeros((STAT_ROWS - 2, cpad), jnp.float32)], axis=0)


def conv3d_bn_relu(x_ncdhw, w_oidhw, gamma, beta, *, eps=1e-5):
    """Forward of the Conv3d module defaults (Conv3d -> BN3d(batch stats) -> ReLU).

    x_ncdhw: (N, Cin, D, H, W); w_oidhw: (Cout, Cin, kd, kh, kw); gamma/beta: (Cout,)
    """
    N, Cin, D, H, W = x_ncdhw.shape
    Cout, Cin_w, kd_, kh_, kw_ = w_oidhw.shape
    assert Cin == Cin_w and kd_ == kh_ == kw_
    kk = int(kd_)
    Dout, Hout, Wout = D - kk + 1, H - kk + 1, W - kk + 1
    assert min(Dout, Hout, Wout) > 0

    CPAD = _round_up(Cout, 128)             # lane-dense channel dimension
    L = _round_up(H * W + kk - 1, 8)        # flat plane length (+halo), aligned
    TH = _pick_row_tile(Hout, W)            # output rows (in h) per program
    T = Hout // TH
    THW = TH * W                            # collapsed (h, w) rows per tile
    HWf = Hout * W

    # ---- host glue: layout only (no im2col, no data expansion) -------------
    # NCDHW -> (N, D, H*W (+pad), Cin), bf16 (halves x DMA; MXU eats bf16).
    x = jnp.transpose(x_ncdhw, (0, 2, 3, 4, 1)).reshape(N, D, H * W, Cin)
    x = jnp.pad(x, ((0, 0), (0, 0), (0, L - H * W), (0, 0))).astype(jnp.bfloat16)

    # weights (Cout,Cin,kd,kh,kw) -> (kk^3*Cin, CPAD) bf16, rows in the same
    # tap-major/channel-minor order as the in-kernel LHS concatenation.
    w = jnp.transpose(w_oidhw, (2, 3, 4, 1, 0)).reshape(kk ** 3 * Cin, Cout)
    w = jnp.pad(w, ((0, 0), (0, CPAD - Cout))).astype(jnp.bfloat16)

    grid = (N, Dout, T)
    cparams = pltpu.CompilerParams(
        # all axes independent (per-tile BN partials) -> megacore-friendly
        dimension_semantics=("parallel", "parallel", "parallel"),
        # fits v7x's 64 MiB VMEM; v5e/v6e could go higher with bigger tiles.
        vmem_limit_bytes=48 * 1024 * 1024)

    def x_spec(kd):
        # depth-blocked size-1 dim => block index == element index (d + kd);
        # index is constant along the row-tile axis so the plane is DMA'd once
        # per (n, d) and reused across row tiles.
        return pl.BlockSpec((None, None, L, Cin),
                            lambda n, d, t, _kd=kd: (n, d + _kd, 0, 0))

    # ---- single pass: conv + partial BN statistics --------------------------
    y, pstats = pl.pallas_call(
        functools.partial(_conv_stats_kernel, kk=kk, W=W, Wout=Wout,
                          thw=THW, cpad=CPAD, tiled=(T > 1)),
        grid=grid,
        in_specs=[x_spec(kd) for kd in range(kk)]
                 + [pl.BlockSpec((kk ** 3 * Cin, CPAD), lambda n, d, t: (0, 0))],
        out_specs=[
            pl.BlockSpec((None, None, THW, CPAD), lambda n, d, t: (n, d, t, 0)),
            pl.BlockSpec((None, None, None, STAT_ROWS, CPAD),
                         lambda n, d, t: (n, d, t, 0, 0)),
        ],
        out_shape=[
            jax.ShapeDtypeStruct((N, Dout, HWf, CPAD), jnp.bfloat16),
            jax.ShapeDtypeStruct((N, Dout, T, STAT_ROWS, CPAD), jnp.float32),
        ],
        compiler_params=cparams,
    )(*([x] * kk), w)

    # ---- O(Cout) combine + BN/ReLU epilogue (plain JAX; XLA fuses it with
    # the strip/transpose copy, so no second pallas pass / extra round trip) --
    cnt = float(N * Dout * Hout * Wout)
    s_tot = jnp.sum(pstats[:, :, :, 0, :], axis=(0, 1, 2))
    sq_tot = jnp.sum(pstats[:, :, :, 1, :], axis=(0, 1, 2))
    mean = s_tot / cnt
    var = jnp.maximum(sq_tot / cnt - mean * mean, 0.0)   # biased var (BN training)
    inv = lax.rsqrt(var + eps)
    gamma_p = jnp.pad(gamma.astype(jnp.float32), (0, CPAD - Cout))
    beta_p = jnp.pad(beta.astype(jnp.float32), (0, CPAD - Cout))
    scale = gamma_p * inv                                # (CPAD,)
    shift = beta_p - mean * scale                        # (CPAD,)

    out = jnp.maximum(y.astype(jnp.float32) * scale + shift, 0.0)
    # strip junk columns / channel padding, back to PyTorch NCDHW
    out = out.reshape(N, Dout, Hout, W, CPAD)[:, :, :, :Wout, :Cout]
    return jnp.transpose(out, (0, 4, 1, 2, 3))


def _reference(x, w, gamma, beta, eps=1e-5):
    """Pure-JAX (f32) reference of the PyTorch forward (training-mode BN)."""
    y = lax.conv_general_dilated(
        x, w, window_strides=(1, 1, 1), padding="VALID",
        dimension_numbers=("NCDHW", "OIDHW", "NCDHW"))
    mean = jnp.mean(y, axis=(0, 2, 3, 4), keepdims=True)
    var = jnp.mean((y - mean) ** 2, axis=(0, 2, 3, 4), keepdims=True)
    yh = (y - mean) * lax.rsqrt(var + eps)
    out = yh * gamma.reshape(1, -1, 1, 1, 1) + beta.reshape(1, -1, 1, 1, 1)
    return jnp.maximum(out, 0.0)


if __name__ == "__main__":
    key = jax.random.PRNGKey(0)
    k1, k2, k3, k4 = jax.random.split(key, 4)

    # small shapes consistent with the module (Conv3d, kernel_size=3, stride=1)
    N, Cin, Cout, D, H, W = 2, 4, 8, 8, 16, 16
    x = jax.random.normal(k1, (N, Cin, D, H, W), jnp.float32)
    w = jax.random.normal(k2, (Cout, Cin, 3, 3, 3), jnp.float32) * 0.1
    gamma = 1.0 + 0.1 * jax.random.normal(k3, (Cout,), jnp.float32)
    beta = 0.1 * jax.random.normal(k4, (Cout,), jnp.float32)

    out = conv3d_bn_relu(x, w, gamma, beta)
    out = jax.block_until_ready(out)
    assert out.shape == (N, Cout, D - 2, H - 2, W - 2), out.shape

    ref = _reference(x, w, gamma, beta)
    max_err = float(jnp.max(jnp.abs(out - ref)))
    # bf16 MXU operands + bf16 conv intermediate (f32 accumulation / f32 BN
    # statistics) loosen the tolerance vs the f32 PyTorch-style reference.
    assert jnp.allclose(out, ref, atol=5e-2, rtol=5e-2), max_err
    print("KERNEL_OK")
</pallas_src>

<mosaic_0001>
module attributes {stable_mosaic.version = 11 : i64} {
  func.func @_conv_stats_kernel(%arg0: i32, %arg1: i32, %arg2: i32, %arg3: memref<1x1x264x4xbf16, #tpu.memory_space<vmem>>, %arg4: memref<1x1x264x4xbf16, #tpu.memory_space<vmem>>, %arg5: memref<1x1x264x4xbf16, #tpu.memory_space<vmem>>, %arg6: memref<108x128xbf16, #tpu.memory_space<vmem>>, %arg7: memref<1x1x224x128xbf16, #tpu.memory_space<vmem>>, %arg8: memref<1x1x1x8x128xf32, #tpu.memory_space<vmem>>) attributes {dimension_semantics = [#tpu.dimension_semantics<parallel>, #tpu.dimension_semantics<parallel>, #tpu.dimension_semantics<parallel>], iteration_bounds = array<i64: 2, 6, 1>, scalar_prefetch = 0 : i64, scratch_operands = 0 : i64, tpu.core_type = #tpu.core_type<tc>, window_params = [{transform_indices = @transform_0, window_bounds = array<i64: 1, 1, 264, 4>}, {transform_indices = @transform_1, window_bounds = array<i64: 1, 1, 264, 4>}, {transform_indices = @transform_2, window_bounds = array<i64: 1, 1, 264, 4>}, {pipeline_mode = #tpu.pipeline_mode<synchronous>, transform_indices = @transform_3, window_bounds = array<i64: 108, 128>}, {transform_indices = @transform_4, window_bounds = array<i64: 1, 1, 224, 128>}, {transform_indices = @transform_5, window_bounds = array<i64: 1, 1, 1, 8, 128>}]} {
    %c0 = arith.constant 0 : index
    %c0_0 = arith.constant 0 : index
    %c0_1 = arith.constant 0 : index
    %c0_2 = arith.constant 0 : index
    %0 = vector.load %arg3[%c0, %c0_0, %c0_1, %c0_2] : memref<1x1x264x4xbf16, #tpu.memory_space<vmem>>, vector<1x1x224x4xbf16>
    %1 = vector.shape_cast %0 : vector<1x1x224x4xbf16> to vector<224x4xbf16>
    %c0_3 = arith.constant 0 : index
    %c0_4 = arith.constant 0 : index
    %c1 = arith.constant 1 : index
    %c0_5 = arith.constant 0 : index
    %2 = vector.load %arg3[%c0_3, %c0_4, %c1, %c0_5] : memref<1x1x264x4xbf16, #tpu.memory_space<vmem>>, vector<1x1x224x4xbf16>
    %3 = vector.shape_cast %2 : vector<1x1x224x4xbf16> to vector<224x4xbf16>
    %c0_6 = arith.constant 0 : index
    %c0_7 = arith.constant 0 : index
    %c2 = arith.constant 2 : index
    %c0_8 = arith.constant 0 : index
    %4 = vector.load %arg3[%c0_6, %c0_7, %c2, %c0_8] : memref<1x1x264x4xbf16, #tpu.memory_space<vmem>>, vector<1x1x224x4xbf16>
    %5 = vector.shape_cast %4 : vector<1x1x224x4xbf16> to vector<224x4xbf16>
    %c0_9 = arith.constant 0 : index
    %c0_10 = arith.constant 0 : index
    %c16 = arith.constant 16 : index
    %c0_11 = arith.constant 0 : index
    %6 = vector.load %arg3[%c0_9, %c0_10, %c16, %c0_11] : memref<1x1x264x4xbf16, #tpu.memory_space<vmem>>, vector<1x1x224x4xbf16>
    %7 = vector.shape_cast %6 : vector<1x1x224x4xbf16> to vector<224x4xbf16>
    %c0_12 = arith.constant 0 : index
    %c0_13 = arith.constant 0 : index
    %c17 = arith.constant 17 : index
    %c0_14 = arith.constant 0 : index
    %8 = vector.load %arg3[%c0_12, %c0_13, %c17, %c0_14] : memref<1x1x264x4xbf16, #tpu.memory_space<vmem>>, vector<1x1x224x4xbf16>
    %9 = vector.shape_cast %8 : vector<1x1x224x4xbf16> to vector<224x4xbf16>
    %c0_15 = arith.constant 0 : index
    %c0_16 = arith.constant 0 : index
    %c18 = arith.constant 18 : index
    %c0_17 = arith.constant 0 : index
    %10 = vector.load %arg3[%c0_15, %c0_16, %c18, %c0_17] : memref<1x1x264x4xbf16, #tpu.memory_space<vmem>>, vector<1x1x224x4xbf16>
    %11 = vector.shape_cast %10 : vector<1x1x224x4xbf16> to vector<224x4xbf16>
    %c0_18 = arith.constant 0 : index
    %c0_19 = arith.constant 0 : index
    %c32 = arith.constant 32 : index
    %c0_20 = arith.constant 0 : index
    %12 = vector.load %arg3[%c0_18, %c0_19, %c32, %c0_20] : memref<1x1x264x4xbf16, #tpu.memory_space<vmem>>, vector<1x1x224x4xbf16>
    %13 = vector.shape_cast %12 : vector<1x1x224x4xbf16> to vector<224x4xbf16>
    %c0_21 = arith.constant 0 : index
    %c0_22 = arith.constant 0 : index
    %c33 = arith.constant 33 : index
    %c0_23 = arith.constant 0 : index
    %14 = vector.load %arg3[%c0_21, %c0_22, %c33, %c0_23] : memref<1x1x264x4xbf16, #tpu.memory_space<vmem>>, vector<1x1x224x4xbf16>
    %15 = vector.shape_cast %14 : vector<1x1x224x4xbf16> to vector<224x4xbf16>
    %c0_24 = arith.constant 0 : index
    %c0_25 = arith.constant 0 : index
    %c34 = arith.constant 34 : index
    %c0_26 = arith.constant 0 : index
    %16 = vector.load %arg3[%c0_24, %c0_25, %c34, %c0_26] : memref<1x1x264x4xbf16, #tpu.memory_space<vmem>>, vector<1x1x224x4xbf16>
    %17 = vector.shape_cast %16 : vector<1x1x224x4xbf16> to vector<224x4xbf16>
    %c0_27 = arith.constant 0 : index
    %c0_28 = arith.constant 0 : index
    %c0_29 = arith.constant 0 : index
    %c0_30 = arith.constant 0 : index
    %18 = vector.load %arg4[%c0_27, %c0_28, %c0_29, %c0_30] : memref<1x1x264x4xbf16, #tpu.memory_space<vmem>>, vector<1x1x224x4xbf16>
    %19 = vector.shape_cast %18 : vector<1x1x224x4xbf16> to vector<224x4xbf16>
    %c0_31 = arith.constant 0 : index
    %c0_32 = arith.constant 0 : index
    %c1_33 = arith.constant 1 : index
    %c0_34 = arith.constant 0 : index
    %20 = vector.load %arg4[%c0_31, %c0_32, %c1_33, %c0_34] : memref<1x1x264x4xbf16, #tpu.memory_space<vmem>>, vector<1x1x224x4xbf16>
    %21 = vector.shape_cast %20 : vector<1x1x224x4xbf16> to vector<224x4xbf16>
    %c0_35 = arith.constant 0 : index
    %c0_36 = arith.constant 0 : index
    %c2_37 = arith.constant 2 : index
    %c0_38 = arith.constant 0 : index
    %22 = vector.load %arg4[%c0_35, %c0_36, %c2_37, %c0_38] : memref<1x1x264x4xbf16, #tpu.memory_space<vmem>>, vector<1x1x224x4xbf16>
    %23 = vector.shape_cast %22 : vector<1x1x224x4xbf16> to vector<224x4xbf16>
    %c0_39 = arith.constant 0 : index
    %c0_40 = arith.constant 0 : index
    %c16_41 = arith.constant 16 : index
    %c0_42 = arith.constant 0 : index
    %24 = vector.load %arg4[%c0_39, %c0_40, %c16_41, %c0_42] : memref<1x1x264x4xbf16, #tpu.memory_space<vmem>>, vector<1x1x224x4xbf16>
    %25 = vector.shape_cast %24 : vector<1x1x224x4xbf16> to vector<224x4xbf16>
    %c0_43 = arith.constant 0 : index
    %c0_44 = arith.constant 0 : index
    %c17_45 = arith.constant 17 : index
    %c0_46 = arith.constant 0 : index
    %26 = vector.load %arg4[%c0_43, %c0_44, %c17_45, %c0_46] : memref<1x1x264x4xbf16, #tpu.memory_space<vmem>>, vector<1x1x224x4xbf16>
    %27 = vector.shape_cast %26 : vector<1x1x224x4xbf16> to vector<224x4xbf16>
    %c0_47 = arith.constant 0 : index
    %c0_48 = arith.constant 0 : index
    %c18_49 = arith.constant 18 : index
    %c0_50 = arith.constant 0 : index
    %28 = vector.load %arg4[%c0_47, %c0_48, %c18_49, %c0_50] : memref<1x1x264x4xbf16, #tpu.memory_space<vmem>>, vector<1x1x224x4xbf16>
    %29 = vector.shape_cast %28 : vector<1x1x224x4xbf16> to vector<224x4xbf16>
    %c0_51 = arith.constant 0 : index
    %c0_52 = arith.constant 0 : index
    %c32_53 = arith.constant 32 : index
    %c0_54 = arith.constant 0 : index
    %30 = vector.load %arg4[%c0_51, %c0_52, %c32_53, %c0_54] : memref<1x1x264x4xbf16, #tpu.memory_space<vmem>>, vector<1x1x224x4xbf16>
    %31 = vector.shape_cast %30 : vector<1x1x224x4xbf16> to vector<224x4xbf16>
    %c0_55 = arith.constant 0 : index
    %c0_56 = arith.constant 0 : index
    %c33_57 = arith.constant 33 : index
    %c0_58 = arith.constant 0 : index
    %32 = vector.load %arg4[%c0_55, %c0_56, %c33_57, %c0_58] : memref<1x1x264x4xbf16, #tpu.memory_space<vmem>>, vector<1x1x224x4xbf16>
    %33 = vector.shape_cast %32 : vector<1x1x224x4xbf16> to vector<224x4xbf16>
    %c0_59 = arith.constant 0 : index
    %c0_60 = arith.constant 0 : index
    %c34_61 = arith.constant 34 : index
    %c0_62 = arith.constant 0 : index
    %34 = vector.load %arg4[%c0_59, %c0_60, %c34_61, %c0_62] : memref<1x1x264x4xbf16, #tpu.memory_space<vmem>>, vector<1x1x224x4xbf16>
    %35 = vector.shape_cast %34 : vector<1x1x224x4xbf16> to vector<224x4xbf16>
    %c0_63 = arith.constant 0 : index
    %c0_64 = arith.constant 0 : index
    %c0_65 = arith.constant 0 : index
    %c0_66 = arith.constant 0 : index
    %36 = vector.load %arg5[%c0_63, %c0_64, %c0_65, %c0_66] : memref<1x1x264x4xbf16, #tpu.memory_space<vmem>>, vector<1x1x224x4xbf16>
    %37 = vector.shape_cast %36 : vector<1x1x224x4xbf16> to vector<224x4xbf16>
    %c0_67 = arith.constant 0 : index
    %c0_68 = arith.constant 0 : index
    %c1_69 = arith.constant 1 : index
    %c0_70 = arith.constant 0 : index
    %38 = vector.load %arg5[%c0_67, %c0_68, %c1_69, %c0_70] : memref<1x1x264x4xbf16, #tpu.memory_space<vmem>>, vector<1x1x224x4xbf16>
    %39 = vector.shape_cast %38 : vector<1x1x224x4xbf16> to vector<224x4xbf16>
    %c0_71 = arith.constant 0 : index
    %c0_72 = arith.constant 0 : index
    %c2_73 = arith.constant 2 : index
    %c0_74 = arith.constant 0 : index
    %40 = vector.load %arg5[%c0_71, %c0_72, %c2_73, %c0_74] : memref<1x1x264x4xbf16, #tpu.memory_space<vmem>>, vector<1x1x224x4xbf16>
    %41 = vector.shape_cast %40 : vector<1x1x224x4xbf16> to vector<224x4xbf16>
    %c0_75 = arith.constant 0 : index
    %c0_76 = arith.constant 0 : index
    %c16_77 = arith.constant 16 : index
    %c0_78 = arith.constant 0 : index
    %42 = vector.load %arg5[%c0_75, %c0_76, %c16_77, %c0_78] : memref<1x1x264x4xbf16, #tpu.memory_space<vmem>>, vector<1x1x224x4xbf16>
    %43 = vector.shape_cast %42 : vector<1x1x224x4xbf16> to vector<224x4xbf16>
    %c0_79 = arith.constant 0 : index
    %c0_80 = arith.constant 0 : index
    %c17_81 = arith.constant 17 : index
    %c0_82 = arith.constant 0 : index
    %44 = vector.load %arg5[%c0_79, %c0_80, %c17_81, %c0_82] : memref<1x1x264x4xbf16, #tpu.memory_space<vmem>>, vector<1x1x224x4xbf16>
    %45 = vector.shape_cast %44 : vector<1x1x224x4xbf16> to vector<224x4xbf16>
    %c0_83 = arith.constant 0 : index
    %c0_84 = arith.constant 0 : index
    %c18_85 = arith.constant 18 : index
    %c0_86 = arith.constant 0 : index
    %46 = vector.load %arg5[%c0_83, %c0_84, %c18_85, %c0_86] : memref<1x1x264x4xbf16, #tpu.memory_space<vmem>>, vector<1x1x224x4xbf16>
    %47 = vector.shape_cast %46 : vector<1x1x224x4xbf16> to vector<224x4xbf16>
    %c0_87 = arith.constant 0 : index
    %c0_88 = arith.constant 0 : index
    %c32_89 = arith.constant 32 : index
    %c0_90 = arith.constant 0 : index
    %48 = vector.load %arg5[%c0_87, %c0_88, %c32_89, %c0_90] : memref<1x1x264x4xbf16, #tpu.memory_space<vmem>>, vector<1x1x224x4xbf16>
    %49 = vector.shape_cast %48 : vector<1x1x224x4xbf16> to vector<224x4xbf16>
    %c0_91 = arith.constant 0 : index
    %c0_92 = arith.constant 0 : index
    %c33_93 = arith.constant 33 : index
    %c0_94 = arith.constant 0 : index
    %50 = vector.load %arg5[%c0_91, %c0_92, %c33_93, %c0_94] : memref<1x1x264x4xbf16, #tpu.memory_space<vmem>>, vector<1x1x224x4xbf16>
    %51 = vector.shape_cast %50 : vector<1x1x224x4xbf16> to vector<224x4xbf16>
    %c0_95 = arith.constant 0 : index
    %c0_96 = arith.constant 0 : index
    %c34_97 = arith.constant 34 : index
    %c0_98 = arith.constant 0 : index
    %52 = vector.load %arg5[%c0_95, %c0_96, %c34_97, %c0_98] : memref<1x1x264x4xbf16, #tpu.memory_space<vmem>>, vector<1x1x224x4xbf16>
    %53 = vector.shape_cast %52 : vector<1x1x224x4xbf16> to vector<224x4xbf16>
    %54 = tpu.concatenate %1, %3, %5, %7, %9, %11, %13, %15, %17, %19, %21, %23, %25, %27, %29, %31 in 1 : vector<224x4xbf16>, vector<224x4xbf16>, vector<224x4xbf16>, vector<224x4xbf16>, vector<224x4xbf16>, vector<224x4xbf16>, vector<224x4xbf16>, vector<224x4xbf16>, vector<224x4xbf16>, vector<224x4xbf16>, vector<224x4xbf16>, vector<224x4xbf16>, vector<224x4xbf16>, vector<224x4xbf16>, vector<224x4xbf16>, vector<224x4xbf16> -> vector<224x64xbf16>
    %55 = tpu.concatenate %33, %35, %37, %39, %41, %43, %45, %47, %49, %51, %53 in 1 : vector<224x4xbf16>, vector<224x4xbf16>, vector<224x4xbf16>, vector<224x4xbf16>, vector<224x4xbf16>, vector<224x4xbf16>, vector<224x4xbf16>, vector<224x4xbf16>, vector<224x4xbf16>, vector<224x4xbf16>, vector<224x4xbf16> -> vector<224x44xbf16>
    %56 = tpu.concatenate %54, %55 in 1 : vector<224x64xbf16>, vector<224x44xbf16> -> vector<224x108xbf16>
    %c0_99 = arith.constant 0 : index
    %c0_100 = arith.constant 0 : index
    %57 = vector.load %arg6[%c0_99, %c0_100] : memref<108x128xbf16, #tpu.memory_space<vmem>>, vector<108x128xbf16>
    %cst = arith.constant dense<0.000000e+00> : vector<224x128xf32>
    %58 = tpu.matmul %56, %57, %cst {dimension_numbers = #tpu.dot_dimension_numbers<[1], [0], [0], [1], [0, 0, 1, 1], [], []>} : vector<224x108xbf16>, vector<108x128xbf16>, vector<224x128xf32> -> vector<224x128xf32>
    %59 = arith.truncf %58 : vector<224x128xf32> to vector<224x128xbf16>
    %c0_101 = arith.constant 0 : index
    %c0_102 = arith.constant 0 : index
    %c0_103 = arith.constant 0 : index
    %c0_104 = arith.constant 0 : index
    %60 = vector.load %arg7[%c0_101, %c0_102, %c0_103, %c0_104] : memref<1x1x224x128xbf16, #tpu.memory_space<vmem>>, vector<1x1x224x128xbf16>
    %61 = vector.shape_cast %60 : vector<1x1x224x128xbf16> to vector<224x128xbf16>
    %62 = vector.shape_cast %59 : vector<224x128xbf16> to vector<1x1x224x128xbf16>
    tpu.vector_store %arg7[%c0_101, %c0_102, %c0_103, %c0_104], %62 {strides = array<i32>} : memref<1x1x224x128xbf16, #tpu.memory_space<vmem>>, vector<1x1x224x128xbf16>,
    %63 = tpu.iota {dimensions = array<i32: 0>} : vector<224x1xi32>
    %c16_i32 = arith.constant 16 : i32
    %c0_i32 = arith.constant 0 : i32
    %64 = arith.cmpi eq, %c16_i32, %c0_i32 : i32
    %c1_i32 = arith.constant 1 : i32
    %65 = arith.select %64, %c1_i32, %c16_i32 : i32
    %66 = vector.broadcast %65 : i32 to vector<224x1xi32>
    %67 = arith.remsi %63, %66 : vector<224x1xi32>
    %c0_i32_105 = arith.constant 0 : i32
    %68 = vector.broadcast %c0_i32_105 : i32 to vector<224x1xi32>
    %69 = arith.cmpi ne, %67, %68 : vector<224x1xi32>
    %c0_i32_106 = arith.constant 0 : i32
    %70 = vector.broadcast %c0_i32_106 : i32 to vector<224x1xi32>
    %71 = arith.cmpi slt, %67, %70 : vector<224x1xi32>
    %c0_i32_107 = arith.constant 0 : i32
    %72 = arith.cmpi slt, %65, %c0_i32_107 : i32
    %73 = vector.broadcast %72 : i1 to vector<224x1xi1>
    %74 = vector.broadcast %73 : vector<224x1xi1> to vector<224x1xi1>
    %75 = arith.xori %71, %74 : vector<224x1xi1>
    %76 = arith.andi %75, %69 : vector<224x1xi1>
    %77 = vector.broadcast %65 : i32 to vector<224x1xi32>
    %78 = arith.addi %67, %77 : vector<224x1xi32>
    %79 = arith.select %76, %78, %67 : vector<224x1xi1>, vector<224x1xi32>
    %c14_i32 = arith.constant 14 : i32
    %80 = vector.broadcast %c14_i32 : i32 to vector<224x1xi32>
    %81 = arith.cmpi slt, %79, %80 : vector<224x1xi32>
    %cst_108 = arith.constant 0.000000e+00 : f32
    %82 = vector.shape_cast %81 : vector<224x1xi1> to vector<224x1xi1>
    %83 = vector.broadcast %82 : vector<224x1xi1> to vector<224x128xi1>
    %84 = vector.broadcast %cst_108 : f32 to vector<224x128xf32>
    %85 = arith.select %83, %58, %84 : vector<224x128xi1>, vector<224x128xf32>
    %cst_109 = arith.constant dense<0.000000e+00> : vector<128xf32>
    %86 = vector.multi_reduction <add>, %85, %cst_109 [0] : vector<224x128xf32> to vector<128xf32>
    %87 = vector.shape_cast %86 : vector<128xf32> to vector<1x128xf32>
    %88 = arith.mulf %85, %85 : vector<224x128xf32>
    %cst_110 = arith.constant dense<0.000000e+00> : vector<128xf32>
    %89 = vector.multi_reduction <add>, %88, %cst_110 [0] : vector<224x128xf32> to vector<128xf32>
    %90 = vector.shape_cast %89 : vector<128xf32> to vector<1x128xf32>
    %cst_111 = arith.constant 0.000000e+00 : f32
    %91 = vector.broadcast %cst_111 : f32 to vector<6x128xf32>
    %92 = tpu.concatenate %87, %90, %91 in 0 : vector<1x128xf32>, vector<1x128xf32>, vector<6x128xf32> -> vector<8x128xf32>
    %c0_112 = arith.constant 0 : index
    %c0_113 = arith.constant 0 : index
    %c0_114 = arith.constant 0 : index
    %c0_115 = arith.constant 0 : index
    %c0_116 = arith.constant 0 : index
    %93 = vector.load %arg8[%c0_112, %c0_113, %c0_114, %c0_115, %c0_116] : memref<1x1x1x8x128xf32, #tpu.memory_space<vmem>>, vector<1x1x1x8x128xf32>
    %94 = vector.shape_cast %93 : vector<1x1x1x8x128xf32> to vector<8x128xf32>
    %95 = vector.shape_cast %92 : vector<8x128xf32> to vector<1x1x1x8x128xf32>
    tpu.vector_store %arg8[%c0_112, %c0_113, %c0_114, %c0_115, %c0_116], %95 {strides = array<i32>} : memref<1x1x1x8x128xf32, #tpu.memory_space<vmem>>, vector<1x1x1x8x128xf32>,
    return
  }
  func.func @transform_0(%arg0: i32, %arg1: i32, %arg2: i32) -> (i32, i32, i32, i32) {
    %c0_i32 = arith.constant 0 : i32
    %0 = arith.addi %arg1, %c0_i32 : i32
    %c0_i32_0 = arith.constant 0 : i32
    %c0_i32_1 = arith.constant 0 : i32
    %c0_i32_2 = arith.constant 0 : i32
    return %arg0, %0, %c0_i32_0, %c0_i32_1 : i32, i32, i32, i32
  }
  func.func @transform_1(%arg0: i32, %arg1: i32, %arg2: i32) -> (i32, i32, i32, i32) {
    %c1_i32 = arith.constant 1 : i32
    %0 = arith.addi %arg1, %c1_i32 : i32
    %c0_i32 = arith.constant 0 : i32
    %c0_i32_0 = arith.constant 0 : i32
    %c0_i32_1 = arith.constant 0 : i32
    return %arg0, %0, %c0_i32, %c0_i32_0 : i32, i32, i32, i32
  }
  func.func @transform_2(%arg0: i32, %arg1: i32, %arg2: i32) -> (i32, i32, i32, i32) {
    %c2_i32 = arith.constant 2 : i32
    %0 = arith.addi %arg1, %c2_i32 : i32
    %c0_i32 = arith.constant 0 : i32
    %c0_i32_0 = arith.constant 0 : i32
    %c0_i32_1 = arith.constant 0 : i32
    return %arg0, %0, %c0_i32, %c0_i32_0 : i32, i32, i32, i32
  }
  func.func @transform_3(%arg0: i32, %arg1: i32, %arg2: i32) -> (i32, i32) {
    %c0_i32 = arith.constant 0 : i32
    %c0_i32_0 = arith.constant 0 : i32
    %c0_i32_1 = arith.constant 0 : i32
    return %c0_i32, %c0_i32_0 : i32, i32
  }
  func.func @transform_4(%arg0: i32, %arg1: i32, %arg2: i32) -> (i32, i32, i32, i32) {
    %c0_i32 = arith.constant 0 : i32
    %c0_i32_0 = arith.constant 0 : i32
    return %arg0, %arg1, %arg2, %c0_i32 : i32, i32, i32, i32
  }
  func.func @transform_5(%arg0: i32, %arg1: i32, %arg2: i32) -> (i32, i32, i32, i32, i32) {
    %c0_i32 = arith.constant 0 : i32
    %c0_i32_0 = arith.constant 0 : i32
    %c0_i32_1 = arith.constant 0 : i32
    return %arg0, %arg1, %arg2, %c0_i32, %c0_i32_0 : i32, i32, i32, i32, i32
  }
}

</mosaic_0001>

<llo_original>
// kernel: tpu_custom_call.1
$region0: #{tpu_custom_call.1}
  #allocation0 [shape = 'u32[]', space=smem, size = 0x4, offset = 0x4, fixed_abs, tag = 'smem constant byte address 0x4 - core index']
  #allocation1 [shape = 'u32[144,128]{1,0:T(1,128)}', space=vmem, size = 0x12000, scoped, tag = 'internal scratch']
  %s0 = inlined_call_operand.vmem [shape: bf16[2,8,264,4], index: 0, kind: input, shape index: {}]
  %s1 = inlined_call_operand.vmem [shape: bf16[2,8,264,4], index: 1, kind: input, shape index: {}]
  %s2 = inlined_call_operand.vmem [shape: bf16[2,8,264,4], index: 2, kind: input, shape index: {}]
  %s3 = inlined_call_operand.vmem [shape: bf16[108,128], index: 3, kind: input, shape index: {}]
  %s4 = inlined_call_operand.hbm [shape: bf16[2,6,224,128], index: 4, kind: output, shape index: {0}]
  %s5 = inlined_call_operand.hbm [shape: f32[2,6,1,8,128], index: 5, kind: output, shape index: {1}]
  %6 = xla_tuple %s4, %s5
  %s7 = sld [smem:[#allocation0]]
  $region57: #{tpu_custom_call.1} parent=0
    _
  %s9 = ssub.s32 1, %s7
  %s10 = scalar_select 0, %s9, %s7
  $region1: #{tpu_custom_call.1} parent=0
    #allocation2 [shape = 'u8[114688]{0}', space=vmem, size = 0x1c000, scoped, tag = 'output window, operand 0']
    #allocation3 [shape = 's32[2]{0}', space=sflag, size = 0x8, scoped, tag = 'scoped memory for tpu_custom_call.1']
    #allocation4 [shape = 'u8[8192]{0}', space=vmem, size = 0x2000, scoped, tag = 'output window, operand 1']
    #allocation5 [shape = 's32[2]{0}', space=sflag, size = 0x8, scoped, tag = 'scoped memory for tpu_custom_call.1']
    %11 = vsyncpa [#allocation3], 0
    %s12 = scalar_lea.sflag [#allocation3], 1
    %13 = vsyncpa %s12, 0
    %14 = vsyncpa [#allocation5], 0
    %s15 = scalar_lea.sflag [#allocation5], 1
    %16 = vsyncpa %s15, 0
    loop: start=0, step=1, limit=14
    $region2: #{tpu_custom_call.1} parent=1 // loop_pre_header
      _
    $region3: #{tpu_custom_call.1} parent=1 // loop_header
      %s18 = sphi 0, %s22
      %p19 = scmp.ge.s32.totalorder %s18, 14
      %s25 = sphi 0, %s44
      %s26 = sphi 0, %s40
      %s27 = sphi 0, %s36
      %s28 = sphi 0, %s25
      %s29 = sphi 0, %s26
      %s30 = sphi 0, %s27
      %s31 = sphi 0, %s28
      %s32 = sphi 0, %s29
      %s33 = sphi 0, %s30
      %s49 = sphi 0, %s51
      %s52 = sphi 0, %s49
      %s53 = sphi 0, %s52
      %s69 = sphi 0, %s53
      %s79 = sphi 0, %s81
      %s82 = sphi 0, %s79
      %s83 = sphi 0, %s82
      %s99 = sphi 0, %s83
      %s109 = sphi 0, %s111
      %s112 = sphi 0, %s109
      %s113 = sphi 0, %s112
      %s129 = sphi 0, %s113
      %s133 = sphi 0, %s133
      %s135 = sphi 0, %s133
      %s136 = sphi 0, %s135
      %s150 = sphi 0, %s136
      %s160 = sphi 0, %s162
      %s163 = sphi 0, %s160
      %s164 = sphi 0, %s163
      %s180 = sphi 0, %s164
      %s190 = sphi 0, %s192
      %s193 = sphi 0, %s190
      %s194 = sphi 0, %s193
      %s210 = sphi 0, %s194
    $region4: #{tpu_custom_call.1} parent=1 // loop_header_branch
      %21 = sbr.rel (%p19) target = $region8
    $region5: #{tpu_custom_call.1} parent=1 // loop_body
      %s23 = ssub.s32 %s18, 1
      %s24 = ssub.s32 %s18, 2
      %s34 = sadd.s32 1, %s27
      %p35 = scmp.ge.s32.totalorder %s34, 1
      %s36 = scalar_select %p35, 0, %s34
      %s37 = sadd.s32 1, %s26
      %s38 = scalar_select %p35, %s37, %s26
      %p39 = scmp.ge.s32.totalorder %s38, 6
      %s40 = scalar_select %p39, 0, %s38
      %s41 = sadd.s32 1, %s25
      %s42 = scalar_select %p39, %s41, %s25
      %p43 = scmp.ge.s32.totalorder %s42, 2
      %s44 = scalar_select %p43, 0, %s42
      %s45 = ssub.s32 %s25, %s44
      %s46 = ssub.s32 %s26, %s40
      %s47 = sor.u32 %s45, %s46
      %p48 = scmp.eq.s32.totalorder %s47, 0
      %s50 = sadd.s32 %s49, 1
      %s51 = scalar_select %p48, %s49, %s50
      %p54 = pneg %p48
      %p55 = scmp.eq.s32.totalorder %s18, 11
      %p56 = por %p54, %p55
      %p57 = scmp.ne.s32.totalorder %s49, %s52
      %p58 = scmp.eq.s32.totalorder %s18, 0
      %p59 = por %p57, %p58
      %p60 = scmp.ne.s32.totalorder %s49, %s52
      %p61 = scmp.eq.s32.totalorder %s23, 11
      %p62 = por %p60, %p61
      %p63 = scmp.ne.s32.totalorder %s52, %s53
      %p64 = scmp.eq.s32.totalorder %s23, 0
      %p65 = por %p63, %p64
      %p66 = scmp.ne.s32.totalorder %s52, %s53
      %p67 = scmp.eq.s32.totalorder %s24, 11
      %p68 = por %p66, %p67
      %p70 = scmp.ne.s32.totalorder %s53, %s69
      %p71 = scmp.eq.s32.totalorder %s24, 0
      %p72 = por %p70, %p71
      %s73 = sadd.s32 %s26, 1
      %s74 = sadd.s32 %s40, 1
      %s75 = ssub.s32 %s25, %s44
      %s76 = ssub.s32 %s73, %s74
      %s77 = sor.u32 %s75, %s76
      %p78 = scmp.eq.s32.totalorder %s77, 0
      %s80 = sadd.s32 %s79, 1
      %s81 = scalar_select %p78, %s79, %s80
      %p84 = pneg %p78
      %p85 = scmp.eq.s32.totalorder %s18, 11
      %p86 = por %p84, %p85
      %p87 = scmp.ne.s32.totalorder %s79, %s82
      %p88 = scmp.eq.s32.totalorder %s18, 0
      %p89 = por %p87, %p88
      %p90 = scmp.ne.s32.totalorder %s79, %s82
      %p91 = scmp.eq.s32.totalorder %s23, 11
      %p92 = por %p90, %p91
      %p93 = scmp.ne.s32.totalorder %s82, %s83
      %p94 = scmp.eq.s32.totalorder %s23, 0
      %p95 = por %p93, %p94
      %p96 = scmp.ne.s32.totalorder %s82, %s83
      %p97 = scmp.eq.s32.totalorder %s24, 11
      %p98 = por %p96, %p97
      %p100 = scmp.ne.s32.totalorder %s83, %s99
      %p101 = scmp.eq.s32.totalorder %s24, 0
      %p102 = por %p100, %p101
      %s103 = sadd.s32 %s26, 2
      %s104 = sadd.s32 %s40, 2
      %s105 = ssub.s32 %s25, %s44
      %s106 = ssub.s32 %s103, %s104
      %s107 = sor.u32 %s105, %s106
      %p108 = scmp.eq.s32.totalorder %s107, 0
      %s110 = sadd.s32 %s109, 1
      %s111 = scalar_select %p108, %s109, %s110
      %p114 = pneg %p108
      %p115 = scmp.eq.s32.totalorder %s18, 11
      %p116 = por %p114, %p115
      %p117 = scmp.ne.s32.totalorder %s109, %s112
      %p118 = scmp.eq.s32.totalorder %s18, 0
      %p119 = por %p117, %p118
      %p120 = scmp.ne.s32.totalorder %s109, %s112
      %p121 = scmp.eq.s32.totalorder %s23, 11
      %p122 = por %p120, %p121
      %p123 = scmp.ne.s32.totalorder %s112, %s113
      %p124 = scmp.eq.s32.totalorder %s23, 0
      %p125 = por %p123, %p124
      %p126 = scmp.ne.s32.totalorder %s112, %s113
      %p127 = scmp.eq.s32.totalorder %s24, 11
      %p128 = por %p126, %p127
      %p130 = scmp.ne.s32.totalorder %s113, %s129
      %p131 = scmp.eq.s32.totalorder %s24, 0
      %p132 = por %p130, %p131
      %s134 = sadd.s32 %s133, 1
      %p137 = scmp.eq.s32.totalorder %s18, 11
      %p138 = scmp.ne.s32.totalorder %s133, %s135
      %p139 = scmp.eq.s32.totalorder %s18, 0
      %p140 = por %p138, %p139
      %p141 = scmp.ne.s32.totalorder %s133, %s135
      %p142 = scmp.eq.s32.totalorder %s23, 11
      %p143 = por %p141, %p142
      %p144 = scmp.ne.s32.totalorder %s135, %s136
      %p145 = scmp.eq.s32.totalorder %s23, 0
      %p146 = por %p144, %p145
      %p147 = scmp.ne.s32.totalorder %s135, %s136
      %p148 = scmp.eq.s32.totalorder %s24, 11
      %p149 = por %p147, %p148
      %p151 = scmp.ne.s32.totalorder %s136, %s150
      %p152 = scmp.eq.s32.totalorder %s24, 0
      %p153 = por %p151, %p152
      %s154 = ssub.s32 %s25, %s44
      %s155 = ssub.s32 %s26, %s40
      %s156 = sor.u32 %s154, %s155
      %s157 = ssub.s32 %s27, %s36
      %s158 = sor.u32 %s156, %s157
      %p159 = scmp.eq.s32.totalorder %s158, 0
      %s161 = sadd.s32 %s160, 1
      %s162 = scalar_select %p159, %s160, %s161
      %p165 = pneg %p159
      %p166 = scmp.eq.s32.totalorder %s18, 11
      %p167 = por %p165, %p166
      %p168 = scmp.ne.s32.totalorder %s160, %s163
      %p169 = scmp.eq.s32.totalorder %s18, 0
      %p170 = por %p168, %p169
      %p171 = scmp.ne.s32.totalorder %s160, %s163
      %p172 = scmp.eq.s32.totalorder %s23, 11
      %p173 = por %p171, %p172
      %p174 = scmp.ne.s32.totalorder %s163, %s164
      %p175 = scmp.eq.s32.totalorder %s23, 0
      %p176 = por %p174, %p175
      %p177 = scmp.ne.s32.totalorder %s163, %s164
      %p178 = scmp.eq.s32.totalorder %s24, 11
      %p179 = por %p177, %p178
      %p181 = scmp.ne.s32.totalorder %s164, %s180
      %p182 = scmp.eq.s32.totalorder %s24, 0
      %p183 = por %p181, %p182
      %s184 = ssub.s32 %s25, %s44
      %s185 = ssub.s32 %s26, %s40
      %s186 = sor.u32 %s184, %s185
      %s187 = ssub.s32 %s27, %s36
      %s188 = sor.u32 %s186, %s187
      %p189 = scmp.eq.s32.totalorder %s188, 0
      %s191 = sadd.s32 %s190, 1
      %s192 = scalar_select %p189, %s190, %s191
      %p195 = pneg %p189
      %p196 = scmp.eq.s32.totalorder %s18, 11
      %p197 = por %p195, %p196
      %p198 = scmp.ne.s32.totalorder %s190, %s193
      %p199 = scmp.eq.s32.totalorder %s18, 0
      %p200 = por %p198, %p199
      %p201 = scmp.ne.s32.totalorder %s190, %s193
      %p202 = scmp.eq.s32.totalorder %s23, 11
      %p203 = por %p201, %p202
      %p204 = scmp.ne.s32.totalorder %s193, %s194
      %p205 = scmp.eq.s32.totalorder %s23, 0
      %p206 = por %p204, %p205
      %p207 = scmp.ne.s32.totalorder %s193, %s194
      %p208 = scmp.eq.s32.totalorder %s24, 11
      %p209 = por %p207, %p208
      %p211 = scmp.ne.s32.totalorder %s194, %s210
      %p212 = scmp.eq.s32.totalorder %s24, 0
      %p213 = por %p211, %p212
      %p214 = scmp.le.s32.totalorder 1, %s18
      %p215 = scmp.lt.s32.totalorder %s18, 13
      %p216 = pnand %p214, %p215
      %p217 = pneg %p216
      // Predicated region
      $region9: #{tpu_custom_call.1} parent=5 // pred_check
        _
      $region10: #{tpu_custom_call.1} parent=5 // pred_check_branch
        %219 = sbr.rel (%p216) target = $region12
      $region11: #{tpu_custom_call.1} parent=5 // pred_region
        %s220 = ssub.s32 %s18, 1
        // Predicated region
        $region13: #{tpu_custom_call.1} parent=11 // pred_check
          %p221 = pneg %p146
        $region14: #{tpu_custom_call.1} parent=11 // pred_check_branch
          %223 = sbr.rel (%p221) target = $region16
        $region15: #{tpu_custom_call.1} parent=11 // pred_region
          _
        $region16: #{tpu_custom_call.1} parent=11 // pred_fallthru
          _
      $region12: #{tpu_custom_call.1} parent=5 // pred_fallthru
        _
      %p224 = scmp.lt.s32.totalorder %s18, 12
      // Predicated region
      $region17: #{tpu_custom_call.1} parent=5 // pred_check
        %p225 = pneg %p224
      $region18: #{tpu_custom_call.1} parent=5 // pred_check_branch
        %227 = sbr.rel (%p225) target = $region20
      $region19: #{tpu_custom_call.1} parent=5 // pred_region
        // Predicated region
        $region21: #{tpu_custom_call.1} parent=19 // pred_check
          %p228 = pneg %p59
        $region22: #{tpu_custom_call.1} parent=19 // pred_check_branch
          %230 = sbr.rel (%p228) target = $region24
        $region23: #{tpu_custom_call.1} parent=19 // pred_region
          %p231 = scmp.lt.s32.totalorder %s25, 1
          %s232 = scalar_select %p231, %s25, 1
          %p233 = scmp.lt.s32.totalorder %s26, 7
          %s234 = scalar_select %p233, %s26, 7
          %s235 = smul.addr %s234, 33
          %s236 = smul.addr %s232, 264
          %s237 = sadd.s32 %s235, %s236
          %s238 = smul.addr %s237, 4
          %s239 = scalar_lea.vmem %s0, %s238
        $region24: #{tpu_custom_call.1} parent=19 // pred_fallthru
          _
        // Predicated region
        $region25: #{tpu_custom_call.1} parent=19 // pred_check
          %p240 = pneg %p89
        $region26: #{tpu_custom_call.1} parent=19 // pred_check_branch
          %242 = sbr.rel (%p240) target = $region28
        $region27: #{tpu_custom_call.1} parent=19 // pred_region
          %s243 = sadd.s32 %s26, 1
          %p244 = scmp.lt.s32.totalorder %s25, 1
          %s245 = scalar_select %p244, %s25, 1
          %p246 = scmp.lt.s32.totalorder %s243, 7
          %s247 = scalar_select %p246, %s243, 7
          %s248 = smul.addr %s247, 33
          %s249 = smul.addr %s245, 264
          %s250 = sadd.s32 %s248, %s249
          %s251 = smul.addr %s250, 4
          %s252 = scalar_lea.vmem %s1, %s251
          %s253 = sadd.s32 %s26, 1
        $region28: #{tpu_custom_call.1} parent=19 // pred_fallthru
          _
        // Predicated region
        $region29: #{tpu_custom_call.1} parent=19 // pred_check
          %p254 = pneg %p119
        $region30: #{tpu_custom_call.1} parent=19 // pred_check_branch
          %256 = sbr.rel (%p254) target = $region32
        $region31: #{tpu_custom_call.1} parent=19 // pred_region
          %s257 = sadd.s32 %s26, 2
          %p258 = scmp.lt.s32.totalorder %s25, 1
          %s259 = scalar_select %p258, %s25, 1
          %p260 = scmp.lt.s32.totalorder %s257, 7
          %s261 = scalar_select %p260, %s257, 7
          %s262 = smul.addr %s261, 33
          %s263 = smul.addr %s259, 264
          %s264 = sadd.s32 %s262, %s263
          %s265 = smul.addr %s264, 4
          %s266 = scalar_lea.vmem %s2, %s265
          %s267 = sadd.s32 %s26, 2
        $region32: #{tpu_custom_call.1} parent=19 // pred_fallthru
          _
      $region20: #{tpu_custom_call.1} parent=5 // pred_fallthru
        _
      %p268 = scmp.le.s32.totalorder 1, %s18
      %p269 = scmp.lt.s32.totalorder %s18, 13
      %p270 = pnand %p268, %p269
      %p271 = pneg %p270
      // Predicated region
      $region33: #{tpu_custom_call.1} parent=5 // pred_check
        _
      $region34: #{tpu_custom_call.1} parent=5 // pred_check_branch
        %273 = sbr.rel (%p270) target = $region36
      $region35: #{tpu_custom_call.1} parent=5 // pred_region
        %s274 = ssub.s32 %s18, 1
        %p275 = scmp.lt.s32.totalorder %s28, 1
        %s276 = scalar_select %p275, %s28, 1
        %p277 = scmp.lt.s32.totalorder %s29, 7
        %s278 = scalar_select %p277, %s29, 7
        %s279 = smul.addr %s278, 33
        %s280 = smul.addr %s276, 264
        %s281 = sadd.s32 %s279, %s280
        %s282 = smul.addr %s281, 4
        %s283 = scalar_lea.vmem %s0, %s282
        %p284 = pneg %p65
        %p285 = pneg %p62
        %s286 = sadd.s32 %s29, 1
        %p287 = scmp.lt.s32.totalorder %s28, 1
        %s288 = scalar_select %p287, %s28, 1
        %p289 = scmp.lt.s32.totalorder %s286, 7
        %s290 = scalar_select %p289, %s286, 7
        %s291 = smul.addr %s290, 33
        %s292 = smul.addr %s288, 264
        %s293 = sadd.s32 %s291, %s292
        %s294 = smul.addr %s293, 4
        %s295 = scalar_lea.vmem %s1, %s294
        %p296 = pneg %p95
        %p297 = pneg %p92
        %s298 = sadd.s32 %s29, 2
        %p299 = scmp.lt.s32.totalorder %s28, 1
        %s300 = scalar_select %p299, %s28, 1
        %p301 = scmp.lt.s32.totalorder %s298, 7
        %s302 = scalar_select %p301, %s298, 7
        %s303 = smul.addr %s302, 33
        %s304 = smul.addr %s300, 264
        %s305 = sadd.s32 %s303, %s304
        %s306 = smul.addr %s305, 4
        %s307 = scalar_lea.vmem %s2, %s306
        %p308 = pneg %p125
        %p309 = pneg %p122
        %p310 = pneg %p146
        %p311 = pneg %p143
        %p312 = pneg %p176
        %p313 = pneg %p173
        %s314 = sand.u32 %s163, 1
        %s315 = scalar_lea.sflag [#allocation3], %s314
        %s316 = sand.u32 %s163, 1
        %s317 = smul.addr %s316, 112
        %s318 = scalar_lea.vmem [#allocation2], %s317
        %p319 = pneg %p206
        %p320 = pneg %p203
        %s321 = sand.u32 %s193, 1
        %s322 = scalar_lea.sflag [#allocation5], %s321
        %s323 = sand.u32 %s193, 1
        %s324 = smul.addr %s323, 8
        %s325 = scalar_lea.vmem [#allocation4], %s324
        %p326 = scmp.lt.s32.totalorder %s28, 1
        %s327 = scalar_select %p326, %s28, 1
        %p328 = scmp.lt.s32.totalorder %s29, 7
        %s329 = scalar_select %p328, %s29, 7
        %s330 = smul.addr %s329, 33
        %s331 = smul.addr %s327, 264
        %s332 = sadd.s32 %s330, %s331
        %s333 = smul.addr %s332, 4
        %s334 = scalar_lea.vmem %s0, %s333
        %s335 = sadd.s32 %s29, 1
        %p336 = scmp.lt.s32.totalorder %s28, 1
        %s337 = scalar_select %p336, %s28, 1
        %p338 = scmp.lt.s32.totalorder %s335, 7
        %s339 = scalar_select %p338, %s335, 7
        %s340 = smul.addr %s339, 33
        %s341 = smul.addr %s337, 264
        %s342 = sadd.s32 %s340, %s341
        %s343 = smul.addr %s342, 4
        %s344 = scalar_lea.vmem %s1, %s343
        %s345 = sadd.s32 %s29, 1
        %s346 = sadd.s32 %s29, 2
        %p347 = scmp.lt.s32.totalorder %s28, 1
        %s348 = scalar_select %p347, %s28, 1
        %p349 = scmp.lt.s32.totalorder %s346, 7
        %s350 = scalar_select %p349, %s346, 7
        %s351 = smul.addr %s350, 33
        %s352 = smul.addr %s348, 264
        %s353 = sadd.s32 %s351, %s352
        %s354 = smul.addr %s353, 4
        %s355 = scalar_lea.vmem %s2, %s354
        %s356 = sadd.s32 %s29, 2
        %s357 = smul.u32 28, %s30
        %v359 = vld [vmem:[%s334] sm:$0xf]
        %v360 = vld [vmem:[%s334 + $0x4] sm:$0xf]
        %v361 = vld [vmem:[%s334 + $0x8] sm:$0xf]
        %v362 = vld [vmem:[%s334 + $0xc] sm:$0xf]
        %v363 = vld [vmem:[%s334 + $0x10] sm:$0xf]
        %v364 = vld [vmem:[%s334 + $0x14] sm:$0xf]
        %v365 = vld [vmem:[%s334 + $0x18] sm:$0xf]
        %v366 = vld [vmem:[%s334 + $0x1c] sm:$0xf]
        %v367 = vld [vmem:[%s334 + $0x20] sm:$0xf]
        %v368 = vld [vmem:[%s334 + $0x24] sm:$0xf]
        %v369 = vld [vmem:[%s334 + $0x28] sm:$0xf]
        %v370 = vld [vmem:[%s334 + $0x2c] sm:$0xf]
        %v371 = vld [vmem:[%s334 + $0x30] sm:$0xf]
        %v372 = vld [vmem:[%s334 + $0x34] sm:$0xf]
        %v373 = vld [vmem:[%s334 + $0x38] sm:$0xf]
        %v374 = vld [vmem:[%s334 + $0x3c] sm:$0xf]
        %v375 = vld [vmem:[%s334 + $0x40] sm:$0xf]
        %v376 = vld [vmem:[%s334 + $0x44] sm:$0xf]
        %v377 = vld [vmem:[%s334 + $0x48] sm:$0xf]
        %v378 = vld [vmem:[%s334 + $0x4c] sm:$0xf]
        %v379 = vld [vmem:[%s334 + $0x50] sm:$0xf]
        %v380 = vld [vmem:[%s334 + $0x54] sm:$0xf]
        %v381 = vld [vmem:[%s334 + $0x58] sm:$0xf]
        %v382 = vld [vmem:[%s334 + $0x5c] sm:$0xf]
        %v383 = vld [vmem:[%s334 + $0x60] sm:$0xf]
        %v384 = vld [vmem:[%s334 + $0x64] sm:$0xf]
        %v385 = vld [vmem:[%s334 + $0x68] sm:$0xf]
        %v386 = vld [vmem:[%s334 + $0x6c] sm:$0xf]
        %v387 = vld [vmem:[%s334 + $0x70] sm:$0x1]
        %v388 = vld [vmem:[%s334] sm:$0xe]
        %v389 = vld [vmem:[%s334 + $0x70] sm:$0xf]
        %v390 = vld [vmem:[%s334 + $0x74] sm:$0xf]
        %v391 = vld [vmem:[%s334 + $0x78] sm:$0x1]
        %v392 = vld [vmem:[%s334 + $0x8] sm:$0xe]
        %v393 = vld [vmem:[%s334 + $0x78] sm:$0xf]
        %v394 = vld [vmem:[%s334 + $0x7c] sm:$0xf]
        %v395 = vld [vmem:[%s334 + $0x80] sm:$0x1]
        %v396 = vld [vmem:[%s334 + $0x10] sm:$0xe]
        %v397 = vld [vmem:[%s344] sm:$0xf]
        %v398 = vld [vmem:[%s344 + $0x4] sm:$0xf]
        %v399 = vld [vmem:[%s344 + $0x8] sm:$0xf]
        %v400 = vld [vmem:[%s344 + $0xc] sm:$0xf]
        %v401 = vld [vmem:[%s344 + $0x10] sm:$0xf]
        %v402 = vld [vmem:[%s344 + $0x14] sm:$0xf]
        %v403 = vld [vmem:[%s344 + $0x18] sm:$0xf]
        %v404 = vld [vmem:[%s344 + $0x1c] sm:$0xf]
        %v405 = vld [vmem:[%s344 + $0x20] sm:$0xf]
        %v406 = vld [vmem:[%s344 + $0x24] sm:$0xf]
        %v407 = vld [vmem:[%s344 + $0x28] sm:$0xf]
        %v408 = vld [vmem:[%s344 + $0x2c] sm:$0xf]
        %v409 = vld [vmem:[%s344 + $0x30] sm:$0xf]
        %v410 = vld [vmem:[%s344 + $0x34] sm:$0xf]
        %v411 = vld [vmem:[%s344 + $0x38] sm:$0xf]
        %v412 = vld [vmem:[%s344 + $0x3c] sm:$0xf]
        %v413 = vld [vmem:[%s344 + $0x40] sm:$0xf]
        %v414 = vld [vmem:[%s344 + $0x44] sm:$0xf]
        %v415 = vld [vmem:[%s344 + $0x48] sm:$0xf]
        %v416 = vld [vmem:[%s344 + $0x4c] sm:$0xf]
        %v417 = vld [vmem:[%s344 + $0x50] sm:$0xf]
        %v418 = vld [vmem:[%s344 + $0x54] sm:$0xf]
        %v419 = vld [vmem:[%s344 + $0x58] sm:$0xf]
        %v420 = vld [vmem:[%s344 + $0x5c] sm:$0xf]
        %v421 = vld [vmem:[%s344 + $0x60] sm:$0xf]
        %v422 = vld [vmem:[%s344 + $0x64] sm:$0xf]
        %v423 = vld [vmem:[%s344 + $0x68] sm:$0xf]
        %v424 = vld [vmem:[%s344 + $0x6c] sm:$0xf]
        %v425 = vld [vmem:[%s344 + $0x70] sm:$0x1]
        %v426 = vld [vmem:[%s344] sm:$0xe]
        %v427 = vld [vmem:[%s344 + $0x70] sm:$0xf]
        %v428 = vld [vmem:[%s344 + $0x74] sm:$0xf]
        %v429 = vld [vmem:[%s344 + $0x78] sm:$0x1]
        %v430 = vld [vmem:[%s344 + $0x8] sm:$0xe]
        %v431 = vld [vmem:[%s344 + $0x78] sm:$0xf]
        %v432 = vld [vmem:[%s344 + $0x7c] sm:$0xf]
        %v433 = vld [vmem:[%s344 + $0x80] sm:$0x1]
        %v434 = vld [vmem:[%s344 + $0x10] sm:$0xe]
        %v435 = vld [vmem:[%s355] sm:$0xf]
        %v436 = vld [vmem:[%s355 + $0x4] sm:$0xf]
        %v437 = vld [vmem:[%s355 + $0x8] sm:$0xf]
        %v438 = vld [vmem:[%s355 + $0xc] sm:$0xf]
        %v439 = vld [vmem:[%s355 + $0x10] sm:$0xf]
        %v440 = vld [vmem:[%s355 + $0x14] sm:$0xf]
        %v441 = vld [vmem:[%s355 + $0x18] sm:$0xf]
        %v442 = vld [vmem:[%s355 + $0x1c] sm:$0xf]
        %v443 = vld [vmem:[%s355 + $0x20] sm:$0xf]
        %v444 = vld [vmem:[%s355 + $0x24] sm:$0xf]
        %v445 = vld [vmem:[%s355 + $0x28] sm:$0xf]
        %v446 = vld [vmem:[%s355 + $0x2c] sm:$0xf]
        %v447 = vld [vmem:[%s355 + $0x30] sm:$0xf]
        %v448 = vld [vmem:[%s355 + $0x34] sm:$0xf]
        %v449 = vld [vmem:[%s355 + $0x38] sm:$0xf]
        %v450 = vld [vmem:[%s355 + $0x3c] sm:$0xf]
        %v451 = vld [vmem:[%s355 + $0x40] sm:$0xf]
        %v452 = vld [vmem:[%s355 + $0x44] sm:$0xf]
        %v453 = vld [vmem:[%s355 + $0x48] sm:$0xf]
        %v454 = vld [vmem:[%s355 + $0x4c] sm:$0xf]
        %v455 = vld [vmem:[%s355 + $0x50] sm:$0xf]
        %v456 = vld [vmem:[%s355 + $0x54] sm:$0xf]
        %v457 = vld [vmem:[%s355 + $0x58] sm:$0xf]
        %v458 = vld [vmem:[%s355 + $0x5c] sm:$0xf]
        %v459 = vld [vmem:[%s355 + $0x60] sm:$0xf]
        %v460 = vld [vmem:[%s355 + $0x64] sm:$0xf]
        %v461 = vld [vmem:[%s355 + $0x68] sm:$0xf]
        %v462 = vld [vmem:[%s355 + $0x6c] sm:$0xf]
        %v463 = vld [vmem:[%s355 + $0x70] sm:$0x1]
        %v464 = vld [vmem:[%s355] sm:$0xe]
        %v465 = vld [vmem:[%s355 + $0x70] sm:$0xf]
        %v466 = vld [vmem:[%s355 + $0x74] sm:$0xf]
        %v467 = vld [vmem:[%s355 + $0x78] sm:$0x1]
        %v468 = vld [vmem:[%s355 + $0x8] sm:$0xe]
        %v469 = vld [vmem:[%s355 + $0x78] sm:$0xf]
        %v470 = vld [vmem:[%s355 + $0x7c] sm:$0xf]
        %v471 = vld [vmem:[%s355 + $0x80] sm:$0x1]
        %v472 = vld [vmem:[%s355 + $0x10] sm:$0xe]
        %v501 = vunpack.c.l.b16 %v359
        %v502 = vunpack.c.l.b16 %v360
        %v503 = vunpack.c.l.b16 %v361
        %v504 = vunpack.c.l.b16 %v362
        %v505 = vunpack.c.l.b16 %v363
        %v506 = vunpack.c.l.b16 %v364
        %v507 = vunpack.c.l.b16 %v365
        %v508 = vunpack.c.l.b16 %v366
        %v509 = vunpack.c.l.b16 %v367
        %v510 = vunpack.c.l.b16 %v368
        %v511 = vunpack.c.l.b16 %v369
        %v512 = vunpack.c.l.b16 %v370
        %v513 = vunpack.c.l.b16 %v371
        %v514 = vunpack.c.l.b16 %v372
        %v515 = vunpack.c.l.b16 %v373
        %v516 = vunpack.c.l.b16 %v374
        %v517 = vunpack.c.l.b16 %v375
        %v518 = vunpack.c.l.b16 %v376
        %v519 = vunpack.c.l.b16 %v377
        %v520 = vunpack.c.l.b16 %v378
        %v521 = vunpack.c.l.b16 %v379
        %v522 = vunpack.c.l.b16 %v380
        %v523 = vunpack.c.l.b16 %v381
        %v524 = vunpack.c.l.b16 %v382
        %v525 = vunpack.c.l.b16 %v383
        %v526 = vunpack.c.l.b16 %v384
        %v527 = vunpack.c.l.b16 %v385
        %v528 = vunpack.c.l.b16 %v386
        %v529 = vpack.c.b16 %v502, %v501
        %v530 = vpack.c.b16 %v504, %v503
        %v531 = vpack.c.b16 %v506, %v505
        %v532 = vpack.c.b16 %v508, %v507
        %v533 = vpack.c.b16 %v510, %v509
        %v534 = vpack.c.b16 %v512, %v511
        %v535 = vpack.c.b16 %v514, %v513
        %v536 = vpack.c.b16 %v516, %v515
        %v537 = vpack.c.b16 %v518, %v517
        %v538 = vpack.c.b16 %v520, %v519
        %v539 = vpack.c.b16 %v522, %v521
        %v540 = vpack.c.b16 %v524, %v523
        %v541 = vpack.c.b16 %v526, %v525
        %v542 = vpack.c.b16 %v528, %v527
        %v544 = vunpack.c.l.b16 %v387
        %v545 = vpack.c.b16 %v544, %v544
        %vm546 = vsmask.f32 7424
        %v548 = vshrl.u32 %v529, 16
        %v550 = vshll.u32 %v529, 16
        %v552 = vrot.slane %v550, 1
        %v553 = vor.u32 %v548, %v552
        %v555 = vshll.u32 %v530, 16
        %v557 = vrot.slane %v555, 1
        %v558 = vsel %vm546, %v553, %v557
        %v559 = vshrl.u32 %v530, 16
        %v561 = vor.u32 %v559, %v557
        %v563 = vshll.u32 %v531, 16
        %v565 = vrot.slane %v563, 1
        %v566 = vsel %vm546, %v561, %v565
        %v567 = vshrl.u32 %v531, 16
        %v569 = vor.u32 %v567, %v565
        %v571 = vshll.u32 %v532, 16
        %v573 = vrot.slane %v571, 1
        %v574 = vsel %vm546, %v569, %v573
        %v575 = vshrl.u32 %v532, 16
        %v577 = vor.u32 %v575, %v573
        %v579 = vshll.u32 %v533, 16
        %v581 = vrot.slane %v579, 1
        %v582 = vsel %vm546, %v577, %v581
        %v583 = vshrl.u32 %v533, 16
        %v585 = vor.u32 %v583, %v581
        %v587 = vshll.u32 %v534, 16
        %v589 = vrot.slane %v587, 1
        %v590 = vsel %vm546, %v585, %v589
        %v591 = vshrl.u32 %v534, 16
        %v593 = vor.u32 %v591, %v589
        %v595 = vshll.u32 %v535, 16
        %v597 = vrot.slane %v595, 1
        %v598 = vsel %vm546, %v593, %v597
        %v599 = vshrl.u32 %v535, 16
        %v601 = vor.u32 %v599, %v597
        %v603 = vshll.u32 %v536, 16
        %v605 = vrot.slane %v603, 1
        %v606 = vsel %vm546, %v601, %v605
        %v607 = vshrl.u32 %v536, 16
        %v609 = vor.u32 %v607, %v605
        %v611 = vshll.u32 %v537, 16
        %v613 = vrot.slane %v611, 1
        %v614 = vsel %vm546, %v609, %v613
        %v615 = vshrl.u32 %v537, 16
        %v617 = vor.u32 %v615, %v613
        %v619 = vshll.u32 %v538, 16
        %v621 = vrot.slane %v619, 1
        %v622 = vsel %vm546, %v617, %v621
        %v623 = vshrl.u32 %v538, 16
        %v625 = vor.u32 %v623, %v621
        %v627 = vshll.u32 %v539, 16
        %v629 = vrot.slane %v627, 1
        %v630 = vsel %vm546, %v625, %v629
        %v631 = vshrl.u32 %v539, 16
        %v633 = vor.u32 %v631, %v629
        %v635 = vshll.u32 %v540, 16
        %v637 = vrot.slane %v635, 1
        %v638 = vsel %vm546, %v633, %v637
        %v639 = vshrl.u32 %v540, 16
        %v641 = vor.u32 %v639, %v637
        %v643 = vshll.u32 %v541, 16
        %v645 = vrot.slane %v643, 1
        %v646 = vsel %vm546, %v641, %v645
        %v647 = vshrl.u32 %v541, 16
        %v649 = vor.u32 %v647, %v645
        %v651 = vshll.u32 %v542, 16
        %v653 = vrot.slane %v651, 1
        %v654 = vsel %vm546, %v649, %v653
        %v655 = vshrl.u32 %v542, 16
        %v657 = vor.u32 %v655, %v653
        %v659 = vshll.u32 %v545, 16
        %v661 = vrot.slane %v659, 1
        %v662 = vsel %vm546, %v657, %v661
        %663 = vrot.lane.b32.xlu0 %v558, 4
        %v664 = vpop.permute.xlu0 %663
        %665 = vrot.lane.b32.xlu0 %v566, 4
        %v666 = vpop.permute.xlu0 %665
        %667 = vrot.lane.b32.xlu0 %v574, 4
        %v668 = vpop.permute.xlu0 %667
        %669 = vrot.lane.b32.xlu0 %v582, 4
        %v670 = vpop.permute.xlu0 %669
        %671 = vrot.lane.b32.xlu0 %v590, 4
        %v672 = vpop.permute.xlu0 %671
        %673 = vrot.lane.b32.xlu0 %v598, 4
        %v674 = vpop.permute.xlu0 %673
        %675 = vrot.lane.b32.xlu0 %v606, 4
        %v676 = vpop.permute.xlu0 %675
        %677 = vrot.lane.b32.xlu0 %v614, 4
        %v678 = vpop.permute.xlu0 %677
        %679 = vrot.lane.b32.xlu0 %v622, 4
        %v680 = vpop.permute.xlu0 %679
        %681 = vrot.lane.b32.xlu0 %v630, 4
        %v682 = vpop.permute.xlu0 %681
        %683 = vrot.lane.b32.xlu0 %v638, 4
        %v684 = vpop.permute.xlu0 %683
        %685 = vrot.lane.b32.xlu0 %v646, 4
        %v686 = vpop.permute.xlu0 %685
        %687 = vrot.lane.b32.xlu0 %v654, 4
        %v688 = vpop.permute.xlu0 %687
        %689 = vrot.lane.b32.xlu0 %v662, 4
        %v690 = vpop.permute.xlu0 %689
        %v692 = vunpack.c.l.b16 %v388
        %v693 = vpack.c.b16 %v502, %v692
        %vm694 = vcmask 1046528
        %v695 = vrot.slane %v693, 1
        %v696 = vrot.slane %v530, 1
        %v697 = vsel %vm694, %v695, %v696
        %v698 = vrot.slane %v531, 1
        %v699 = vsel %vm694, %v696, %v698
        %v700 = vrot.slane %v532, 1
        %v701 = vsel %vm694, %v698, %v700
        %v702 = vrot.slane %v533, 1
        %v703 = vsel %vm694, %v700, %v702
        %v704 = vrot.slane %v534, 1
        %v705 = vsel %vm694, %v702, %v704
        %v706 = vrot.slane %v535, 1
        %v707 = vsel %vm694, %v704, %v706
        %v708 = vrot.slane %v536, 1
        %v709 = vsel %vm694, %v706, %v708
        %v710 = vrot.slane %v537, 1
        %v711 = vsel %vm694, %v708, %v710
        %v712 = vrot.slane %v538, 1
        %v713 = vsel %vm694, %v710, %v712
        %v714 = vrot.slane %v539, 1
        %v715 = vsel %vm694, %v712, %v714
        %v716 = vrot.slane %v540, 1
        %v717 = vsel %vm694, %v714, %v716
        %v718 = vrot.slane %v541, 1
        %v719 = vsel %vm694, %v716, %v718
        %v720 = vrot.slane %v542, 1
        %v721 = vsel %vm694, %v718, %v720
        %v722 = vrot.slane %v545, 1
        %v723 = vsel %vm694, %v720, %v722
        %724 = vrot.lane.b32.xlu0 %v697, 8
        %v725 = vpop.permute.xlu0 %724
        %726 = vrot.lane.b32.xlu0 %v699, 8
        %v727 = vpop.permute.xlu0 %726
        %728 = vrot.lane.b32.xlu0 %v701, 8
        %v729 = vpop.permute.xlu0 %728
        %730 = vrot.lane.b32.xlu0 %v703, 8
        %v731 = vpop.permute.xlu0 %730
        %732 = vrot.lane.b32.xlu0 %v705, 8
        %v733 = vpop.permute.xlu0 %732
        %734 = vrot.lane.b32.xlu0 %v707, 8
        %v735 = vpop.permute.xlu0 %734
        %736 = vrot.lane.b32.xlu0 %v709, 8
        %v737 = vpop.permute.xlu0 %736
        %738 = vrot.lane.b32.xlu0 %v711, 8
        %v739 = vpop.permute.xlu0 %738
        %740 = vrot.lane.b32.xlu0 %v713, 8
        %v741 = vpop.permute.xlu0 %740
        %742 = vrot.lane.b32.xlu0 %v715, 8
        %v743 = vpop.permute.xlu0 %742
        %744 = vrot.lane.b32.xlu0 %v717, 8
        %v745 = vpop.permute.xlu0 %744
        %746 = vrot.lane.b32.xlu0 %v719, 8
        %v747 = vpop.permute.xlu0 %746
        %748 = vrot.lane.b32.xlu0 %v721, 8
        %v749 = vpop.permute.xlu0 %748
        %750 = vrot.lane.b32.xlu0 %v723, 8
        %v751 = vpop.permute.xlu0 %750
        %v754 = vunpack.c.l.b16 %v389
        %v755 = vunpack.c.l.b16 %v390
        %v756 = vpack.c.b16 %v755, %v754
        %757 = vrot.lane.b32.xlu0 %v530, 12
        %v758 = vpop.permute.xlu0 %757
        %759 = vrot.lane.b32.xlu0 %v531, 12
        %v760 = vpop.permute.xlu0 %759
        %761 = vrot.lane.b32.xlu0 %v532, 12
        %v762 = vpop.permute.xlu0 %761
        %763 = vrot.lane.b32.xlu0 %v533, 12
        %v764 = vpop.permute.xlu0 %763
        %765 = vrot.lane.b32.xlu0 %v534, 12
        %v766 = vpop.permute.xlu0 %765
        %767 = vrot.lane.b32.xlu0 %v535, 12
        %v768 = vpop.permute.xlu0 %767
        %769 = vrot.lane.b32.xlu0 %v536, 12
        %v770 = vpop.permute.xlu0 %769
        %771 = vrot.lane.b32.xlu0 %v537, 12
        %v772 = vpop.permute.xlu0 %771
        %773 = vrot.lane.b32.xlu0 %v538, 12
        %v774 = vpop.permute.xlu0 %773
        %775 = vrot.lane.b32.xlu0 %v539, 12
        %v776 = vpop.permute.xlu0 %775
        %777 = vrot.lane.b32.xlu0 %v540, 12
        %v778 = vpop.permute.xlu0 %777
        %779 = vrot.lane.b32.xlu0 %v541, 12
        %v780 = vpop.permute.xlu0 %779
        %781 = vrot.lane.b32.xlu0 %v542, 12
        %v782 = vpop.permute.xlu0 %781
        %783 = vrot.lane.b32.xlu0 %v756, 12
        %v784 = vpop.permute.xlu0 %783
        %v786 = vunpack.c.l.b16 %v391
        %v787 = vpack.c.b16 %v786, %v786
        %v789 = vshll.u32 %v756, 16
        %v791 = vrot.slane %v789, 1
        %v792 = vsel %vm546, %v657, %v791
        %v793 = vshrl.u32 %v756, 16
        %v795 = vor.u32 %v793, %v791
        %v797 = vshll.u32 %v787, 16
        %v799 = vrot.slane %v797, 1
        %v800 = vsel %vm546, %v795, %v799
        %801 = vrot.lane.b32.xlu0 %v566, 16
        %v802 = vpop.permute.xlu0 %801
        %803 = vrot.lane.b32.xlu0 %v574, 16
        %v804 = vpop.permute.xlu0 %803
        %805 = vrot.lane.b32.xlu0 %v582, 16
        %v806 = vpop.permute.xlu0 %805
        %807 = vrot.lane.b32.xlu0 %v590, 16
        %v808 = vpop.permute.xlu0 %807
        %809 = vrot.lane.b32.xlu0 %v598, 16
        %v810 = vpop.permute.xlu0 %809
        %811 = vrot.lane.b32.xlu0 %v606, 16
        %v812 = vpop.permute.xlu0 %811
        %813 = vrot.lane.b32.xlu0 %v614, 16
        %v814 = vpop.permute.xlu0 %813
        %815 = vrot.lane.b32.xlu0 %v622, 16
        %v816 = vpop.permute.xlu0 %815
        %817 = vrot.lane.b32.xlu0 %v630, 16
        %v818 = vpop.permute.xlu0 %817
        %819 = vrot.lane.b32.xlu0 %v638, 16
        %v820 = vpop.permute.xlu0 %819
        %821 = vrot.lane.b32.xlu0 %v646, 16
        %v822 = vpop.permute.xlu0 %821
        %823 = vrot.lane.b32.xlu0 %v654, 16
        %v824 = vpop.permute.xlu0 %823
        %825 = vrot.lane.b32.xlu0 %v792, 16
        %v826 = vpop.permute.xlu0 %825
        %827 = vrot.lane.b32.xlu0 %v800, 16
        %v828 = vpop.permute.xlu0 %827
        %v830 = vunpack.c.l.b16 %v392
        %v831 = vpack.c.b16 %v504, %v830
        %v832 = vrot.slane %v831, 1
        %v833 = vsel %vm694, %v832, %v698
        %v834 = vrot.slane %v756, 1
        %v835 = vsel %vm694, %v720, %v834
        %v836 = vrot.slane %v787, 1
        %v837 = vsel %vm694, %v834, %v836
        %838 = vrot.lane.b32.xlu0 %v833, 20
        %v839 = vpop.permute.xlu0 %838
        %840 = vrot.lane.b32.xlu0 %v701, 20
        %v841 = vpop.permute.xlu0 %840
        %842 = vrot.lane.b32.xlu0 %v703, 20
        %v843 = vpop.permute.xlu0 %842
        %844 = vrot.lane.b32.xlu0 %v705, 20
        %v845 = vpop.permute.xlu0 %844
        %846 = vrot.lane.b32.xlu0 %v707, 20
        %v847 = vpop.permute.xlu0 %846
        %848 = vrot.lane.b32.xlu0 %v709, 20
        %v849 = vpop.permute.xlu0 %848
        %850 = vrot.lane.b32.xlu0 %v711, 20
        %v851 = vpop.permute.xlu0 %850
        %852 = vrot.lane.b32.xlu0 %v713, 20
        %v853 = vpop.permute.xlu0 %852
        %854 = vrot.lane.b32.xlu0 %v715, 20
        %v855 = vpop.permute.xlu0 %854
        %856 = vrot.lane.b32.xlu0 %v717, 20
        %v857 = vpop.permute.xlu0 %856
        %858 = vrot.lane.b32.xlu0 %v719, 20
        %v859 = vpop.permute.xlu0 %858
        %860 = vrot.lane.b32.xlu0 %v721, 20
        %v861 = vpop.permute.xlu0 %860
        %862 = vrot.lane.b32.xlu0 %v835, 20
        %v863 = vpop.permute.xlu0 %862
        %864 = vrot.lane.b32.xlu0 %v837, 20
        %v865 = vpop.permute.xlu0 %864
        %v868 = vunpack.c.l.b16 %v393
        %v869 = vunpack.c.l.b16 %v394
        %v870 = vpack.c.b16 %v869, %v868
        %871 = vrot.lane.b32.xlu0 %v531, 24
        %v872 = vpop.permute.xlu0 %871
        %873 = vrot.lane.b32.xlu0 %v532, 24
        %v874 = vpop.permute.xlu0 %873
        %875 = vrot.lane.b32.xlu0 %v533, 24
        %v876 = vpop.permute.xlu0 %875
        %877 = vrot.lane.b32.xlu0 %v534, 24
        %v878 = vpop.permute.xlu0 %877
        %879 = vrot.lane.b32.xlu0 %v535, 24
        %v880 = vpop.permute.xlu0 %879
        %881 = vrot.lane.b32.xlu0 %v536, 24
        %v882 = vpop.permute.xlu0 %881
        %883 = vrot.lane.b32.xlu0 %v537, 24
        %v884 = vpop.permute.xlu0 %883
        %885 = vrot.lane.b32.xlu0 %v538, 24
        %v886 = vpop.permute.xlu0 %885
        %887 = vrot.lane.b32.xlu0 %v539, 24
        %v888 = vpop.permute.xlu0 %887
        %889 = vrot.lane.b32.xlu0 %v540, 24
        %v890 = vpop.permute.xlu0 %889
        %891 = vrot.lane.b32.xlu0 %v541, 24
        %v892 = vpop.permute.xlu0 %891
        %893 = vrot.lane.b32.xlu0 %v542, 24
        %v894 = vpop.permute.xlu0 %893
        %895 = vrot.lane.b32.xlu0 %v756, 24
        %v896 = vpop.permute.xlu0 %895
        %897 = vrot.lane.b32.xlu0 %v870, 24
        %v898 = vpop.permute.xlu0 %897
        %v900 = vunpack.c.l.b16 %v395
        %v901 = vpack.c.b16 %v900, %v900
        %v903 = vshll.u32 %v870, 16
        %v905 = vrot.slane %v903, 1
        %v906 = vsel %vm546, %v795, %v905
        %v907 = vshrl.u32 %v870, 16
        %v909 = vor.u32 %v907, %v905
        %v911 = vshll.u32 %v901, 16
        %v913 = vrot.slane %v911, 1
        %v914 = vsel %vm546, %v909, %v913
        %915 = vrot.lane.b32.xlu0 %v574, 28
        %v916 = vpop.permute.xlu0 %915
        %917 = vrot.lane.b32.xlu0 %v582, 28
        %v918 = vpop.permute.xlu0 %917
        %919 = vrot.lane.b32.xlu0 %v590, 28
        %v920 = vpop.permute.xlu0 %919
        %921 = vrot.lane.b32.xlu0 %v598, 28
        %v922 = vpop.permute.xlu0 %921
        %923 = vrot.lane.b32.xlu0 %v606, 28
        %v924 = vpop.permute.xlu0 %923
        %925 = vrot.lane.b32.xlu0 %v614, 28
        %v926 = vpop.permute.xlu0 %925
        %927 = vrot.lane.b32.xlu0 %v622, 28
        %v928 = vpop.permute.xlu0 %927
        %929 = vrot.lane.b32.xlu0 %v630, 28
        %v930 = vpop.permute.xlu0 %929
        %931 = vrot.lane.b32.xlu0 %v638, 28
        %v932 = vpop.permute.xlu0 %931
        %933 = vrot.lane.b32.xlu0 %v646, 28
        %v934 = vpop.permute.xlu0 %933
        %935 = vrot.lane.b32.xlu0 %v654, 28
        %v936 = vpop.permute.xlu0 %935
        %937 = vrot.lane.b32.xlu0 %v792, 28
        %v938 = vpop.permute.xlu0 %937
        %939 = vrot.lane.b32.xlu0 %v906, 28
        %v940 = vpop.permute.xlu0 %939
        %941 = vrot.lane.b32.xlu0 %v914, 28
        %v942 = vpop.permute.xlu0 %941
        %v944 = vunpack.c.l.b16 %v396
        %v945 = vpack.c.b16 %v506, %v944
        %v946 = vrot.slane %v945, 1
        %v947 = vsel %vm694, %v946, %v700
        %v948 = vrot.slane %v870, 1
        %v949 = vsel %vm694, %v834, %v948
        %v950 = vrot.slane %v901, 1
        %v951 = vsel %vm694, %v948, %v950
        %952 = vrot.lane.b32.xlu0 %v947, 32
        %v953 = vpop.permute.xlu0 %952
        %954 = vrot.lane.b32.xlu0 %v703, 32
        %v955 = vpop.permute.xlu0 %954
        %956 = vrot.lane.b32.xlu0 %v705, 32
        %v957 = vpop.permute.xlu0 %956
        %958 = vrot.lane.b32.xlu0 %v707, 32
        %v959 = vpop.permute.xlu0 %958
        %960 = vrot.lane.b32.xlu0 %v709, 32
        %v961 = vpop.permute.xlu0 %960
        %962 = vrot.lane.b32.xlu0 %v711, 32
        %v963 = vpop.permute.xlu0 %962
        %964 = vrot.lane.b32.xlu0 %v713, 32
        %v965 = vpop.permute.xlu0 %964
        %966 = vrot.lane.b32.xlu0 %v715, 32
        %v967 = vpop.permute.xlu0 %966
        %968 = vrot.lane.b32.xlu0 %v717, 32
        %v969 = vpop.permute.xlu0 %968
        %970 = vrot.lane.b32.xlu0 %v719, 32
        %v971 = vpop.permute.xlu0 %970
        %972 = vrot.lane.b32.xlu0 %v721, 32
        %v973 = vpop.permute.xlu0 %972
        %974 = vrot.lane.b32.xlu0 %v835, 32
        %v975 = vpop.permute.xlu0 %974
        %976 = vrot.lane.b32.xlu0 %v949, 32
        %v977 = vpop.permute.xlu0 %976
        %978 = vrot.lane.b32.xlu0 %v951, 32
        %v979 = vpop.permute.xlu0 %978
        %v1008 = vunpack.c.l.b16 %v397
        %v1009 = vunpack.c.l.b16 %v398
        %v1010 = vunpack.c.l.b16 %v399
        %v1011 = vunpack.c.l.b16 %v400
        %v1012 = vunpack.c.l.b16 %v401
        %v1013 = vunpack.c.l.b16 %v402
        %v1014 = vunpack.c.l.b16 %v403
        %v1015 = vunpack.c.l.b16 %v404
        %v1016 = vunpack.c.l.b16 %v405
        %v1017 = vunpack.c.l.b16 %v406
        %v1018 = vunpack.c.l.b16 %v407
        %v1019 = vunpack.c.l.b16 %v408
        %v1020 = vunpack.c.l.b16 %v409
        %v1021 = vunpack.c.l.b16 %v410
        %v1022 = vunpack.c.l.b16 %v411
        %v1023 = vunpack.c.l.b16 %v412
        %v1024 = vunpack.c.l.b16 %v413
        %v1025 = vunpack.c.l.b16 %v414
        %v1026 = vunpack.c.l.b16 %v415
        %v1027 = vunpack.c.l.b16 %v416
        %v1028 = vunpack.c.l.b16 %v417
        %v1029 = vunpack.c.l.b16 %v418
        %v1030 = vunpack.c.l.b16 %v419
        %v1031 = vunpack.c.l.b16 %v420
        %v1032 = vunpack.c.l.b16 %v421
        %v1033 = vunpack.c.l.b16 %v422
        %v1034 = vunpack.c.l.b16 %v423
        %v1035 = vunpack.c.l.b16 %v424
        %v1036 = vpack.c.b16 %v1009, %v1008
        %v1037 = vpack.c.b16 %v1011, %v1010
        %v1038 = vpack.c.b16 %v1013, %v1012
        %v1039 = vpack.c.b16 %v1015, %v1014
        %v1040 = vpack.c.b16 %v1017, %v1016
        %v1041 = vpack.c.b16 %v1019, %v1018
        %v1042 = vpack.c.b16 %v1021, %v1020
        %v1043 = vpack.c.b16 %v1023, %v1022
        %v1044 = vpack.c.b16 %v1025, %v1024
        %v1045 = vpack.c.b16 %v1027, %v1026
        %v1046 = vpack.c.b16 %v1029, %v1028
        %v1047 = vpack.c.b16 %v1031, %v1030
        %v1048 = vpack.c.b16 %v1033, %v1032
        %v1049 = vpack.c.b16 %v1035, %v1034
        %1050 = vrot.lane.b32.xlu0 %v1036, 36
        %v1051 = vpop.permute.xlu0 %1050
        %1052 = vrot.lane.b32.xlu0 %v1037, 36
        %v1053 = vpop.permute.xlu0 %1052
        %1054 = vrot.lane.b32.xlu0 %v1038, 36
        %v1055 = vpop.permute.xlu0 %1054
        %1056 = vrot.lane.b32.xlu0 %v1039, 36
        %v1057 = vpop.permute.xlu0 %1056
        %1058 = vrot.lane.b32.xlu0 %v1040, 36
        %v1059 = vpop.permute.xlu0 %1058
        %1060 = vrot.lane.b32.xlu0 %v1041, 36
        %v1061 = vpop.permute.xlu0 %1060
        %1062 = vrot.lane.b32.xlu0 %v1042, 36
        %v1063 = vpop.permute.xlu0 %1062
        %1064 = vrot.lane.b32.xlu0 %v1043, 36
        %v1065 = vpop.permute.xlu0 %1064
        %1066 = vrot.lane.b32.xlu0 %v1044, 36
        %v1067 = vpop.permute.xlu0 %1066
        %1068 = vrot.lane.b32.xlu0 %v1045, 36
        %v1069 = vpop.permute.xlu0 %1068
        %1070 = vrot.lane.b32.xlu0 %v1046, 36
        %v1071 = vpop.permute.xlu0 %1070
        %1072 = vrot.lane.b32.xlu0 %v1047, 36
        %v1073 = vpop.permute.xlu0 %1072
        %1074 = vrot.lane.b32.xlu0 %v1048, 36
        %v1075 = vpop.permute.xlu0 %1074
        %1076 = vrot.lane.b32.xlu0 %v1049, 36
        %v1077 = vpop.permute.xlu0 %1076
        %v1079 = vunpack.c.l.b16 %v425
        %v1080 = vpack.c.b16 %v1079, %v1079
        %v1082 = vshrl.u32 %v1036, 16
        %v1084 = vshll.u32 %v1036, 16
        %v1086 = vrot.slane %v1084, 1
        %v1087 = vor.u32 %v1082, %v1086
        %v1089 = vshll.u32 %v1037, 16
        %v1091 = vrot.slane %v1089, 1
        %v1092 = vsel %vm546, %v1087, %v1091
        %v1093 = vshrl.u32 %v1037, 16
        %v1095 = vor.u32 %v1093, %v1091
        %v1097 = vshll.u32 %v1038, 16
        %v1099 = vrot.slane %v1097, 1
        %v1100 = vsel %vm546, %v1095, %v1099
        %v1101 = vshrl.u32 %v1038, 16
        %v1103 = vor.u32 %v1101, %v1099
        %v1105 = vshll.u32 %v1039, 16
        %v1107 = vrot.slane %v1105, 1
        %v1108 = vsel %vm546, %v1103, %v1107
        %v1109 = vshrl.u32 %v1039, 16
        %v1111 = vor.u32 %v1109, %v1107
        %v1113 = vshll.u32 %v1040, 16
        %v1115 = vrot.slane %v1113, 1
        %v1116 = vsel %vm546, %v1111, %v1115
        %v1117 = vshrl.u32 %v1040, 16
        %v1119 = vor.u32 %v1117, %v1115
        %v1121 = vshll.u32 %v1041, 16
        %v1123 = vrot.slane %v1121, 1
        %v1124 = vsel %vm546, %v1119, %v1123
        %v1125 = vshrl.u32 %v1041, 16
        %v1127 = vor.u32 %v1125, %v1123
        %v1129 = vshll.u32 %v1042, 16
        %v1131 = vrot.slane %v1129, 1
        %v1132 = vsel %vm546, %v1127, %v1131
        %v1133 = vshrl.u32 %v1042, 16
        %v1135 = vor.u32 %v1133, %v1131
        %v1137 = vshll.u32 %v1043, 16
        %v1139 = vrot.slane %v1137, 1
        %v1140 = vsel %vm546, %v1135, %v1139
        %v1141 = vshrl.u32 %v1043, 16
        %v1143 = vor.u32 %v1141, %v1139
        %v1145 = vshll.u32 %v1044, 16
        %v1147 = vrot.slane %v1145, 1
        %v1148 = vsel %vm546, %v1143, %v1147
        %v1149 = vshrl.u32 %v1044, 16
        %v1151 = vor.u32 %v1149, %v1147
        %v1153 = vshll.u32 %v1045, 16
        %v1155 = vrot.slane %v1153, 1
        %v1156 = vsel %vm546, %v1151, %v1155
        %v1157 = vshrl.u32 %v1045, 16
        %v1159 = vor.u32 %v1157, %v1155
        %v1161 = vshll.u32 %v1046, 16
        %v1163 = vrot.slane %v1161, 1
        %v1164 = vsel %vm546, %v1159, %v1163
        %v1165 = vshrl.u32 %v1046, 16
        %v1167 = vor.u32 %v1165, %v1163
        %v1169 = vshll.u32 %v1047, 16
        %v1171 = vrot.slane %v1169, 1
        %v1172 = vsel %vm546, %v1167, %v1171
        %v1173 = vshrl.u32 %v1047, 16
        %v1175 = vor.u32 %v1173, %v1171
        %v1177 = vshll.u32 %v1048, 16
        %v1179 = vrot.slane %v1177, 1
        %v1180 = vsel %vm546, %v1175, %v1179
        %v1181 = vshrl.u32 %v1048, 16
        %v1183 = vor.u32 %v1181, %v1179
        %v1185 = vshll.u32 %v1049, 16
        %v1187 = vrot.slane %v1185, 1
        %v1188 = vsel %vm546, %v1183, %v1187
        %v1189 = vshrl.u32 %v1049, 16
        %v1191 = vor.u32 %v1189, %v1187
        %v1193 = vshll.u32 %v1080, 16
        %v1195 = vrot.slane %v1193, 1
        %v1196 = vsel %vm546, %v1191, %v1195
        %1197 = vrot.lane.b32.xlu0 %v1092, 40
        %v1198 = vpop.permute.xlu0 %1197
        %1199 = vrot.lane.b32.xlu0 %v1100, 40
        %v1200 = vpop.permute.xlu0 %1199
        %1201 = vrot.lane.b32.xlu0 %v1108, 40
        %v1202 = vpop.permute.xlu0 %1201
        %1203 = vrot.lane.b32.xlu0 %v1116, 40
        %v1204 = vpop.permute.xlu0 %1203
        %1205 = vrot.lane.b32.xlu0 %v1124, 40
        %v1206 = vpop.permute.xlu0 %1205
        %1207 = vrot.lane.b32.xlu0 %v1132, 40
        %v1208 = vpop.permute.xlu0 %1207
        %1209 = vrot.lane.b32.xlu0 %v1140, 40
        %v1210 = vpop.permute.xlu0 %1209
        %1211 = vrot.lane.b32.xlu0 %v1148, 40
        %v1212 = vpop.permute.xlu0 %1211
        %1213 = vrot.lane.b32.xlu0 %v1156, 40
        %v1214 = vpop.permute.xlu0 %1213
        %1215 = vrot.lane.b32.xlu0 %v1164, 40
        %v1216 = vpop.permute.xlu0 %1215
        %1217 = vrot.lane.b32.xlu0 %v1172, 40
        %v1218 = vpop.permute.xlu0 %1217
        %1219 = vrot.lane.b32.xlu0 %v1180, 40
        %v1220 = vpop.permute.xlu0 %1219
        %1221 = vrot.lane.b32.xlu0 %v1188, 40
        %v1222 = vpop.permute.xlu0 %1221
        %1223 = vrot.lane.b32.xlu0 %v1196, 40
        %v1224 = vpop.permute.xlu0 %1223
        %v1226 = vunpack.c.l.b16 %v426
        %v1227 = vpack.c.b16 %v1009, %v1226
        %v1228 = vrot.slane %v1227, 1
        %v1229 = vrot.slane %v1037, 1
        %v1230 = vsel %vm694, %v1228, %v1229
        %v1231 = vrot.slane %v1038, 1
        %v1232 = vsel %vm694, %v1229, %v1231
        %v1233 = vrot.slane %v1039, 1
        %v1234 = vsel %vm694, %v1231, %v1233
        %v1235 = vrot.slane %v1040, 1
        %v1236 = vsel %vm694, %v1233, %v1235
        %v1237 = vrot.slane %v1041, 1
        %v1238 = vsel %vm694, %v1235, %v1237
        %v1239 = vrot.slane %v1042, 1
        %v1240 = vsel %vm694, %v1237, %v1239
        %v1241 = vrot.slane %v1043, 1
        %v1242 = vsel %vm694, %v1239, %v1241
        %v1243 = vrot.slane %v1044, 1
        %v1244 = vsel %vm694, %v1241, %v1243
        %v1245 = vrot.slane %v1045, 1
        %v1246 = vsel %vm694, %v1243, %v1245
        %v1247 = vrot.slane %v1046, 1
        %v1248 = vsel %vm694, %v1245, %v1247
        %v1249 = vrot.slane %v1047, 1
        %v1250 = vsel %vm694, %v1247, %v1249
        %v1251 = vrot.slane %v1048, 1
        %v1252 = vsel %vm694, %v1249, %v1251
        %v1253 = vrot.slane %v1049, 1
        %v1254 = vsel %vm694, %v1251, %v1253
        %v1255 = vrot.slane %v1080, 1
        %v1256 = vsel %vm694, %v1253, %v1255
        %1257 = vrot.lane.b32.xlu0 %v1230, 44
        %v1258 = vpop.permute.xlu0 %1257
        %1259 = vrot.lane.b32.xlu0 %v1232, 44
        %v1260 = vpop.permute.xlu0 %1259
        %1261 = vrot.lane.b32.xlu0 %v1234, 44
        %v1262 = vpop.permute.xlu0 %1261
        %1263 = vrot.lane.b32.xlu0 %v1236, 44
        %v1264 = vpop.permute.xlu0 %1263
        %1265 = vrot.lane.b32.xlu0 %v1238, 44
        %v1266 = vpop.permute.xlu0 %1265
        %1267 = vrot.lane.b32.xlu0 %v1240, 44
        %v1268 = vpop.permute.xlu0 %1267
        %1269 = vrot.lane.b32.xlu0 %v1242, 44
        %v1270 = vpop.permute.xlu0 %1269
        %1271 = vrot.lane.b32.xlu0 %v1244, 44
        %v1272 = vpop.permute.xlu0 %1271
        %1273 = vrot.lane.b32.xlu0 %v1246, 44
        %v1274 = vpop.permute.xlu0 %1273
        %1275 = vrot.lane.b32.xlu0 %v1248, 44
        %v1276 = vpop.permute.xlu0 %1275
        %1277 = vrot.lane.b32.xlu0 %v1250, 44
        %v1278 = vpop.permute.xlu0 %1277
        %1279 = vrot.lane.b32.xlu0 %v1252, 44
        %v1280 = vpop.permute.xlu0 %1279
        %1281 = vrot.lane.b32.xlu0 %v1254, 44
        %v1282 = vpop.permute.xlu0 %1281
        %1283 = vrot.lane.b32.xlu0 %v1256, 44
        %v1284 = vpop.permute.xlu0 %1283
        %v1287 = vunpack.c.l.b16 %v427
        %v1288 = vunpack.c.l.b16 %v428
        %v1289 = vpack.c.b16 %v1288, %v1287
        %1290 = vrot.lane.b32.xlu0 %v1037, 48
        %v1291 = vpop.permute.xlu0 %1290
        %1292 = vrot.lane.b32.xlu0 %v1038, 48
        %v1293 = vpop.permute.xlu0 %1292
        %1294 = vrot.lane.b32.xlu0 %v1039, 48
        %v1295 = vpop.permute.xlu0 %1294
        %1296 = vrot.lane.b32.xlu0 %v1040, 48
        %v1297 = vpop.permute.xlu0 %1296
        %1298 = vrot.lane.b32.xlu0 %v1041, 48
        %v1299 = vpop.permute.xlu0 %1298
        %1300 = vrot.lane.b32.xlu0 %v1042, 48
        %v1301 = vpop.permute.xlu0 %1300
        %1302 = vrot.lane.b32.xlu0 %v1043, 48
        %v1303 = vpop.permute.xlu0 %1302
        %1304 = vrot.lane.b32.xlu0 %v1044, 48
        %v1305 = vpop.permute.xlu0 %1304
        %1306 = vrot.lane.b32.xlu0 %v1045, 48
        %v1307 = vpop.permute.xlu0 %1306
        %1308 = vrot.lane.b32.xlu0 %v1046, 48
        %v1309 = vpop.permute.xlu0 %1308
        %1310 = vrot.lane.b32.xlu0 %v1047, 48
        %v1311 = vpop.permute.xlu0 %1310
        %1312 = vrot.lane.b32.xlu0 %v1048, 48
        %v1313 = vpop.permute.xlu0 %1312
        %1314 = vrot.lane.b32.xlu0 %v1049, 48
        %v1315 = vpop.permute.xlu0 %1314
        %1316 = vrot.lane.b32.xlu0 %v1289, 48
        %v1317 = vpop.permute.xlu0 %1316
        %v1319 = vunpack.c.l.b16 %v429
        %v1320 = vpack.c.b16 %v1319, %v1319
        %v1322 = vshll.u32 %v1289, 16
        %v1324 = vrot.slane %v1322, 1
        %v1325 = vsel %vm546, %v1191, %v1324
        %v1326 = vshrl.u32 %v1289, 16
        %v1328 = vor.u32 %v1326, %v1324
        %v1330 = vshll.u32 %v1320, 16
        %v1332 = vrot.slane %v1330, 1
        %v1333 = vsel %vm546, %v1328, %v1332
        %1334 = vrot.lane.b32.xlu0 %v1100, 52
        %v1335 = vpop.permute.xlu0 %1334
        %1336 = vrot.lane.b32.xlu0 %v1108, 52
        %v1337 = vpop.permute.xlu0 %1336
        %1338 = vrot.lane.b32.xlu0 %v1116, 52
        %v1339 = vpop.permute.xlu0 %1338
        %1340 = vrot.lane.b32.xlu0 %v1124, 52
        %v1341 = vpop.permute.xlu0 %1340
        %1342 = vrot.lane.b32.xlu0 %v1132, 52
        %v1343 = vpop.permute.xlu0 %1342
        %1344 = vrot.lane.b32.xlu0 %v1140, 52
        %v1345 = vpop.permute.xlu0 %1344
        %1346 = vrot.lane.b32.xlu0 %v1148, 52
        %v1347 = vpop.permute.xlu0 %1346
        %1348 = vrot.lane.b32.xlu0 %v1156, 52
        %v1349 = vpop.permute.xlu0 %1348
        %1350 = vrot.lane.b32.xlu0 %v1164, 52
        %v1351 = vpop.permute.xlu0 %1350
        %1352 = vrot.lane.b32.xlu0 %v1172, 52
        %v1353 = vpop.permute.xlu0 %1352
        %1354 = vrot.lane.b32.xlu0 %v1180, 52
        %v1355 = vpop.permute.xlu0 %1354
        %1356 = vrot.lane.b32.xlu0 %v1188, 52
        %v1357 = vpop.permute.xlu0 %1356
        %1358 = vrot.lane.b32.xlu0 %v1325, 52
        %v1359 = vpop.permute.xlu0 %1358
        %1360 = vrot.lane.b32.xlu0 %v1333, 52
        %v1361 = vpop.permute.xlu0 %1360
        %v1363 = vunpack.c.l.b16 %v430
        %v1364 = vpack.c.b16 %v1011, %v1363
        %v1365 = vrot.slane %v1364, 1
        %v1366 = vsel %vm694, %v1365, %v1231
        %v1367 = vrot.slane %v1289, 1
        %v1368 = vsel %vm694, %v1253, %v1367
        %v1369 = vrot.slane %v1320, 1
        %v1370 = vsel %vm694, %v1367, %v1369
        %1371 = vrot.lane.b32.xlu0 %v1366, 56
        %v1372 = vpop.permute.xlu0 %1371
        %1373 = vrot.lane.b32.xlu0 %v1234, 56
        %v1374 = vpop.permute.xlu0 %1373
        %1375 = vrot.lane.b32.xlu0 %v1236, 56
        %v1376 = vpop.permute.xlu0 %1375
        %1377 = vrot.lane.b32.xlu0 %v1238, 56
        %v1378 = vpop.permute.xlu0 %1377
        %1379 = vrot.lane.b32.xlu0 %v1240, 56
        %v1380 = vpop.permute.xlu0 %1379
        %1381 = vrot.lane.b32.xlu0 %v1242, 56
        %v1382 = vpop.permute.xlu0 %1381
        %1383 = vrot.lane.b32.xlu0 %v1244, 56
        %v1384 = vpop.permute.xlu0 %1383
        %1385 = vrot.lane.b32.xlu0 %v1246, 56
        %v1386 = vpop.permute.xlu0 %1385
        %1387 = vrot.lane.b32.xlu0 %v1248, 56
        %v1388 = vpop.permute.xlu0 %1387
        %1389 = vrot.lane.b32.xlu0 %v1250, 56
        %v1390 = vpop.permute.xlu0 %1389
        %1391 = vrot.lane.b32.xlu0 %v1252, 56
        %v1392 = vpop.permute.xlu0 %1391
        %1393 = vrot.lane.b32.xlu0 %v1254, 56
        %v1394 = vpop.permute.xlu0 %1393
        %1395 = vrot.lane.b32.xlu0 %v1368, 56
        %v1396 = vpop.permute.xlu0 %1395
        %1397 = vrot.lane.b32.xlu0 %v1370, 56
        %v1398 = vpop.permute.xlu0 %1397
        %v1401 = vunpack.c.l.b16 %v431
        %v1402 = vunpack.c.l.b16 %v432
        %v1403 = vpack.c.b16 %v1402, %v1401
        %1404 = vrot.lane.b32.xlu0 %v1038, 60
        %v1405 = vpop.permute.xlu0 %1404
        %1406 = vrot.lane.b32.xlu0 %v1039, 60
        %v1407 = vpop.permute.xlu0 %1406
        %1408 = vrot.lane.b32.xlu0 %v1040, 60
        %v1409 = vpop.permute.xlu0 %1408
        %1410 = vrot.lane.b32.xlu0 %v1041, 60
        %v1411 = vpop.permute.xlu0 %1410
        %1412 = vrot.lane.b32.xlu0 %v1042, 60
        %v1413 = vpop.permute.xlu0 %1412
        %1414 = vrot.lane.b32.xlu0 %v1043, 60
        %v1415 = vpop.permute.xlu0 %1414
        %1416 = vrot.lane.b32.xlu0 %v1044, 60
        %v1417 = vpop.permute.xlu0 %1416
        %1418 = vrot.lane.b32.xlu0 %v1045, 60
        %v1419 = vpop.permute.xlu0 %1418
        %1420 = vrot.lane.b32.xlu0 %v1046, 60
        %v1421 = vpop.permute.xlu0 %1420
        %1422 = vrot.lane.b32.xlu0 %v1047, 60
        %v1423 = vpop.permute.xlu0 %1422
        %1424 = vrot.lane.b32.xlu0 %v1048, 60
        %v1425 = vpop.permute.xlu0 %1424
        %1426 = vrot.lane.b32.xlu0 %v1049, 60
        %v1427 = vpop.permute.xlu0 %1426
        %1428 = vrot.lane.b32.xlu0 %v1289, 60
        %v1429 = vpop.permute.xlu0 %1428
        %1430 = vrot.lane.b32.xlu0 %v1403, 60
        %v1431 = vpop.permute.xlu0 %1430
        %vm1432 = vcmask 31744
        %v1434 = vsel %vm1432, %v529, %v664
        %v1436 = vsel %vm1432, %v530, %v666
        %v1438 = vsel %vm1432, %v531, %v668
        %v1440 = vsel %vm1432, %v532, %v670
        %v1442 = vsel %vm1432, %v533, %v672
        %v1444 = vsel %vm1432, %v534, %v674
        %v1446 = vsel %vm1432, %v535, %v676
        %v1448 = vsel %vm1432, %v536, %v678
        %v1450 = vsel %vm1432, %v537, %v680
        %v1452 = vsel %vm1432, %v538, %v682
        %v1454 = vsel %vm1432, %v539, %v684
        %v1456 = vsel %vm1432, %v540, %v686
        %v1458 = vsel %vm1432, %v541, %v688
        %v1460 = vsel %vm1432, %v542, %v690
        %vm1461 = vcmask 64512
        %v1463 = vsel %vm1461, %v1434, %v725
        %v1465 = vsel %vm1461, %v1436, %v727
        %v1467 = vsel %vm1461, %v1438, %v729
        %v1469 = vsel %vm1461, %v1440, %v731
        %v1471 = vsel %vm1461, %v1442, %v733
        %v1473 = vsel %vm1461, %v1444, %v735
        %v1475 = vsel %vm1461, %v1446, %v737
        %v1477 = vsel %vm1461, %v1448, %v739
        %v1479 = vsel %vm1461, %v1450, %v741
        %v1481 = vsel %vm1461, %v1452, %v743
        %v1483 = vsel %vm1461, %v1454, %v745
        %v1485 = vsel %vm1461, %v1456, %v747
        %v1487 = vsel %vm1461, %v1458, %v749
        %v1489 = vsel %vm1461, %v1460, %v751
        %vm1490 = vcmask 97280
        %v1492 = vsel %vm1490, %v1463, %v758
        %v1494 = vsel %vm1490, %v1465, %v760
        %v1496 = vsel %vm1490, %v1467, %v762
        %v1498 = vsel %vm1490, %v1469, %v764
        %v1500 = vsel %vm1490, %v1471, %v766
        %v1502 = vsel %vm1490, %v1473, %v768
        %v1504 = vsel %vm1490, %v1475, %v770
        %v1506 = vsel %vm1490, %v1477, %v772
        %v1508 = vsel %vm1490, %v1479, %v774
        %v1510 = vsel %vm1490, %v1481, %v776
        %v1512 = vsel %vm1490, %v1483, %v778
        %v1514 = vsel %vm1490, %v1485, %v780
        %v1516 = vsel %vm1490, %v1487, %v782
        %v1518 = vsel %vm1490, %v1489, %v784
        %vm1519 = vcmask 130048
        %v1521 = vsel %vm1519, %v1492, %v802
        %v1523 = vsel %vm1519, %v1494, %v804
        %v1525 = vsel %vm1519, %v1496, %v806
        %v1527 = vsel %vm1519, %v1498, %v808
        %v1529 = vsel %vm1519, %v1500, %v810
        %v1531 = vsel %vm1519, %v1502, %v812
        %v1533 = vsel %vm1519, %v1504, %v814
        %v1535 = vsel %vm1519, %v1506, %v816
        %v1537 = vsel %vm1519, %v1508, %v818
        %v1539 = vsel %vm1519, %v1510, %v820
        %v1541 = vsel %vm1519, %v1512, %v822
        %v1543 = vsel %vm1519, %v1514, %v824
        %v1545 = vsel %vm1519, %v1516, %v826
        %v1547 = vsel %vm1519, %v1518, %v828
        %vm1548 = vcmask 162816
        %v1550 = vsel %vm1548, %v1521, %v839
        %v1552 = vsel %vm1548, %v1523, %v841
        %v1554 = vsel %vm1548, %v1525, %v843
        %v1556 = vsel %vm1548, %v1527, %v845
        %v1558 = vsel %vm1548, %v1529, %v847
        %v1560 = vsel %vm1548, %v1531, %v849
        %v1562 = vsel %vm1548, %v1533, %v851
        %v1564 = vsel %vm1548, %v1535, %v853
        %v1566 = vsel %vm1548, %v1537, %v855
        %v1568 = vsel %vm1548, %v1539, %v857
        %v1570 = vsel %vm1548, %v1541, %v859
        %v1572 = vsel %vm1548, %v1543, %v861
        %v1574 = vsel %vm1548, %v1545, %v863
        %v1576 = vsel %vm1548, %v1547, %v865
        %vm1577 = vcmask 195584
        %v1579 = vsel %vm1577, %v1550, %v872
        %v1581 = vsel %vm1577, %v1552, %v874
        %v1583 = vsel %vm1577, %v1554, %v876
        %v1585 = vsel %vm1577, %v1556, %v878
        %v1587 = vsel %vm1577, %v1558, %v880
        %v1589 = vsel %vm1577, %v1560, %v882
        %v1591 = vsel %vm1577, %v1562, %v884
        %v1593 = vsel %vm1577, %v1564, %v886
        %v1595 = vsel %vm1577, %v1566, %v888
        %v1597 = vsel %vm1577, %v1568, %v890
        %v1599 = vsel %vm1577, %v1570, %v892
        %v1601 = vsel %vm1577, %v1572, %v894
        %v1603 = vsel %vm1577, %v1574, %v896
        %v1605 = vsel %vm1577, %v1576, %v898
        %vm1606 = vcmask 228352
        %v1608 = vsel %vm1606, %v1579, %v916
        %v1610 = vsel %vm1606, %v1581, %v918
        %v1612 = vsel %vm1606, %v1583, %v920
        %v1614 = vsel %vm1606, %v1585, %v922
        %v1616 = vsel %vm1606, %v1587, %v924
        %v1618 = vsel %vm1606, %v1589, %v926
        %v1620 = vsel %vm1606, %v1591, %v928
        %v1622 = vsel %vm1606, %v1593, %v930
        %v1624 = vsel %vm1606, %v1595, %v932
        %v1626 = vsel %vm1606, %v1597, %v934
        %v1628 = vsel %vm1606, %v1599, %v936
        %v1630 = vsel %vm1606, %v1601, %v938
        %v1632 = vsel %vm1606, %v1603, %v940
        %v1634 = vsel %vm1606, %v1605, %v942
        %vm1635 = vcmask 261120
        %v1637 = vsel %vm1635, %v1608, %v953
        %v1639 = vsel %vm1635, %v1610, %v955
        %v1641 = vsel %vm1635, %v1612, %v957
        %v1643 = vsel %vm1635, %v1614, %v959
        %v1645 = vsel %vm1635, %v1616, %v961
        %v1647 = vsel %vm1635, %v1618, %v963
        %v1649 = vsel %vm1635, %v1620, %v965
        %v1651 = vsel %vm1635, %v1622, %v967
        %v1653 = vsel %vm1635, %v1624, %v969
        %v1655 = vsel %vm1635, %v1626, %v971
        %v1657 = vsel %vm1635, %v1628, %v973
        %v1659 = vsel %vm1635, %v1630, %v975
        %v1661 = vsel %vm1635, %v1632, %v977
        %v1663 = vsel %vm1635, %v1634, %v979
        %vm1664 = vcmask 293888
        %v1666 = vsel %vm1664, %v1637, %v1051
        %v1668 = vsel %vm1664, %v1639, %v1053
        %v1670 = vsel %vm1664, %v1641, %v1055
        %v1672 = vsel %vm1664, %v1643, %v1057
        %v1674 = vsel %vm1664, %v1645, %v1059
        %v1676 = vsel %vm1664, %v1647, %v1061
        %v1678 = vsel %vm1664, %v1649, %v1063
        %v1680 = vsel %vm1664, %v1651, %v1065
        %v1682 = vsel %vm1664, %v1653, %v1067
        %v1684 = vsel %vm1664, %v1655, %v1069
        %v1686 = vsel %vm1664, %v1657, %v1071
        %v1688 = vsel %vm1664, %v1659, %v1073
        %v1690 = vsel %vm1664, %v1661, %v1075
        %v1692 = vsel %vm1664, %v1663, %v1077
        %vm1693 = vcmask 326656
        %v1695 = vsel %vm1693, %v1666, %v1198
        %v1697 = vsel %vm1693, %v1668, %v1200
        %v1699 = vsel %vm1693, %v1670, %v1202
        %v1701 = vsel %vm1693, %v1672, %v1204
        %v1703 = vsel %vm1693, %v1674, %v1206
        %v1705 = vsel %vm1693, %v1676, %v1208
        %v1707 = vsel %vm1693, %v1678, %v1210
        %v1709 = vsel %vm1693, %v1680, %v1212
        %v1711 = vsel %vm1693, %v1682, %v1214
        %v1713 = vsel %vm1693, %v1684, %v1216
        %v1715 = vsel %vm1693, %v1686, %v1218
        %v1717 = vsel %vm1693, %v1688, %v1220
        %v1719 = vsel %vm1693, %v1690, %v1222
        %v1721 = vsel %vm1693, %v1692, %v1224
        %vm1722 = vcmask 359424
        %v1724 = vsel %vm1722, %v1695, %v1258
        %v1726 = vsel %vm1722, %v1697, %v1260
        %v1728 = vsel %vm1722, %v1699, %v1262
        %v1730 = vsel %vm1722, %v1701, %v1264
        %v1732 = vsel %vm1722, %v1703, %v1266
        %v1734 = vsel %vm1722, %v1705, %v1268
        %v1736 = vsel %vm1722, %v1707, %v1270
        %v1738 = vsel %vm1722, %v1709, %v1272
        %v1740 = vsel %vm1722, %v1711, %v1274
        %v1742 = vsel %vm1722, %v1713, %v1276
        %v1744 = vsel %vm1722, %v1715, %v1278
        %v1746 = vsel %vm1722, %v1717, %v1280
        %v1748 = vsel %vm1722, %v1719, %v1282
        %v1750 = vsel %vm1722, %v1721, %v1284
        %vm1751 = vcmask 392192
        %v1753 = vsel %vm1751, %v1724, %v1291
        %v1755 = vsel %vm1751, %v1726, %v1293
        %v1757 = vsel %vm1751, %v1728, %v1295
        %v1759 = vsel %vm1751, %v1730, %v1297
        %v1761 = vsel %vm1751, %v1732, %v1299
        %v1763 = vsel %vm1751, %v1734, %v1301
        %v1765 = vsel %vm1751, %v1736, %v1303
        %v1767 = vsel %vm1751, %v1738, %v1305
        %v1769 = vsel %vm1751, %v1740, %v1307
        %v1771 = vsel %vm1751, %v1742, %v1309
        %v1773 = vsel %vm1751, %v1744, %v1311
        %v1775 = vsel %vm1751, %v1746, %v1313
        %v1777 = vsel %vm1751, %v1748, %v1315
        %v1779 = vsel %vm1751, %v1750, %v1317
        %vm1780 = vcmask 424960
        %v1782 = vsel %vm1780, %v1753, %v1335
        %v1784 = vsel %vm1780, %v1755, %v1337
        %v1786 = vsel %vm1780, %v1757, %v1339
        %v1788 = vsel %vm1780, %v1759, %v1341
        %v1790 = vsel %vm1780, %v1761, %v1343
        %v1792 = vsel %vm1780, %v1763, %v1345
        %v1794 = vsel %vm1780, %v1765, %v1347
        %v1796 = vsel %vm1780, %v1767, %v1349
        %v1798 = vsel %vm1780, %v1769, %v1351
        %v1800 = vsel %vm1780, %v1771, %v1353
        %v1802 = vsel %vm1780, %v1773, %v1355
        %v1804 = vsel %vm1780, %v1775, %v1357
        %v1806 = vsel %vm1780, %v1777, %v1359
        %v1808 = vsel %vm1780, %v1779, %v1361
        %vm1809 = vcmask 457728
        %v1811 = vsel %vm1809, %v1782, %v1372
        %v1813 = vsel %vm1809, %v1784, %v1374
        %v1815 = vsel %vm1809, %v1786, %v1376
        %v1817 = vsel %vm1809, %v1788, %v1378
        %v1819 = vsel %vm1809, %v1790, %v1380
        %v1821 = vsel %vm1809, %v1792, %v1382
        %v1823 = vsel %vm1809, %v1794, %v1384
        %v1825 = vsel %vm1809, %v1796, %v1386
        %v1827 = vsel %vm1809, %v1798, %v1388
        %v1829 = vsel %vm1809, %v1800, %v1390
        %v1831 = vsel %vm1809, %v1802, %v1392
        %v1833 = vsel %vm1809, %v1804, %v1394
        %v1835 = vsel %vm1809, %v1806, %v1396
        %v1837 = vsel %vm1809, %v1808, %v1398
        %vm1838 = vcmask 490496
        %v1840 = vsel %vm1838, %v1811, %v1405
        %v1842 = vsel %vm1838, %v1813, %v1407
        %v1844 = vsel %vm1838, %v1815, %v1409
        %v1846 = vsel %vm1838, %v1817, %v1411
        %v1848 = vsel %vm1838, %v1819, %v1413
        %v1850 = vsel %vm1838, %v1821, %v1415
        %v1852 = vsel %vm1838, %v1823, %v1417
        %v1854 = vsel %vm1838, %v1825, %v1419
        %v1856 = vsel %vm1838, %v1827, %v1421
        %v1858 = vsel %vm1838, %v1829, %v1423
        %v1860 = vsel %vm1838, %v1831, %v1425
        %v1862 = vsel %vm1838, %v1833, %v1427
        %v1864 = vsel %vm1838, %v1835, %v1429
        %v1866 = vsel %vm1838, %v1837, %v1431
        %v1868 = vunpack.c.l.b16 %v433
        %v1869 = vpack.c.b16 %v1868, %v1868
        %v1871 = vunpack.c.l.b16 %v434
        %v1872 = vpack.c.b16 %v1013, %v1871
        %v1874 = vshrl.u32 %v1872, 16
        %v1876 = vshll.u32 %v1872, 16
        %v1878 = vrot.slane %v1876, 1
        %v1879 = vor.u32 %v1874, %v1878
        %v1880 = vsel %vm546, %v1879, %v1107
        %v1882 = vshll.u32 %v1403, 16
        %v1884 = vrot.slane %v1882, 1
        %v1885 = vsel %vm546, %v1328, %v1884
        %v1886 = vshrl.u32 %v1403, 16
        %v1888 = vor.u32 %v1886, %v1884
        %v1890 = vshll.u32 %v1869, 16
        %v1892 = vrot.slane %v1890, 1
        %v1893 = vsel %vm546, %v1888, %v1892
        %v1894 = vshrl.u32 %v1869, 16
        %1896 = vrot.lane.b32.xlu0 %v1880, 4
        %v1897 = vpop.permute.xlu0 %1896
        %1898 = vrot.lane.b32.xlu0 %v1116, 4
        %v1899 = vpop.permute.xlu0 %1898
        %1900 = vrot.lane.b32.xlu0 %v1124, 4
        %v1901 = vpop.permute.xlu0 %1900
        %1902 = vrot.lane.b32.xlu0 %v1132, 4
        %v1903 = vpop.permute.xlu0 %1902
        %1904 = vrot.lane.b32.xlu0 %v1140, 4
        %v1905 = vpop.permute.xlu0 %1904
        %1906 = vrot.lane.b32.xlu0 %v1148, 4
        %v1907 = vpop.permute.xlu0 %1906
        %1908 = vrot.lane.b32.xlu0 %v1156, 4
        %v1909 = vpop.permute.xlu0 %1908
        %1910 = vrot.lane.b32.xlu0 %v1164, 4
        %v1911 = vpop.permute.xlu0 %1910
        %1912 = vrot.lane.b32.xlu0 %v1172, 4
        %v1913 = vpop.permute.xlu0 %1912
        %1914 = vrot.lane.b32.xlu0 %v1180, 4
        %v1915 = vpop.permute.xlu0 %1914
        %1916 = vrot.lane.b32.xlu0 %v1188, 4
        %v1917 = vpop.permute.xlu0 %1916
        %1918 = vrot.lane.b32.xlu0 %v1325, 4
        %v1919 = vpop.permute.xlu0 %1918
        %1920 = vrot.lane.b32.xlu0 %v1885, 4
        %v1921 = vpop.permute.xlu0 %1920
        %1922 = vrot.lane.b32.xlu0 %v1893, 4
        %v1923 = vpop.permute.xlu0 %1922
        %1924 = vrot.lane.b32.xlu0 %v1894, 4
        %v1925 = vpop.permute.xlu0 %1924
        %v1954 = vunpack.c.l.b16 %v435
        %v1955 = vunpack.c.l.b16 %v436
        %v1956 = vunpack.c.l.b16 %v437
        %v1957 = vunpack.c.l.b16 %v438
        %v1958 = vunpack.c.l.b16 %v439
        %v1959 = vunpack.c.l.b16 %v440
        %v1960 = vunpack.c.l.b16 %v441
        %v1961 = vunpack.c.l.b16 %v442
        %v1962 = vunpack.c.l.b16 %v443
        %v1963 = vunpack.c.l.b16 %v444
        %v1964 = vunpack.c.l.b16 %v445
        %v1965 = vunpack.c.l.b16 %v446
        %v1966 = vunpack.c.l.b16 %v447
        %v1967 = vunpack.c.l.b16 %v448
        %v1968 = vunpack.c.l.b16 %v449
        %v1969 = vunpack.c.l.b16 %v450
        %v1970 = vunpack.c.l.b16 %v451
        %v1971 = vunpack.c.l.b16 %v452
        %v1972 = vunpack.c.l.b16 %v453
        %v1973 = vunpack.c.l.b16 %v454
        %v1974 = vunpack.c.l.b16 %v455
        %v1975 = vunpack.c.l.b16 %v456
        %v1976 = vunpack.c.l.b16 %v457
        %v1977 = vunpack.c.l.b16 %v458
        %v1978 = vunpack.c.l.b16 %v459
        %v1979 = vunpack.c.l.b16 %v460
        %v1980 = vunpack.c.l.b16 %v461
        %v1981 = vunpack.c.l.b16 %v462
        %v1982 = vpack.c.b16 %v1955, %v1954
        %v1983 = vpack.c.b16 %v1957, %v1956
        %v1984 = vpack.c.b16 %v1959, %v1958
        %v1985 = vpack.c.b16 %v1961, %v1960
        %v1986 = vpack.c.b16 %v1963, %v1962
        %v1987 = vpack.c.b16 %v1965, %v1964
        %v1988 = vpack.c.b16 %v1967, %v1966
        %v1989 = vpack.c.b16 %v1969, %v1968
        %v1990 = vpack.c.b16 %v1971, %v1970
        %v1991 = vpack.c.b16 %v1973, %v1972
        %v1992 = vpack.c.b16 %v1975, %v1974
        %v1993 = vpack.c.b16 %v1977, %v1976
        %v1994 = vpack.c.b16 %v1979, %v1978
        %v1995 = vpack.c.b16 %v1981, %v1980
        %vm1996 = vsmask.f32 256
        %v1998 = vshrl.u32 %v1982, 16
        %v2000 = vrot.slane %v1998, 7
        %v2001 = vshll.u32 %v1982, 16
        %v2003 = vor.u32 %v2000, %v2001
        %v2005 = vshrl.u32 %v1983, 16
        %v2007 = vrot.slane %v2005, 7
        %v2008 = vshll.u32 %v1983, 16
        %v2010 = vor.u32 %v2007, %v2008
        %v2011 = vsel %vm1996, %v2000, %v2010
        %v2013 = vshrl.u32 %v1984, 16
        %v2015 = vrot.slane %v2013, 7
        %v2016 = vshll.u32 %v1984, 16
        %v2018 = vor.u32 %v2015, %v2016
        %v2019 = vsel %vm1996, %v2007, %v2018
        %v2021 = vshrl.u32 %v1985, 16
        %v2023 = vrot.slane %v2021, 7
        %v2024 = vshll.u32 %v1985, 16
        %v2026 = vor.u32 %v2023, %v2024
        %v2027 = vsel %vm1996, %v2015, %v2026
        %v2029 = vshrl.u32 %v1986, 16
        %v2031 = vrot.slane %v2029, 7
        %v2032 = vshll.u32 %v1986, 16
        %v2034 = vor.u32 %v2031, %v2032
        %v2035 = vsel %vm1996, %v2023, %v2034
        %v2037 = vshrl.u32 %v1987, 16
        %v2039 = vrot.slane %v2037, 7
        %v2040 = vshll.u32 %v1987, 16
        %v2042 = vor.u32 %v2039, %v2040
        %v2043 = vsel %vm1996, %v2031, %v2042
        %v2045 = vshrl.u32 %v1988, 16
        %v2047 = vrot.slane %v2045, 7
        %v2048 = vshll.u32 %v1988, 16
        %v2050 = vor.u32 %v2047, %v2048
        %v2051 = vsel %vm1996, %v2039, %v2050
        %v2053 = vshrl.u32 %v1989, 16
        %v2055 = vrot.slane %v2053, 7
        %v2056 = vshll.u32 %v1989, 16
        %v2058 = vor.u32 %v2055, %v2056
        %v2059 = vsel %vm1996, %v2047, %v2058
        %v2061 = vshrl.u32 %v1990, 16
        %v2063 = vrot.slane %v2061, 7
        %v2064 = vshll.u32 %v1990, 16
        %v2066 = vor.u32 %v2063, %v2064
        %v2067 = vsel %vm1996, %v2055, %v2066
        %v2069 = vshrl.u32 %v1991, 16
        %v2071 = vrot.slane %v2069, 7
        %v2072 = vshll.u32 %v1991, 16
        %v2074 = vor.u32 %v2071, %v2072
        %v2075 = vsel %vm1996, %v2063, %v2074
        %v2077 = vshrl.u32 %v1992, 16
        %v2079 = vrot.slane %v2077, 7
        %v2080 = vshll.u32 %v1992, 16
        %v2082 = vor.u32 %v2079, %v2080
        %v2083 = vsel %vm1996, %v2071, %v2082
        %v2085 = vshrl.u32 %v1993, 16
        %v2087 = vrot.slane %v2085, 7
        %v2088 = vshll.u32 %v1993, 16
        %v2090 = vor.u32 %v2087, %v2088
        %v2091 = vsel %vm1996, %v2079, %v2090
        %v2093 = vshrl.u32 %v1994, 16
        %v2095 = vrot.slane %v2093, 7
        %v2096 = vshll.u32 %v1994, 16
        %v2098 = vor.u32 %v2095, %v2096
        %v2099 = vsel %vm1996, %v2087, %v2098
        %v2101 = vshrl.u32 %v1995, 16
        %v2103 = vrot.slane %v2101, 7
        %v2104 = vshll.u32 %v1995, 16
        %v2106 = vor.u32 %v2103, %v2104
        %v2107 = vsel %vm1996, %v2095, %v2106
        %2108 = vrot.lane.b32.xlu0 %v2003, 8
        %v2109 = vpop.permute.xlu0 %2108
        %2110 = vrot.lane.b32.xlu0 %v2011, 8
        %v2111 = vpop.permute.xlu0 %2110
        %2112 = vrot.lane.b32.xlu0 %v2019, 8
        %v2113 = vpop.permute.xlu0 %2112
        %2114 = vrot.lane.b32.xlu0 %v2027, 8
        %v2115 = vpop.permute.xlu0 %2114
        %2116 = vrot.lane.b32.xlu0 %v2035, 8
        %v2117 = vpop.permute.xlu0 %2116
        %2118 = vrot.lane.b32.xlu0 %v2043, 8
        %v2119 = vpop.permute.xlu0 %2118
        %2120 = vrot.lane.b32.xlu0 %v2051, 8
        %v2121 = vpop.permute.xlu0 %2120
        %2122 = vrot.lane.b32.xlu0 %v2059, 8
        %v2123 = vpop.permute.xlu0 %2122
        %2124 = vrot.lane.b32.xlu0 %v2067, 8
        %v2125 = vpop.permute.xlu0 %2124
        %2126 = vrot.lane.b32.xlu0 %v2075, 8
        %v2127 = vpop.permute.xlu0 %2126
        %2128 = vrot.lane.b32.xlu0 %v2083, 8
        %v2129 = vpop.permute.xlu0 %2128
        %2130 = vrot.lane.b32.xlu0 %v2091, 8
        %v2131 = vpop.permute.xlu0 %2130
        %2132 = vrot.lane.b32.xlu0 %v2099, 8
        %v2133 = vpop.permute.xlu0 %2132
        %2134 = vrot.lane.b32.xlu0 %v2107, 8
        %v2135 = vpop.permute.xlu0 %2134
        %2136 = vrot.lane.b32.xlu0 %v2103, 8
        %v2137 = vpop.permute.xlu0 %2136
        %v2139 = vunpack.c.l.b16 %v463
        %v2140 = vpack.c.b16 %v2139, %v2139
        %2141 = vrot.lane.b32.xlu0 %v1982, 12
        %v2142 = vpop.permute.xlu0 %2141
        %2143 = vrot.lane.b32.xlu0 %v1983, 12
        %v2144 = vpop.permute.xlu0 %2143
        %2145 = vrot.lane.b32.xlu0 %v1984, 12
        %v2146 = vpop.permute.xlu0 %2145
        %2147 = vrot.lane.b32.xlu0 %v1985, 12
        %v2148 = vpop.permute.xlu0 %2147
        %2149 = vrot.lane.b32.xlu0 %v1986, 12
        %v2150 = vpop.permute.xlu0 %2149
        %2151 = vrot.lane.b32.xlu0 %v1987, 12
        %v2152 = vpop.permute.xlu0 %2151
        %2153 = vrot.lane.b32.xlu0 %v1988, 12
        %v2154 = vpop.permute.xlu0 %2153
        %2155 = vrot.lane.b32.xlu0 %v1989, 12
        %v2156 = vpop.permute.xlu0 %2155
        %2157 = vrot.lane.b32.xlu0 %v1990, 12
        %v2158 = vpop.permute.xlu0 %2157
        %2159 = vrot.lane.b32.xlu0 %v1991, 12
        %v2160 = vpop.permute.xlu0 %2159
        %2161 = vrot.lane.b32.xlu0 %v1992, 12
        %v2162 = vpop.permute.xlu0 %2161
        %2163 = vrot.lane.b32.xlu0 %v1993, 12
        %v2164 = vpop.permute.xlu0 %2163
        %2165 = vrot.lane.b32.xlu0 %v1994, 12
        %v2166 = vpop.permute.xlu0 %2165
        %2167 = vrot.lane.b32.xlu0 %v1995, 12
        %v2168 = vpop.permute.xlu0 %2167
        %2169 = vrot.lane.b32.xlu0 %v2140, 12
        %v2170 = vpop.permute.xlu0 %2169
        %v2172 = vunpack.c.l.b16 %v464
        %v2173 = vpack.c.b16 %v1955, %v2172
        %v2175 = vshrl.u32 %v2173, 16
        %v2177 = vshll.u32 %v2173, 16
        %v2179 = vrot.slane %v2177, 1
        %v2180 = vor.u32 %v2175, %v2179
        %v2181 = vrot.slane %v2008, 1
        %v2182 = vsel %vm546, %v2180, %v2181
        %v2183 = vor.u32 %v2005, %v2181
        %v2184 = vrot.slane %v2016, 1
        %v2185 = vsel %vm546, %v2183, %v2184
        %v2186 = vor.u32 %v2013, %v2184
        %v2187 = vrot.slane %v2024, 1
        %v2188 = vsel %vm546, %v2186, %v2187
        %v2189 = vor.u32 %v2021, %v2187
        %v2190 = vrot.slane %v2032, 1
        %v2191 = vsel %vm546, %v2189, %v2190
        %v2192 = vor.u32 %v2029, %v2190
        %v2193 = vrot.slane %v2040, 1
        %v2194 = vsel %vm546, %v2192, %v2193
        %v2195 = vor.u32 %v2037, %v2193
        %v2196 = vrot.slane %v2048, 1
        %v2197 = vsel %vm546, %v2195, %v2196
        %v2198 = vor.u32 %v2045, %v2196
        %v2199 = vrot.slane %v2056, 1
        %v2200 = vsel %vm546, %v2198, %v2199
        %v2201 = vor.u32 %v2053, %v2199
        %v2202 = vrot.slane %v2064, 1
        %v2203 = vsel %vm546, %v2201, %v2202
        %v2204 = vor.u32 %v2061, %v2202
        %v2205 = vrot.slane %v2072, 1
        %v2206 = vsel %vm546, %v2204, %v2205
        %v2207 = vor.u32 %v2069, %v2205
        %v2208 = vrot.slane %v2080, 1
        %v2209 = vsel %vm546, %v2207, %v2208
        %v2210 = vor.u32 %v2077, %v2208
        %v2211 = vrot.slane %v2088, 1
        %v2212 = vsel %vm546, %v2210, %v2211
        %v2213 = vor.u32 %v2085, %v2211
        %v2214 = vrot.slane %v2096, 1
        %v2215 = vsel %vm546, %v2213, %v2214
        %v2216 = vor.u32 %v2093, %v2214
        %v2217 = vrot.slane %v2104, 1
        %v2218 = vsel %vm546, %v2216, %v2217
        %v2219 = vor.u32 %v2101, %v2217
        %v2221 = vshll.u32 %v2140, 16
        %v2223 = vrot.slane %v2221, 1
        %v2224 = vsel %vm546, %v2219, %v2223
        %v2225 = vshrl.u32 %v2140, 16
        %2227 = vrot.lane.b32.xlu0 %v2182, 16
        %v2228 = vpop.permute.xlu0 %2227
        %2229 = vrot.lane.b32.xlu0 %v2185, 16
        %v2230 = vpop.permute.xlu0 %2229
        %2231 = vrot.lane.b32.xlu0 %v2188, 16
        %v2232 = vpop.permute.xlu0 %2231
        %2233 = vrot.lane.b32.xlu0 %v2191, 16
        %v2234 = vpop.permute.xlu0 %2233
        %2235 = vrot.lane.b32.xlu0 %v2194, 16
        %v2236 = vpop.permute.xlu0 %2235
        %2237 = vrot.lane.b32.xlu0 %v2197, 16
        %v2238 = vpop.permute.xlu0 %2237
        %2239 = vrot.lane.b32.xlu0 %v2200, 16
        %v2240 = vpop.permute.xlu0 %2239
        %2241 = vrot.lane.b32.xlu0 %v2203, 16
        %v2242 = vpop.permute.xlu0 %2241
        %2243 = vrot.lane.b32.xlu0 %v2206, 16
        %v2244 = vpop.permute.xlu0 %2243
        %2245 = vrot.lane.b32.xlu0 %v2209, 16
        %v2246 = vpop.permute.xlu0 %2245
        %2247 = vrot.lane.b32.xlu0 %v2212, 16
        %v2248 = vpop.permute.xlu0 %2247
        %2249 = vrot.lane.b32.xlu0 %v2215, 16
        %v2250 = vpop.permute.xlu0 %2249
        %2251 = vrot.lane.b32.xlu0 %v2218, 16
        %v2252 = vpop.permute.xlu0 %2251
        %2253 = vrot.lane.b32.xlu0 %v2224, 16
        %v2254 = vpop.permute.xlu0 %2253
        %2255 = vrot.lane.b32.xlu0 %v2225, 16
        %v2256 = vpop.permute.xlu0 %2255
        %v2259 = vunpack.c.l.b16 %v465
        %v2260 = vunpack.c.l.b16 %v466
        %v2261 = vpack.c.b16 %v2260, %v2259
        %v2263 = vshrl.u32 %v2261, 16
        %v2265 = vrot.slane %v2263, 7
        %v2266 = vshll.u32 %v2261, 16
        %v2268 = vor.u32 %v2265, %v2266
        %v2269 = vsel %vm1996, %v2103, %v2268
        %2270 = vrot.lane.b32.xlu0 %v2010, 20
        %v2271 = vpop.permute.xlu0 %2270
        %2272 = vrot.lane.b32.xlu0 %v2019, 20
        %v2273 = vpop.permute.xlu0 %2272
        %2274 = vrot.lane.b32.xlu0 %v2027, 20
        %v2275 = vpop.permute.xlu0 %2274
        %2276 = vrot.lane.b32.xlu0 %v2035, 20
        %v2277 = vpop.permute.xlu0 %2276
        %2278 = vrot.lane.b32.xlu0 %v2043, 20
        %v2279 = vpop.permute.xlu0 %2278
        %2280 = vrot.lane.b32.xlu0 %v2051, 20
        %v2281 = vpop.permute.xlu0 %2280
        %2282 = vrot.lane.b32.xlu0 %v2059, 20
        %v2283 = vpop.permute.xlu0 %2282
        %2284 = vrot.lane.b32.xlu0 %v2067, 20
        %v2285 = vpop.permute.xlu0 %2284
        %2286 = vrot.lane.b32.xlu0 %v2075, 20
        %v2287 = vpop.permute.xlu0 %2286
        %2288 = vrot.lane.b32.xlu0 %v2083, 20
        %v2289 = vpop.permute.xlu0 %2288
        %2290 = vrot.lane.b32.xlu0 %v2091, 20
        %v2291 = vpop.permute.xlu0 %2290
        %2292 = vrot.lane.b32.xlu0 %v2099, 20
        %v2293 = vpop.permute.xlu0 %2292
        %2294 = vrot.lane.b32.xlu0 %v2107, 20
        %v2295 = vpop.permute.xlu0 %2294
        %2296 = vrot.lane.b32.xlu0 %v2269, 20
        %v2297 = vpop.permute.xlu0 %2296
        %2298 = vrot.lane.b32.xlu0 %v2265, 20
        %v2299 = vpop.permute.xlu0 %2298
        %v2301 = vunpack.c.l.b16 %v467
        %v2302 = vpack.c.b16 %v2301, %v2301
        %2303 = vrot.lane.b32.xlu0 %v1983, 24
        %v2304 = vpop.permute.xlu0 %2303
        %2305 = vrot.lane.b32.xlu0 %v1984, 24
        %v2306 = vpop.permute.xlu0 %2305
        %2307 = vrot.lane.b32.xlu0 %v1985, 24
        %v2308 = vpop.permute.xlu0 %2307
        %2309 = vrot.lane.b32.xlu0 %v1986, 24
        %v2310 = vpop.permute.xlu0 %2309
        %2311 = vrot.lane.b32.xlu0 %v1987, 24
        %v2312 = vpop.permute.xlu0 %2311
        %2313 = vrot.lane.b32.xlu0 %v1988, 24
        %v2314 = vpop.permute.xlu0 %2313
        %2315 = vrot.lane.b32.xlu0 %v1989, 24
        %v2316 = vpop.permute.xlu0 %2315
        %2317 = vrot.lane.b32.xlu0 %v1990, 24
        %v2318 = vpop.permute.xlu0 %2317
        %2319 = vrot.lane.b32.xlu0 %v1991, 24
        %v2320 = vpop.permute.xlu0 %2319
        %2321 = vrot.lane.b32.xlu0 %v1992, 24
        %v2322 = vpop.permute.xlu0 %2321
        %2323 = vrot.lane.b32.xlu0 %v1993, 24
        %v2324 = vpop.permute.xlu0 %2323
        %2325 = vrot.lane.b32.xlu0 %v1994, 24
        %v2326 = vpop.permute.xlu0 %2325
        %2327 = vrot.lane.b32.xlu0 %v1995, 24
        %v2328 = vpop.permute.xlu0 %2327
        %2329 = vrot.lane.b32.xlu0 %v2261, 24
        %v2330 = vpop.permute.xlu0 %2329
        %2331 = vrot.lane.b32.xlu0 %v2302, 24
        %v2332 = vpop.permute.xlu0 %2331
        %v2334 = vunpack.c.l.b16 %v468
        %v2335 = vpack.c.b16 %v1957, %v2334
        %v2337 = vshrl.u32 %v2335, 16
        %v2339 = vshll.u32 %v2335, 16
        %v2341 = vrot.slane %v2339, 1
        %v2342 = vor.u32 %v2337, %v2341
        %v2343 = vsel %vm546, %v2342, %v2184
        %v2344 = vrot.slane %v2266, 1
        %v2345 = vsel %vm546, %v2219, %v2344
        %v2346 = vor.u32 %v2263, %v2344
        %v2348 = vshll.u32 %v2302, 16
        %v2350 = vrot.slane %v2348, 1
        %v2351 = vsel %vm546, %v2346, %v2350
        %v2352 = vshrl.u32 %v2302, 16
        %2354 = vrot.lane.b32.xlu0 %v2343, 28
        %v2355 = vpop.permute.xlu0 %2354
        %2356 = vrot.lane.b32.xlu0 %v2188, 28
        %v2357 = vpop.permute.xlu0 %2356
        %2358 = vrot.lane.b32.xlu0 %v2191, 28
        %v2359 = vpop.permute.xlu0 %2358
        %2360 = vrot.lane.b32.xlu0 %v2194, 28
        %v2361 = vpop.permute.xlu0 %2360
        %2362 = vrot.lane.b32.xlu0 %v2197, 28
        %v2363 = vpop.permute.xlu0 %2362
        %2364 = vrot.lane.b32.xlu0 %v2200, 28
        %v2365 = vpop.permute.xlu0 %2364
        %2366 = vrot.lane.b32.xlu0 %v2203, 28
        %v2367 = vpop.permute.xlu0 %2366
        %2368 = vrot.lane.b32.xlu0 %v2206, 28
        %v2369 = vpop.permute.xlu0 %2368
        %2370 = vrot.lane.b32.xlu0 %v2209, 28
        %v2371 = vpop.permute.xlu0 %2370
        %2372 = vrot.lane.b32.xlu0 %v2212, 28
        %v2373 = vpop.permute.xlu0 %2372
        %2374 = vrot.lane.b32.xlu0 %v2215, 28
        %v2375 = vpop.permute.xlu0 %2374
        %2376 = vrot.lane.b32.xlu0 %v2218, 28
        %v2377 = vpop.permute.xlu0 %2376
        %2378 = vrot.lane.b32.xlu0 %v2345, 28
        %v2379 = vpop.permute.xlu0 %2378
        %2380 = vrot.lane.b32.xlu0 %v2351, 28
        %v2381 = vpop.permute.xlu0 %2380
        %2382 = vrot.lane.b32.xlu0 %v2352, 28
        %v2383 = vpop.permute.xlu0 %2382
        %v2386 = vunpack.c.l.b16 %v469
        %v2387 = vunpack.c.l.b16 %v470
        %v2388 = vpack.c.b16 %v2387, %v2386
        %v2390 = vshrl.u32 %v2388, 16
        %v2392 = vrot.slane %v2390, 7
        %v2393 = vshll.u32 %v2388, 16
        %v2395 = vor.u32 %v2392, %v2393
        %v2396 = vsel %vm1996, %v2265, %v2395
        %2397 = vrot.lane.b32.xlu0 %v2018, 32
        %v2398 = vpop.permute.xlu0 %2397
        %2399 = vrot.lane.b32.xlu0 %v2027, 32
        %v2400 = vpop.permute.xlu0 %2399
        %2401 = vrot.lane.b32.xlu0 %v2035, 32
        %v2402 = vpop.permute.xlu0 %2401
        %2403 = vrot.lane.b32.xlu0 %v2043, 32
        %v2404 = vpop.permute.xlu0 %2403
        %2405 = vrot.lane.b32.xlu0 %v2051, 32
        %v2406 = vpop.permute.xlu0 %2405
        %2407 = vrot.lane.b32.xlu0 %v2059, 32
        %v2408 = vpop.permute.xlu0 %2407
        %2409 = vrot.lane.b32.xlu0 %v2067, 32
        %v2410 = vpop.permute.xlu0 %2409
        %2411 = vrot.lane.b32.xlu0 %v2075, 32
        %v2412 = vpop.permute.xlu0 %2411
        %2413 = vrot.lane.b32.xlu0 %v2083, 32
        %v2414 = vpop.permute.xlu0 %2413
        %2415 = vrot.lane.b32.xlu0 %v2091, 32
        %v2416 = vpop.permute.xlu0 %2415
        %2417 = vrot.lane.b32.xlu0 %v2099, 32
        %v2418 = vpop.permute.xlu0 %2417
        %2419 = vrot.lane.b32.xlu0 %v2107, 32
        %v2420 = vpop.permute.xlu0 %2419
        %2421 = vrot.lane.b32.xlu0 %v2269, 32
        %v2422 = vpop.permute.xlu0 %2421
        %2423 = vrot.lane.b32.xlu0 %v2396, 32
        %v2424 = vpop.permute.xlu0 %2423
        %2425 = vrot.lane.b32.xlu0 %v2392, 32
        %v2426 = vpop.permute.xlu0 %2425
        %v2428 = vunpack.c.l.b16 %v471
        %v2429 = vpack.c.b16 %v2428, %v2428
        %2430 = vrot.lane.b32.xlu0 %v1984, 36
        %v2431 = vpop.permute.xlu0 %2430
        %2432 = vrot.lane.b32.xlu0 %v1985, 36
        %v2433 = vpop.permute.xlu0 %2432
        %2434 = vrot.lane.b32.xlu0 %v1986, 36
        %v2435 = vpop.permute.xlu0 %2434
        %2436 = vrot.lane.b32.xlu0 %v1987, 36
        %v2437 = vpop.permute.xlu0 %2436
        %2438 = vrot.lane.b32.xlu0 %v1988, 36
        %v2439 = vpop.permute.xlu0 %2438
        %2440 = vrot.lane.b32.xlu0 %v1989, 36
        %v2441 = vpop.permute.xlu0 %2440
        %2442 = vrot.lane.b32.xlu0 %v1990, 36
        %v2443 = vpop.permute.xlu0 %2442
        %2444 = vrot.lane.b32.xlu0 %v1991, 36
        %v2445 = vpop.permute.xlu0 %2444
        %2446 = vrot.lane.b32.xlu0 %v1992, 36
        %v2447 = vpop.permute.xlu0 %2446
        %2448 = vrot.lane.b32.xlu0 %v1993, 36
        %v2449 = vpop.permute.xlu0 %2448
        %2450 = vrot.lane.b32.xlu0 %v1994, 36
        %v2451 = vpop.permute.xlu0 %2450
        %2452 = vrot.lane.b32.xlu0 %v1995, 36
        %v2453 = vpop.permute.xlu0 %2452
        %2454 = vrot.lane.b32.xlu0 %v2261, 36
        %v2455 = vpop.permute.xlu0 %2454
        %2456 = vrot.lane.b32.xlu0 %v2388, 36
        %v2457 = vpop.permute.xlu0 %2456
        %2458 = vrot.lane.b32.xlu0 %v2429, 36
        %v2459 = vpop.permute.xlu0 %2458
        %v2461 = vunpack.c.l.b16 %v472
        %v2462 = vpack.c.b16 %v1959, %v2461
        %v2464 = vshrl.u32 %v2462, 16
        %v2466 = vshll.u32 %v2462, 16
        %v2468 = vrot.slane %v2466, 1
        %v2469 = vor.u32 %v2464, %v2468
        %v2470 = vsel %vm546, %v2469, %v2187
        %v2471 = vrot.slane %v2393, 1
        %v2472 = vsel %vm546, %v2346, %v2471
        %v2473 = vor.u32 %v2390, %v2471
        %v2475 = vshll.u32 %v2429, 16
        %v2477 = vrot.slane %v2475, 1
        %v2478 = vsel %vm546, %v2473, %v2477
        %v2479 = vshrl.u32 %v2429, 16
        %2481 = vrot.lane.b32.xlu0 %v2470, 40
        %v2482 = vpop.permute.xlu0 %2481
        %2483 = vrot.lane.b32.xlu0 %v2191, 40
        %v2484 = vpop.permute.xlu0 %2483
        %2485 = vrot.lane.b32.xlu0 %v2194, 40
        %v2486 = vpop.permute.xlu0 %2485
        %2487 = vrot.lane.b32.xlu0 %v2197, 40
        %v2488 = vpop.permute.xlu0 %2487
        %2489 = vrot.lane.b32.xlu0 %v2200, 40
        %v2490 = vpop.permute.xlu0 %2489
        %2491 = vrot.lane.b32.xlu0 %v2203, 40
        %v2492 = vpop.permute.xlu0 %2491
        %2493 = vrot.lane.b32.xlu0 %v2206, 40
        %v2494 = vpop.permute.xlu0 %2493
        %2495 = vrot.lane.b32.xlu0 %v2209, 40
        %v2496 = vpop.permute.xlu0 %2495
        %2497 = vrot.lane.b32.xlu0 %v2212, 40
        %v2498 = vpop.permute.xlu0 %2497
        %2499 = vrot.lane.b32.xlu0 %v2215, 40
        %v2500 = vpop.permute.xlu0 %2499
        %2501 = vrot.lane.b32.xlu0 %v2218, 40
        %v2502 = vpop.permute.xlu0 %2501
        %2503 = vrot.lane.b32.xlu0 %v2345, 40
        %v2504 = vpop.permute.xlu0 %2503
        %2505 = vrot.lane.b32.xlu0 %v2472, 40
        %v2506 = vpop.permute.xlu0 %2505
        %2507 = vrot.lane.b32.xlu0 %v2478, 40
        %v2508 = vpop.permute.xlu0 %2507
        %2509 = vrot.lane.b32.xlu0 %v2479, 40
        %v2510 = vpop.permute.xlu0 %2509
        %v2512 = vsel %vm1432, %v1038, %v1897
        %v2514 = vsel %vm1432, %v1039, %v1899
        %v2516 = vsel %vm1432, %v1040, %v1901
        %v2518 = vsel %vm1432, %v1041, %v1903
        %v2520 = vsel %vm1432, %v1042, %v1905
        %v2522 = vsel %vm1432, %v1043, %v1907
        %v2524 = vsel %vm1432, %v1044, %v1909
        %v2526 = vsel %vm1432, %v1045, %v1911
        %v2528 = vsel %vm1432, %v1046, %v1913
        %v2530 = vsel %vm1432, %v1047, %v1915
        %v2532 = vsel %vm1432, %v1048, %v1917
        %v2534 = vsel %vm1432, %v1049, %v1919
        %v2536 = vsel %vm1432, %v1289, %v1921
        %v2538 = vsel %vm1432, %v1403, %v1923
        %v2540 = vsel %vm1432, %v1869, %v1925
        %v2542 = vsel %vm1461, %v2512, %v2109
        %v2544 = vsel %vm1461, %v2514, %v2111
        %v2546 = vsel %vm1461, %v2516, %v2113
        %v2548 = vsel %vm1461, %v2518, %v2115
        %v2550 = vsel %vm1461, %v2520, %v2117
        %v2552 = vsel %vm1461, %v2522, %v2119
        %v2554 = vsel %vm1461, %v2524, %v2121
        %v2556 = vsel %vm1461, %v2526, %v2123
        %v2558 = vsel %vm1461, %v2528, %v2125
        %v2560 = vsel %vm1461, %v2530, %v2127
        %v2562 = vsel %vm1461, %v2532, %v2129
        %v2564 = vsel %vm1461, %v2534, %v2131
        %v2566 = vsel %vm1461, %v2536, %v2133
        %v2568 = vsel %vm1461, %v2538, %v2135
        %v2570 = vsel %vm1461, %v2540, %v2137
        %v2572 = vsel %vm1490, %v2542, %v2142
        %v2574 = vsel %vm1490, %v2544, %v2144
        %v2576 = vsel %vm1490, %v2546, %v2146
        %v2578 = vsel %vm1490, %v2548, %v2148
        %v2580 = vsel %vm1490, %v2550, %v2150
        %v2582 = vsel %vm1490, %v2552, %v2152
        %v2584 = vsel %vm1490, %v2554, %v2154
        %v2586 = vsel %vm1490, %v2556, %v2156
        %v2588 = vsel %vm1490, %v2558, %v2158
        %v2590 = vsel %vm1490, %v2560, %v2160
        %v2592 = vsel %vm1490, %v2562, %v2162
        %v2594 = vsel %vm1490, %v2564, %v2164
        %v2596 = vsel %vm1490, %v2566, %v2166
        %v2598 = vsel %vm1490, %v2568, %v2168
        %v2600 = vsel %vm1490, %v2570, %v2170
        %v2602 = vsel %vm1519, %v2572, %v2228
        %v2604 = vsel %vm1519, %v2574, %v2230
        %v2606 = vsel %vm1519, %v2576, %v2232
        %v2608 = vsel %vm1519, %v2578, %v2234
        %v2610 = vsel %vm1519, %v2580, %v2236
        %v2612 = vsel %vm1519, %v2582, %v2238
        %v2614 = vsel %vm1519, %v2584, %v2240
        %v2616 = vsel %vm1519, %v2586, %v2242
        %v2618 = vsel %vm1519, %v2588, %v2244
        %v2620 = vsel %vm1519, %v2590, %v2246
        %v2622 = vsel %vm1519, %v2592, %v2248
        %v2624 = vsel %vm1519, %v2594, %v2250
        %v2626 = vsel %vm1519, %v2596, %v2252
        %v2628 = vsel %vm1519, %v2598, %v2254
        %v2630 = vsel %vm1519, %v2600, %v2256
        %v2632 = vsel %vm1548, %v2602, %v2271
        %v2634 = vsel %vm1548, %v2604, %v2273
        %v2636 = vsel %vm1548, %v2606, %v2275
        %v2638 = vsel %vm1548, %v2608, %v2277
        %v2640 = vsel %vm1548, %v2610, %v2279
        %v2642 = vsel %vm1548, %v2612, %v2281
        %v2644 = vsel %vm1548, %v2614, %v2283
        %v2646 = vsel %vm1548, %v2616, %v2285
        %v2648 = vsel %vm1548, %v2618, %v2287
        %v2650 = vsel %vm1548, %v2620, %v2289
        %v2652 = vsel %vm1548, %v2622, %v2291
        %v2654 = vsel %vm1548, %v2624, %v2293
        %v2656 = vsel %vm1548, %v2626, %v2295
        %v2658 = vsel %vm1548, %v2628, %v2297
        %v2660 = vsel %vm1548, %v2630, %v2299
        %v2662 = vsel %vm1577, %v2632, %v2304
        %v2664 = vsel %vm1577, %v2634, %v2306
        %v2666 = vsel %vm1577, %v2636, %v2308
        %v2668 = vsel %vm1577, %v2638, %v2310
        %v2670 = vsel %vm1577, %v2640, %v2312
        %v2672 = vsel %vm1577, %v2642, %v2314
        %v2674 = vsel %vm1577, %v2644, %v2316
        %v2676 = vsel %vm1577, %v2646, %v2318
        %v2678 = vsel %vm1577, %v2648, %v2320
        %v2680 = vsel %vm1577, %v2650, %v2322
        %v2682 = vsel %vm1577, %v2652, %v2324
        %v2684 = vsel %vm1577, %v2654, %v2326
        %v2686 = vsel %vm1577, %v2656, %v2328
        %v2688 = vsel %vm1577, %v2658, %v2330
        %v2690 = vsel %vm1577, %v2660, %v2332
        %v2692 = vsel %vm1606, %v2662, %v2355
        %v2694 = vsel %vm1606, %v2664, %v2357
        %v2696 = vsel %vm1606, %v2666, %v2359
        %v2698 = vsel %vm1606, %v2668, %v2361
        %v2700 = vsel %vm1606, %v2670, %v2363
        %v2702 = vsel %vm1606, %v2672, %v2365
        %v2704 = vsel %vm1606, %v2674, %v2367
        %v2706 = vsel %vm1606, %v2676, %v2369
        %v2708 = vsel %vm1606, %v2678, %v2371
        %v2710 = vsel %vm1606, %v2680, %v2373
        %v2712 = vsel %vm1606, %v2682, %v2375
        %v2714 = vsel %vm1606, %v2684, %v2377
        %v2716 = vsel %vm1606, %v2686, %v2379
        %v2718 = vsel %vm1606, %v2688, %v2381
        %v2720 = vsel %vm1606, %v2690, %v2383
        %v2722 = vsel %vm1635, %v2692, %v2398
        %v2724 = vsel %vm1635, %v2694, %v2400
        %v2726 = vsel %vm1635, %v2696, %v2402
        %v2728 = vsel %vm1635, %v2698, %v2404
        %v2730 = vsel %vm1635, %v2700, %v2406
        %v2732 = vsel %vm1635, %v2702, %v2408
        %v2734 = vsel %vm1635, %v2704, %v2410
        %v2736 = vsel %vm1635, %v2706, %v2412
        %v2738 = vsel %vm1635, %v2708, %v2414
        %v2740 = vsel %vm1635, %v2710, %v2416
        %v2742 = vsel %vm1635, %v2712, %v2418
        %v2744 = vsel %vm1635, %v2714, %v2420
        %v2746 = vsel %vm1635, %v2716, %v2422
        %v2748 = vsel %vm1635, %v2718, %v2424
        %v2750 = vsel %vm1635, %v2720, %v2426
        %v2752 = vsel %vm1664, %v2722, %v2431
        %v2754 = vsel %vm1664, %v2724, %v2433
        %v2756 = vsel %vm1664, %v2726, %v2435
        %v2758 = vsel %vm1664, %v2728, %v2437
        %v2760 = vsel %vm1664, %v2730, %v2439
        %v2762 = vsel %vm1664, %v2732, %v2441
        %v2764 = vsel %vm1664, %v2734, %v2443
        %v2766 = vsel %vm1664, %v2736, %v2445
        %v2768 = vsel %vm1664, %v2738, %v2447
        %v2770 = vsel %vm1664, %v2740, %v2449
        %v2772 = vsel %vm1664, %v2742, %v2451
        %v2774 = vsel %vm1664, %v2744, %v2453
        %v2776 = vsel %vm1664, %v2746, %v2455
        %v2778 = vsel %vm1664, %v2748, %v2457
        %v2780 = vsel %vm1664, %v2750, %v2459
        %v2782 = vsel %vm1693, %v2752, %v2482
        %v2784 = vsel %vm1693, %v2754, %v2484
        %v2786 = vsel %vm1693, %v2756, %v2486
        %v2788 = vsel %vm1693, %v2758, %v2488
        %v2790 = vsel %vm1693, %v2760, %v2490
        %v2792 = vsel %vm1693, %v2762, %v2492
        %v2794 = vsel %vm1693, %v2764, %v2494
        %v2796 = vsel %vm1693, %v2766, %v2496
        %v2798 = vsel %vm1693, %v2768, %v2498
        %v2800 = vsel %vm1693, %v2770, %v2500
        %v2802 = vsel %vm1693, %v2772, %v2502
        %v2804 = vsel %vm1693, %v2774, %v2504
        %v2806 = vsel %vm1693, %v2776, %v2506
        %v2808 = vsel %vm1693, %v2778, %v2508
        %v2810 = vsel %vm1693, %v2780, %v2510
        %v2811 = vshrl.u32 %v2782, 16
        %v2813 = vshll.u32 %v2782, 16
        %v2815 = vrot.slane %v2813, 1
        %v2816 = vor.u32 %v2811, %v2815
        %v2817 = vshll.u32 %v2784, 16
        %v2819 = vrot.slane %v2817, 1
        %v2820 = vsel %vm546, %v2816, %v2819
        %v2821 = vshrl.u32 %v2784, 16
        %v2823 = vor.u32 %v2821, %v2819
        %v2824 = vshll.u32 %v2786, 16
        %v2826 = vrot.slane %v2824, 1
        %v2827 = vsel %vm546, %v2823, %v2826
        %v2828 = vshrl.u32 %v2786, 16
        %v2830 = vor.u32 %v2828, %v2826
        %v2831 = vshll.u32 %v2788, 16
        %v2833 = vrot.slane %v2831, 1
        %v2834 = vsel %vm546, %v2830, %v2833
        %v2835 = vshrl.u32 %v2788, 16
        %v2837 = vor.u32 %v2835, %v2833
        %v2838 = vshll.u32 %v2790, 16
        %v2840 = vrot.slane %v2838, 1
        %v2841 = vsel %vm546, %v2837, %v2840
        %v2842 = vshrl.u32 %v2790, 16
        %v2844 = vor.u32 %v2842, %v2840
        %v2845 = vshll.u32 %v2792, 16
        %v2847 = vrot.slane %v2845, 1
        %v2848 = vsel %vm546, %v2844, %v2847
        %v2849 = vshrl.u32 %v2792, 16
        %v2851 = vor.u32 %v2849, %v2847
        %v2852 = vshll.u32 %v2794, 16
        %v2854 = vrot.slane %v2852, 1
        %v2855 = vsel %vm546, %v2851, %v2854
        %v2856 = vshrl.u32 %v2794, 16
        %v2858 = vor.u32 %v2856, %v2854
        %v2859 = vshll.u32 %v2796, 16
        %v2861 = vrot.slane %v2859, 1
        %v2862 = vsel %vm546, %v2858, %v2861
        %v2863 = vshrl.u32 %v2796, 16
        %v2865 = vor.u32 %v2863, %v2861
        %v2866 = vshll.u32 %v2798, 16
        %v2868 = vrot.slane %v2866, 1
        %v2869 = vsel %vm546, %v2865, %v2868
        %v2870 = vshrl.u32 %v2798, 16
        %v2872 = vor.u32 %v2870, %v2868
        %v2873 = vshll.u32 %v2800, 16
        %v2875 = vrot.slane %v2873, 1
        %v2876 = vsel %vm546, %v2872, %v2875
        %v2877 = vshrl.u32 %v2800, 16
        %v2879 = vor.u32 %v2877, %v2875
        %v2880 = vshll.u32 %v2802, 16
        %v2882 = vrot.slane %v2880, 1
        %v2883 = vsel %vm546, %v2879, %v2882
        %v2884 = vshrl.u32 %v2802, 16
        %v2886 = vor.u32 %v2884, %v2882
        %v2887 = vshll.u32 %v2804, 16
        %v2889 = vrot.slane %v2887, 1
        %v2890 = vsel %vm546, %v2886, %v2889
        %v2891 = vshrl.u32 %v2804, 16
        %v2893 = vor.u32 %v2891, %v2889
        %v2894 = vshll.u32 %v2806, 16
        %v2896 = vrot.slane %v2894, 1
        %v2897 = vsel %vm546, %v2893, %v2896
        %v2898 = vshrl.u32 %v2806, 16
        %v2900 = vor.u32 %v2898, %v2896
        %v2901 = vshll.u32 %v2808, 16
        %v2903 = vrot.slane %v2901, 1
        %v2904 = vsel %vm546, %v2900, %v2903
        %v2905 = vshrl.u32 %v2808, 16
        %v2907 = vor.u32 %v2905, %v2903
        %v2908 = vshll.u32 %v2810, 16
        %v2910 = vrot.slane %v2908, 1
        %v2911 = vsel %vm546, %v2907, %v2910
        %2912 = vrot.lane.b32.xlu0 %v2820, 64
        %v2913 = vpop.permute.xlu0 %2912
        %2914 = vrot.lane.b32.xlu0 %v2827, 64
        %v2915 = vpop.permute.xlu0 %2914
        %2916 = vrot.lane.b32.xlu0 %v2834, 64
        %v2917 = vpop.permute.xlu0 %2916
        %2918 = vrot.lane.b32.xlu0 %v2841, 64
        %v2919 = vpop.permute.xlu0 %2918
        %2920 = vrot.lane.b32.xlu0 %v2848, 64
        %v2921 = vpop.permute.xlu0 %2920
        %2922 = vrot.lane.b32.xlu0 %v2855, 64
        %v2923 = vpop.permute.xlu0 %2922
        %2924 = vrot.lane.b32.xlu0 %v2862, 64
        %v2925 = vpop.permute.xlu0 %2924
        %2926 = vrot.lane.b32.xlu0 %v2869, 64
        %v2927 = vpop.permute.xlu0 %2926
        %2928 = vrot.lane.b32.xlu0 %v2876, 64
        %v2929 = vpop.permute.xlu0 %2928
        %2930 = vrot.lane.b32.xlu0 %v2883, 64
        %v2931 = vpop.permute.xlu0 %2930
        %2932 = vrot.lane.b32.xlu0 %v2890, 64
        %v2933 = vpop.permute.xlu0 %2932
        %2934 = vrot.lane.b32.xlu0 %v2897, 64
        %v2935 = vpop.permute.xlu0 %2934
        %2936 = vrot.lane.b32.xlu0 %v2904, 64
        %v2937 = vpop.permute.xlu0 %2936
        %2938 = vrot.lane.b32.xlu0 %v2911, 64
        %v2939 = vpop.permute.xlu0 %2938
        %vm2940 = vcmask 523264
        %v2942 = vsel %vm2940, %v1840, %v2913
        %v2944 = vsel %vm2940, %v1842, %v2915
        %v2946 = vsel %vm2940, %v1844, %v2917
        %v2948 = vsel %vm2940, %v1846, %v2919
        %v2950 = vsel %vm2940, %v1848, %v2921
        %v2952 = vsel %vm2940, %v1850, %v2923
        %v2954 = vsel %vm2940, %v1852, %v2925
        %v2956 = vsel %vm2940, %v1854, %v2927
        %v2958 = vsel %vm2940, %v1856, %v2929
        %v2960 = vsel %vm2940, %v1858, %v2931
        %v2962 = vsel %vm2940, %v1860, %v2933
        %v2964 = vsel %vm2940, %v1862, %v2935
        %v2966 = vsel %vm2940, %v1864, %v2937
        %v2968 = vsel %vm2940, %v1866, %v2939
        %v2969 = vld [vmem:[%s3] sm:$0xf]
        %v2970 = vld [vmem:[%s3 + $0x4] sm:$0xf]
        %v2971 = vld [vmem:[%s3 + $0x8] sm:$0xf]
        %v2972 = vld [vmem:[%s3 + $0xc] sm:$0xf]
        %v2973 = vld [vmem:[%s3 + $0x10] sm:$0xf]
        %v2974 = vld [vmem:[%s3 + $0x14] sm:$0xf]
        %v2975 = vld [vmem:[%s3 + $0x18] sm:$0xf]
        %v2976 = vld [vmem:[%s3 + $0x1c] sm:$0xf]
        %v2977 = vld [vmem:[%s3 + $0x20] sm:$0xf]
        %v2978 = vld [vmem:[%s3 + $0x24] sm:$0xf]
        %v2979 = vld [vmem:[%s3 + $0x28] sm:$0xf]
        %v2980 = vld [vmem:[%s3 + $0x2c] sm:$0xf]
        %v2981 = vld [vmem:[%s3 + $0x30] sm:$0xf]
        %v2982 = vld [vmem:[%s3 + $0x34] sm:$0x3]
        %v2997 = vunpack.c.l.b16 %v2969
        %v2998 = vunpack.c.l.b16 %v2970
        %v2999 = vunpack.c.l.b16 %v2971
        %v3000 = vunpack.c.l.b16 %v2972
        %v3001 = vunpack.c.l.b16 %v2973
        %v3002 = vunpack.c.l.b16 %v2974
        %v3003 = vunpack.c.l.b16 %v2975
        %v3004 = vunpack.c.l.b16 %v2976
        %v3005 = vunpack.c.l.b16 %v2977
        %v3006 = vunpack.c.l.b16 %v2978
        %v3007 = vunpack.c.l.b16 %v2979
        %v3008 = vunpack.c.l.b16 %v2980
        %v3009 = vunpack.c.l.b16 %v2981
        %v3010 = vunpack.c.l.b16 %v2982
        %v3011 = vpack.c.b16 %v2998, %v2997
        %v3012 = vpack.c.b16 %v3000, %v2999
        %v3013 = vpack.c.b16 %v3002, %v3001
        %v3014 = vpack.c.b16 %v3004, %v3003
        %v3015 = vpack.c.b16 %v3006, %v3005
        %v3016 = vpack.c.b16 %v3008, %v3007
        %v3017 = vpack.c.b16 %v3010, %v3009
        %vm3024 = vcmask 883712
        %v3025 = vsel %vm3024, %v2942, 0
        %v3027 = vsel %vm3024, %v2944, 0
        %v3029 = vsel %vm3024, %v2946, 0
        %v3031 = vsel %vm3024, %v2948, 0
        %v3033 = vsel %vm3024, %v2950, 0
        %v3035 = vsel %vm3024, %v2952, 0
        %v3037 = vsel %vm3024, %v2954, 0
        %v3039 = vsel %vm3024, %v2956, 0
        %v3041 = vsel %vm3024, %v2958, 0
        %v3043 = vsel %vm3024, %v2960, 0
        %v3045 = vsel %vm3024, %v2962, 0
        %v3047 = vsel %vm3024, %v2964, 0
        %v3049 = vsel %vm3024, %v2966, 0
        %v3051 = vsel %vm3024, %v2968, 0
        %vm3053 = vcmask 1045504
        %v3055 = vsel %vm3053, %v3017, 0
        %3057 = vmatprep.subr.bf16.mxu0 0
        %3058 = vmatpush1.bf16.msra.mxu0 0
        %3059 = vmatprep.subr.bf16.mxu0 0
        %3060 = vmatpush1.bf16.msra.mxu0 %v3055
        %3061 = vmatprep.subr.bf16.mxu0 0
        %3062 = vmatpush1.bf16.msra.mxu0 %v3016
        %3063 = vmatprep.subr.bf16.mxu0 0
        %3064 = vmatpush1.bf16.msra.mxu0 %v3015
        %3065 = vmatprep.subr.bf16.mxu0 0
        %3066 = vmatpush1.bf16.msra.mxu0 %v3014
        %3067 = vmatprep.subr.bf16.mxu0 0
        %3068 = vmatpush1.bf16.msra.mxu0 %v3013
        %3069 = vmatprep.subr.bf16.mxu0 0
        %3070 = vmatpush1.bf16.msra.mxu0 %v3012
        %3071 = vmatprep.subr.bf16.mxu0 0
        %3072 = vmatpush1.bf16.msra.mxu0 %v3011
        %3073 = vmatprep.subr.bf16.mxu0 0
        %3074 = vmatpush2.bf16.msra.mxu0 0
        %3075 = vmatprep.subr.bf16.mxu0 0
        %3076 = vmatpush2.bf16.msra.mxu0 0
        %3077 = vmatprep.subr.bf16.mxu0 0
        %3078 = vmatpush2.bf16.msra.mxu0 0
        %3079 = vmatprep.subr.bf16.mxu0 0
        %3080 = vmatpush2.bf16.msra.mxu0 0
        %3081 = vmatprep.subr.bf16.mxu0 0
        %3082 = vmatpush2.bf16.msra.mxu0 0
        %3083 = vmatprep.subr.bf16.mxu0 0
        %3084 = vmatpush2.bf16.msra.mxu0 0
        %3085 = vmatprep.subr.bf16.mxu0 0
        %3086 = vmatpush2.bf16.msra.mxu0 0
        %3087 = vmatprep.subr.bf16.mxu0 0
        %3088 = vmatpush2.bf16.msra.mxu0 0
        %3089 = vmatprep.mubr.bf16.mxu0 0
        %3090 = vmatmul.mubr.bf16.gmra.mxu0 %v3025
        %v3091 = vpop.f32.mrf.mxu0
        %v3092 = vadd.f32 0.0, %v3091
        %v3093 = vpop.f32.mrf.mxu0
        %v3094 = vpop.f32.mrf.mxu0
        %v3095 = vadd.f32 0.0, %v3094
        %v3096 = vpop.f32.mrf.mxu0
        %3097 = vmatprep.mubr.bf16.mxu0 0
        %3098 = vmatmul.mubr.bf16.gmra.mxu0 %v3027
        %v3099 = vpop.f32.mrf.mxu0
        %v3100 = vadd.f32 0.0, %v3099
        %v3101 = vpop.f32.mrf.mxu0
        %v3102 = vpop.f32.mrf.mxu0
        %v3103 = vadd.f32 0.0, %v3102
        %v3104 = vpop.f32.mrf.mxu0
        %3105 = vmatprep.mubr.bf16.mxu0 0
        %3106 = vmatmul.mubr.bf16.gmra.mxu0 %v3029
        %v3107 = vpop.f32.mrf.mxu0
        %v3108 = vadd.f32 0.0, %v3107
        %v3109 = vpop.f32.mrf.mxu0
        %v3110 = vpop.f32.mrf.mxu0
        %v3111 = vadd.f32 0.0, %v3110
        %v3112 = vpop.f32.mrf.mxu0
        %3113 = vmatprep.mubr.bf16.mxu0 0
        %3114 = vmatmul.mubr.bf16.gmra.mxu0 %v3031
        %v3115 = vpop.f32.mrf.mxu0
        %v3116 = vadd.f32 0.0, %v3115
        %v3117 = vpop.f32.mrf.mxu0
        %v3118 = vpop.f32.mrf.mxu0
        %v3119 = vadd.f32 0.0, %v3118
        %v3120 = vpop.f32.mrf.mxu0
        %3121 = vmatprep.mubr.bf16.mxu0 0
        %3122 = vmatmul.mubr.bf16.gmra.mxu0 %v3033
        %v3123 = vpop.f32.mrf.mxu0
        %v3124 = vadd.f32 0.0, %v3123
        %v3125 = vpop.f32.mrf.mxu0
        %v3126 = vpop.f32.mrf.mxu0
        %v3127 = vadd.f32 0.0, %v3126
        %v3128 = vpop.f32.mrf.mxu0
        %3129 = vmatprep.mubr.bf16.mxu0 0
        %3130 = vmatmul.mubr.bf16.gmra.mxu0 %v3035
        %v3131 = vpop.f32.mrf.mxu0
        %v3132 = vadd.f32 0.0, %v3131
        %v3133 = vpop.f32.mrf.mxu0
        %v3134 = vpop.f32.mrf.mxu0
        %v3135 = vadd.f32 0.0, %v3134
        %v3136 = vpop.f32.mrf.mxu0
        %3137 = vmatprep.mubr.bf16.mxu0 0
        %3138 = vmatmul.mubr.bf16.gmra.mxu0 %v3037
        %v3139 = vpop.f32.mrf.mxu0
        %v3140 = vadd.f32 0.0, %v3139
        %v3141 = vpop.f32.mrf.mxu0
        %v3142 = vpop.f32.mrf.mxu0
        %v3143 = vadd.f32 0.0, %v3142
        %v3144 = vpop.f32.mrf.mxu0
        %3145 = vmatprep.mubr.bf16.mxu0 0
        %3146 = vmatmul.mubr.bf16.gmra.mxu0 %v3039
        %v3147 = vpop.f32.mrf.mxu0
        %v3148 = vadd.f32 0.0, %v3147
        %v3149 = vpop.f32.mrf.mxu0
        %v3150 = vpop.f32.mrf.mxu0
        %v3151 = vadd.f32 0.0, %v3150
        %v3152 = vpop.f32.mrf.mxu0
        %3153 = vmatprep.mubr.bf16.mxu0 0
        %3154 = vmatmul.mubr.bf16.gmra.mxu0 %v3041
        %v3155 = vpop.f32.mrf.mxu0
        %v3156 = vadd.f32 0.0, %v3155
        %v3157 = vpop.f32.mrf.mxu0
        %v3158 = vpop.f32.mrf.mxu0
        %v3159 = vadd.f32 0.0, %v3158
        %v3160 = vpop.f32.mrf.mxu0
        %3161 = vmatprep.mubr.bf16.mxu0 0
        %3162 = vmatmul.mubr.bf16.gmra.mxu0 %v3043
        %v3163 = vpop.f32.mrf.mxu0
        %v3164 = vadd.f32 0.0, %v3163
        %v3165 = vpop.f32.mrf.mxu0
        %v3166 = vpop.f32.mrf.mxu0
        %v3167 = vadd.f32 0.0, %v3166
        %v3168 = vpop.f32.mrf.mxu0
        %3169 = vmatprep.mubr.bf16.mxu0 0
        %3170 = vmatmul.mubr.bf16.gmra.mxu0 %v3045
        %v3171 = vpop.f32.mrf.mxu0
        %v3172 = vadd.f32 0.0, %v3171
        %v3173 = vpop.f32.mrf.mxu0
        %v3174 = vpop.f32.mrf.mxu0
        %v3175 = vadd.f32 0.0, %v3174
        %v3176 = vpop.f32.mrf.mxu0
        %3177 = vmatprep.mubr.bf16.mxu0 0
        %3178 = vmatmul.mubr.bf16.gmra.mxu0 %v3047
        %v3179 = vpop.f32.mrf.mxu0
        %v3180 = vadd.f32 0.0, %v3179
        %v3181 = vpop.f32.mrf.mxu0
        %v3182 = vpop.f32.mrf.mxu0
        %v3183 = vadd.f32 0.0, %v3182
        %v3184 = vpop.f32.mrf.mxu0
        %3185 = vmatprep.mubr.bf16.mxu0 0
        %3186 = vmatmul.mubr.bf16.gmra.mxu0 %v3049
        %v3187 = vpop.f32.mrf.mxu0
        %v3188 = vadd.f32 0.0, %v3187
        %v3189 = vpop.f32.mrf.mxu0
        %v3190 = vpop.f32.mrf.mxu0
        %v3191 = vadd.f32 0.0, %v3190
        %v3192 = vpop.f32.mrf.mxu0
        %3193 = vmatprep.mubr.bf16.mxu0 0
        %3194 = vmatmul.mubr.bf16.gmra.mxu0 %v3051
        %v3195 = vpop.f32.mrf.mxu0
        %v3196 = vadd.f32 0.0, %v3195
        %v3197 = vpop.f32.mrf.mxu0
        %v3198 = vpop.f32.mrf.mxu0
        %v3199 = vadd.f32 0.0, %v3198
        %v3200 = vpop.f32.mrf.mxu0
        %3201 = vdwg.mxu0
        %v3202 = vpack.c.bf16 %v3095, %v3092
        %v3203 = vpack.c.bf16 %v3103, %v3100
        %v3204 = vpack.c.bf16 %v3111, %v3108
        %v3205 = vpack.c.bf16 %v3119, %v3116
        %v3206 = vpack.c.bf16 %v3127, %v3124
        %v3207 = vpack.c.bf16 %v3135, %v3132
        %v3208 = vpack.c.bf16 %v3143, %v3140
        %v3209 = vpack.c.bf16 %v3151, %v3148
        %v3210 = vpack.c.bf16 %v3159, %v3156
        %v3211 = vpack.c.bf16 %v3167, %v3164
        %v3212 = vpack.c.bf16 %v3175, %v3172
        %v3213 = vpack.c.bf16 %v3183, %v3180
        %v3214 = vpack.c.bf16 %v3191, %v3188
        %v3215 = vpack.c.bf16 %v3199, %v3196
        %v3230 = vunpack.c.l.b16 %v3202
        %v3231 = vunpack.c.h.b16 %v3202
        %v3232 = vunpack.c.l.b16 %v3203
        %v3233 = vunpack.c.h.b16 %v3203
        %v3234 = vunpack.c.l.b16 %v3204
        %v3235 = vunpack.c.h.b16 %v3204
        %v3236 = vunpack.c.l.b16 %v3205
        %v3237 = vunpack.c.h.b16 %v3205
        %v3238 = vunpack.c.l.b16 %v3206
        %v3239 = vunpack.c.h.b16 %v3206
        %v3240 = vunpack.c.l.b16 %v3207
        %v3241 = vunpack.c.h.b16 %v3207
        %v3242 = vunpack.c.l.b16 %v3208
        %v3243 = vunpack.c.h.b16 %v3208
        %v3244 = vunpack.c.l.b16 %v3209
        %v3245 = vunpack.c.h.b16 %v3209
        %v3246 = vunpack.c.l.b16 %v3210
        %v3247 = vunpack.c.h.b16 %v3210
        %v3248 = vunpack.c.l.b16 %v3211
        %v3249 = vunpack.c.h.b16 %v3211
        %v3250 = vunpack.c.l.b16 %v3212
        %v3251 = vunpack.c.h.b16 %v3212
        %v3252 = vunpack.c.l.b16 %v3213
        %v3253 = vunpack.c.h.b16 %v3213
        %v3254 = vunpack.c.l.b16 %v3214
        %v3255 = vunpack.c.h.b16 %v3214
        %v3256 = vunpack.c.l.b16 %v3215
        %v3257 = vunpack.c.h.b16 %v3215
        %v3258 = vpack.c.b16 %v3230, %v3230
        %v3259 = vpack.c.b16 %v3231, %v3231
        %v3260 = vpack.c.b16 %v3232, %v3232
        %v3261 = vpack.c.b16 %v3233, %v3233
        %v3262 = vpack.c.b16 %v3234, %v3234
        %v3263 = vpack.c.b16 %v3235, %v3235
        %v3264 = vpack.c.b16 %v3236, %v3236
        %v3265 = vpack.c.b16 %v3237, %v3237
        %v3266 = vpack.c.b16 %v3238, %v3238
        %v3267 = vpack.c.b16 %v3239, %v3239
        %v3268 = vpack.c.b16 %v3240, %v3240
        %v3269 = vpack.c.b16 %v3241, %v3241
        %v3270 = vpack.c.b16 %v3242, %v3242
        %v3271 = vpack.c.b16 %v3243, %v3243
        %v3272 = vpack.c.b16 %v3244, %v3244
        %v3273 = vpack.c.b16 %v3245, %v3245
        %v3274 = vpack.c.b16 %v3246, %v3246
        %v3275 = vpack.c.b16 %v3247, %v3247
        %v3276 = vpack.c.b16 %v3248, %v3248
        %v3277 = vpack.c.b16 %v3249, %v3249
        %v3278 = vpack.c.b16 %v3250, %v3250
        %v3279 = vpack.c.b16 %v3251, %v3251
        %v3280 = vpack.c.b16 %v3252, %v3252
        %v3281 = vpack.c.b16 %v3253, %v3253
        %v3282 = vpack.c.b16 %v3254, %v3254
        %v3283 = vpack.c.b16 %v3255, %v3255
        %v3284 = vpack.c.b16 %v3256, %v3256
        %v3285 = vpack.c.b16 %v3257, %v3257
        %3314 = vst [vmem:[%s318] sm:$0xf] %v3258
        %3315 = vst [vmem:[%s318 + $0x4] sm:$0xf] %v3259
        %3316 = vst [vmem:[%s318 + $0x8] sm:$0xf] %v3260
        %3317 = vst [vmem:[%s318 + $0xc] sm:$0xf] %v3261
        %3318 = vst [vmem:[%s318 + $0x10] sm:$0xf] %v3262
        %3319 = vst [vmem:[%s318 + $0x14] sm:$0xf] %v3263
        %3320 = vst [vmem:[%s318 + $0x18] sm:$0xf] %v3264
        %3321 = vst [vmem:[%s318 + $0x1c] sm:$0xf] %v3265
        %3322 = vst [vmem:[%s318 + $0x20] sm:$0xf] %v3266
        %3323 = vst [vmem:[%s318 + $0x24] sm:$0xf] %v3267
        %3324 = vst [vmem:[%s318 + $0x28] sm:$0xf] %v3268
        %3325 = vst [vmem:[%s318 + $0x2c] sm:$0xf] %v3269
        %3326 = vst [vmem:[%s318 + $0x30] sm:$0xf] %v3270
        %3327 = vst [vmem:[%s318 + $0x34] sm:$0xf] %v3271
        %3328 = vst [vmem:[%s318 + $0x38] sm:$0xf] %v3272
        %3329 = vst [vmem:[%s318 + $0x3c] sm:$0xf] %v3273
        %3330 = vst [vmem:[%s318 + $0x40] sm:$0xf] %v3274
        %3331 = vst [vmem:[%s318 + $0x44] sm:$0xf] %v3275
        %3332 = vst [vmem:[%s318 + $0x48] sm:$0xf] %v3276
        %3333 = vst [vmem:[%s318 + $0x4c] sm:$0xf] %v3277
        %3334 = vst [vmem:[%s318 + $0x50] sm:$0xf] %v3278
        %3335 = vst [vmem:[%s318 + $0x54] sm:$0xf] %v3279
        %3336 = vst [vmem:[%s318 + $0x58] sm:$0xf] %v3280
        %3337 = vst [vmem:[%s318 + $0x5c] sm:$0xf] %v3281
        %3338 = vst [vmem:[%s318 + $0x60] sm:$0xf] %v3282
        %3339 = vst [vmem:[%s318 + $0x64] sm:$0xf] %v3283
        %3340 = vst [vmem:[%s318 + $0x68] sm:$0xf] %v3284
        %3341 = vst [vmem:[%s318 + $0x6c] sm:$0xf] %v3285
        %v3342 = vlaneseq
        %v3343 = vshrl.u32 %v3342, 7
        %v3344 = vadd.s32 %v3343, 8
        %v3345 = vadd.s32 %v3343, 16
        %v3346 = vadd.s32 %v3343, 24
        %v3347 = vadd.s32 %v3343, 32
        %v3348 = vadd.s32 %v3343, 40
        %v3349 = vadd.s32 %v3343, 48
        %v3350 = vadd.s32 %v3343, 56
        %v3351 = vadd.s32 %v3343, 64
        %v3352 = vadd.s32 %v3343, 72
        %v3353 = vadd.s32 %v3343, 80
        %v3354 = vadd.s32 %v3343, 88
        %v3355 = vadd.s32 %v3343, 96
        %v3356 = vadd.s32 %v3343, 104
        %v3357 = vadd.s32 %v3343, 112
        %v3358 = vadd.s32 %v3343, 120
        %v3359 = vadd.s32 %v3343, 128
        %v3360 = vadd.s32 %v3343, 136
        %v3361 = vadd.s32 %v3343, 144
        %v3362 = vadd.s32 %v3343, 152
        %v3363 = vadd.s32 %v3343, 160
        %v3364 = vadd.s32 %v3343, 168
        %v3365 = vadd.s32 %v3343, 176
        %v3366 = vadd.s32 %v3343, 184
        %v3367 = vadd.s32 %v3343, 192
        %v3368 = vadd.s32 %v3343, 200
        %v3369 = vadd.s32 %v3343, 208
        %v3370 = vadd.s32 %v3343, 216
        %vm3371 = vcmp.lt.s32.totalorder %v3343, 0
        %v3372 = vsub.s32 0, %v3343
        %v3373 = vsel %vm3371, %v3372, %v3343
        %v3374 = vshrl.u32 %v3373, 4
        %v3375 = vand.u32 %v3373, 15
        %v3376 = vsub.s32 0, %v3375
        %v3377 = vsel %vm3371, %v3376, %v3375
        %vm3378 = vcmp.lt.s32.totalorder %v3344, 0
        %v3379 = vsub.s32 0, %v3344
        %v3380 = vsel %vm3378, %v3379, %v3344
        %v3381 = vshrl.u32 %v3380, 4
        %v3382 = vand.u32 %v3380, 15
        %v3383 = vsub.s32 0, %v3382
        %v3384 = vsel %vm3378, %v3383, %v3382
        %vm3385 = vcmp.lt.s32.totalorder %v3345, 0
        %v3386 = vsub.s32 0, %v3345
        %v3387 = vsel %vm3385, %v3386, %v3345
        %v3388 = vshrl.u32 %v3387, 4
        %v3389 = vand.u32 %v3387, 15
        %v3390 = vsub.s32 0, %v3389
        %v3391 = vsel %vm3385, %v3390, %v3389
        %vm3392 = vcmp.lt.s32.totalorder %v3346, 0
        %v3393 = vsub.s32 0, %v3346
        %v3394 = vsel %vm3392, %v3393, %v3346
        %v3395 = vshrl.u32 %v3394, 4
        %v3396 = vand.u32 %v3394, 15
        %v3397 = vsub.s32 0, %v3396
        %v3398 = vsel %vm3392, %v3397, %v3396
        %vm3399 = vcmp.lt.s32.totalorder %v3347, 0
        %v3400 = vsub.s32 0, %v3347
        %v3401 = vsel %vm3399, %v3400, %v3347
        %v3402 = vshrl.u32 %v3401, 4
        %v3403 = vand.u32 %v3401, 15
        %v3404 = vsub.s32 0, %v3403
        %v3405 = vsel %vm3399, %v3404, %v3403
        %vm3406 = vcmp.lt.s32.totalorder %v3348, 0
        %v3407 = vsub.s32 0, %v3348
        %v3408 = vsel %vm3406, %v3407, %v3348
        %v3409 = vshrl.u32 %v3408, 4
        %v3410 = vand.u32 %v3408, 15
        %v3411 = vsub.s32 0, %v3410
        %v3412 = vsel %vm3406, %v3411, %v3410
        %vm3413 = vcmp.lt.s32.totalorder %v3349, 0
        %v3414 = vsub.s32 0, %v3349
        %v3415 = vsel %vm3413, %v3414, %v3349
        %v3416 = vshrl.u32 %v3415, 4
        %v3417 = vand.u32 %v3415, 15
        %v3418 = vsub.s32 0, %v3417
        %v3419 = vsel %vm3413, %v3418, %v3417
        %vm3420 = vcmp.lt.s32.totalorder %v3350, 0
        %v3421 = vsub.s32 0, %v3350
        %v3422 = vsel %vm3420, %v3421, %v3350
        %v3423 = vshrl.u32 %v3422, 4
        %v3424 = vand.u32 %v3422, 15
        %v3425 = vsub.s32 0, %v3424
        %v3426 = vsel %vm3420, %v3425, %v3424
        %vm3427 = vcmp.lt.s32.totalorder %v3351, 0
        %v3428 = vsub.s32 0, %v3351
        %v3429 = vsel %vm3427, %v3428, %v3351
        %v3430 = vshrl.u32 %v3429, 4
        %v3431 = vand.u32 %v3429, 15
        %v3432 = vsub.s32 0, %v3431
        %v3433 = vsel %vm3427, %v3432, %v3431
        %vm3434 = vcmp.lt.s32.totalorder %v3352, 0
        %v3435 = vsub.s32 0, %v3352
        %v3436 = vsel %vm3434, %v3435, %v3352
        %v3437 = vshrl.u32 %v3436, 4
        %v3438 = vand.u32 %v3436, 15
        %v3439 = vsub.s32 0, %v3438
        %v3440 = vsel %vm3434, %v3439, %v3438
        %vm3441 = vcmp.lt.s32.totalorder %v3353, 0
        %v3442 = vsub.s32 0, %v3353
        %v3443 = vsel %vm3441, %v3442, %v3353
        %v3444 = vshrl.u32 %v3443, 4
        %v3445 = vand.u32 %v3443, 15
        %v3446 = vsub.s32 0, %v3445
        %v3447 = vsel %vm3441, %v3446, %v3445
        %vm3448 = vcmp.lt.s32.totalorder %v3354, 0
        %v3449 = vsub.s32 0, %v3354
        %v3450 = vsel %vm3448, %v3449, %v3354
        %v3451 = vshrl.u32 %v3450, 4
        %v3452 = vand.u32 %v3450, 15
        %v3453 = vsub.s32 0, %v3452
        %v3454 = vsel %vm3448, %v3453, %v3452
        %vm3455 = vcmp.lt.s32.totalorder %v3355, 0
        %v3456 = vsub.s32 0, %v3355
        %v3457 = vsel %vm3455, %v3456, %v3355
        %v3458 = vshrl.u32 %v3457, 4
        %v3459 = vand.u32 %v3457, 15
        %v3460 = vsub.s32 0, %v3459
        %v3461 = vsel %vm3455, %v3460, %v3459
        %vm3462 = vcmp.lt.s32.totalorder %v3356, 0
        %v3463 = vsub.s32 0, %v3356
        %v3464 = vsel %vm3462, %v3463, %v3356
        %v3465 = vshrl.u32 %v3464, 4
        %v3466 = vand.u32 %v3464, 15
        %v3467 = vsub.s32 0, %v3466
        %v3468 = vsel %vm3462, %v3467, %v3466
        %vm3469 = vcmp.lt.s32.totalorder %v3357, 0
        %v3470 = vsub.s32 0, %v3357
        %v3471 = vsel %vm3469, %v3470, %v3357
        %v3472 = vshrl.u32 %v3471, 4
        %v3473 = vand.u32 %v3471, 15
        %v3474 = vsub.s32 0, %v3473
        %v3475 = vsel %vm3469, %v3474, %v3473
        %vm3476 = vcmp.lt.s32.totalorder %v3358, 0
        %v3477 = vsub.s32 0, %v3358
        %v3478 = vsel %vm3476, %v3477, %v3358
        %v3479 = vshrl.u32 %v3478, 4
        %v3480 = vand.u32 %v3478, 15
        %v3481 = vsub.s32 0, %v3480
        %v3482 = vsel %vm3476, %v3481, %v3480
        %vm3483 = vcmp.lt.s32.totalorder %v3359, 0
        %v3484 = vsub.s32 0, %v3359
        %v3485 = vsel %vm3483, %v3484, %v3359
        %v3486 = vshrl.u32 %v3485, 4
        %v3487 = vand.u32 %v3485, 15
        %v3488 = vsub.s32 0, %v3487
        %v3489 = vsel %vm3483, %v3488, %v3487
        %vm3490 = vcmp.lt.s32.totalorder %v3360, 0
        %v3491 = vsub.s32 0, %v3360
        %v3492 = vsel %vm3490, %v3491, %v3360
        %v3493 = vshrl.u32 %v3492, 4
        %v3494 = vand.u32 %v3492, 15
        %v3495 = vsub.s32 0, %v3494
        %v3496 = vsel %vm3490, %v3495, %v3494
        %vm3497 = vcmp.lt.s32.totalorder %v3361, 0
        %v3498 = vsub.s32 0, %v3361
        %v3499 = vsel %vm3497, %v3498, %v3361
        %v3500 = vshrl.u32 %v3499, 4
        %v3501 = vand.u32 %v3499, 15
        %v3502 = vsub.s32 0, %v3501
        %v3503 = vsel %vm3497, %v3502, %v3501
        %vm3504 = vcmp.lt.s32.totalorder %v3362, 0
        %v3505 = vsub.s32 0, %v3362
        %v3506 = vsel %vm3504, %v3505, %v3362
        %v3507 = vshrl.u32 %v3506, 4
        %v3508 = vand.u32 %v3506, 15
        %v3509 = vsub.s32 0, %v3508
        %v3510 = vsel %vm3504, %v3509, %v3508
        %vm3511 = vcmp.lt.s32.totalorder %v3363, 0
        %v3512 = vsub.s32 0, %v3363
        %v3513 = vsel %vm3511, %v3512, %v3363
        %v3514 = vshrl.u32 %v3513, 4
        %v3515 = vand.u32 %v3513, 15
        %v3516 = vsub.s32 0, %v3515
        %v3517 = vsel %vm3511, %v3516, %v3515
        %vm3518 = vcmp.lt.s32.totalorder %v3364, 0
        %v3519 = vsub.s32 0, %v3364
        %v3520 = vsel %vm3518, %v3519, %v3364
        %v3521 = vshrl.u32 %v3520, 4
        %v3522 = vand.u32 %v3520, 15
        %v3523 = vsub.s32 0, %v3522
        %v3524 = vsel %vm3518, %v3523, %v3522
        %vm3525 = vcmp.lt.s32.totalorder %v3365, 0
        %v3526 = vsub.s32 0, %v3365
        %v3527 = vsel %vm3525, %v3526, %v3365
        %v3528 = vshrl.u32 %v3527, 4
        %v3529 = vand.u32 %v3527, 15
        %v3530 = vsub.s32 0, %v3529
        %v3531 = vsel %vm3525, %v3530, %v3529
        %vm3532 = vcmp.lt.s32.totalorder %v3366, 0
        %v3533 = vsub.s32 0, %v3366
        %v3534 = vsel %vm3532, %v3533, %v3366
        %v3535 = vshrl.u32 %v3534, 4
        %v3536 = vand.u32 %v3534, 15
        %v3537 = vsub.s32 0, %v3536
        %v3538 = vsel %vm3532, %v3537, %v3536
        %vm3539 = vcmp.lt.s32.totalorder %v3367, 0
        %v3540 = vsub.s32 0, %v3367
        %v3541 = vsel %vm3539, %v3540, %v3367
        %v3542 = vshrl.u32 %v3541, 4
        %v3543 = vand.u32 %v3541, 15
        %v3544 = vsub.s32 0, %v3543
        %v3545 = vsel %vm3539, %v3544, %v3543
        %vm3546 = vcmp.lt.s32.totalorder %v3368, 0
        %v3547 = vsub.s32 0, %v3368
        %v3548 = vsel %vm3546, %v3547, %v3368
        %v3549 = vshrl.u32 %v3548, 4
        %v3550 = vand.u32 %v3548, 15
        %v3551 = vsub.s32 0, %v3550
        %v3552 = vsel %vm3546, %v3551, %v3550
        %vm3553 = vcmp.lt.s32.totalorder %v3369, 0
        %v3554 = vsub.s32 0, %v3369
        %v3555 = vsel %vm3553, %v3554, %v3369
        %v3556 = vshrl.u32 %v3555, 4
        %v3557 = vand.u32 %v3555, 15
        %v3558 = vsub.s32 0, %v3557
        %v3559 = vsel %vm3553, %v3558, %v3557
        %vm3560 = vcmp.lt.s32.totalorder %v3370, 0
        %v3561 = vsub.s32 0, %v3370
        %v3562 = vsel %vm3560, %v3561, %v3370
        %v3563 = vshrl.u32 %v3562, 4
        %v3564 = vand.u32 %v3562, 15
        %v3565 = vsub.s32 0, %v3564
        %v3566 = vsel %vm3560, %v3565, %v3564
        %vm3567 = vcmp.ne.s32.totalorder %v3377, 0
        %vm3568 = vcmp.ne.s32.totalorder %v3384, 0
        %vm3569 = vcmp.ne.s32.totalorder %v3391, 0
        %vm3570 = vcmp.ne.s32.totalorder %v3398, 0
        %vm3571 = vcmp.ne.s32.totalorder %v3405, 0
        %vm3572 = vcmp.ne.s32.totalorder %v3412, 0
        %vm3573 = vcmp.ne.s32.totalorder %v3419, 0
        %vm3574 = vcmp.ne.s32.totalorder %v3426, 0
        %vm3575 = vcmp.ne.s32.totalorder %v3433, 0
        %vm3576 = vcmp.ne.s32.totalorder %v3440, 0
        %vm3577 = vcmp.ne.s32.totalorder %v3447, 0
        %vm3578 = vcmp.ne.s32.totalorder %v3454, 0
        %vm3579 = vcmp.ne.s32.totalorder %v3461, 0
        %vm3580 = vcmp.ne.s32.totalorder %v3468, 0
        %vm3581 = vcmp.ne.s32.totalorder %v3475, 0
        %vm3582 = vcmp.ne.s32.totalorder %v3482, 0
        %vm3583 = vcmp.ne.s32.totalorder %v3489, 0
        %vm3584 = vcmp.ne.s32.totalorder %v3496, 0
        %vm3585 = vcmp.ne.s32.totalorder %v3503, 0
        %vm3586 = vcmp.ne.s32.totalorder %v3510, 0
        %vm3587 = vcmp.ne.s32.totalorder %v3517, 0
        %vm3588 = vcmp.ne.s32.totalorder %v3524, 0
        %vm3589 = vcmp.ne.s32.totalorder %v3531, 0
        %vm3590 = vcmp.ne.s32.totalorder %v3538, 0
        %vm3591 = vcmp.ne.s32.totalorder %v3545, 0
        %vm3592 = vcmp.ne.s32.totalorder %v3552, 0
        %vm3593 = vcmp.ne.s32.totalorder %v3559, 0
        %vm3594 = vcmp.ne.s32.totalorder %v3566, 0
        %vm3595 = vcmp.lt.s32.totalorder %v3377, 0
        %vm3596 = vcmp.lt.s32.totalorder %v3384, 0
        %vm3597 = vcmp.lt.s32.totalorder %v3391, 0
        %vm3598 = vcmp.lt.s32.totalorder %v3398, 0
        %vm3599 = vcmp.lt.s32.totalorder %v3405, 0
        %vm3600 = vcmp.lt.s32.totalorder %v3412, 0
        %vm3601 = vcmp.lt.s32.totalorder %v3419, 0
        %vm3602 = vcmp.lt.s32.totalorder %v3426, 0
        %vm3603 = vcmp.lt.s32.totalorder %v3433, 0
        %vm3604 = vcmp.lt.s32.totalorder %v3440, 0
        %vm3605 = vcmp.lt.s32.totalorder %v3447, 0
        %vm3606 = vcmp.lt.s32.totalorder %v3454, 0
        %vm3607 = vcmp.lt.s32.totalorder %v3461, 0
        %vm3608 = vcmp.lt.s32.totalorder %v3468, 0
        %vm3609 = vcmp.lt.s32.totalorder %v3475, 0
        %vm3610 = vcmp.lt.s32.totalorder %v3482, 0
        %vm3611 = vcmp.lt.s32.totalorder %v3489, 0
        %vm3612 = vcmp.lt.s32.totalorder %v3496, 0
        %vm3613 = vcmp.lt.s32.totalorder %v3503, 0
        %vm3614 = vcmp.lt.s32.totalorder %v3510, 0
        %vm3615 = vcmp.lt.s32.totalorder %v3517, 0
        %vm3616 = vcmp.lt.s32.totalorder %v3524, 0
        %vm3617 = vcmp.lt.s32.totalorder %v3531, 0
        %vm3618 = vcmp.lt.s32.totalorder %v3538, 0
        %vm3619 = vcmp.lt.s32.totalorder %v3545, 0
        %vm3620 = vcmp.lt.s32.totalorder %v3552, 0
        %vm3621 = vcmp.lt.s32.totalorder %v3559, 0
        %vm3622 = vcmp.lt.s32.totalorder %v3566, 0
        %vm3623 = vmand %vm3595, %vm3567
        %vm3624 = vmand %vm3596, %vm3568
        %vm3625 = vmand %vm3597, %vm3569
        %vm3626 = vmand %vm3598, %vm3570
        %vm3627 = vmand %vm3599, %vm3571
        %vm3628 = vmand %vm3600, %vm3572
        %vm3629 = vmand %vm3601, %vm3573
        %vm3630 = vmand %vm3602, %vm3574
        %vm3631 = vmand %vm3603, %vm3575
        %vm3632 = vmand %vm3604, %vm3576
        %vm3633 = vmand %vm3605, %vm3577
        %vm3634 = vmand %vm3606, %vm3578
        %vm3635 = vmand %vm3607, %vm3579
        %vm3636 = vmand %vm3608, %vm3580
        %vm3637 = vmand %vm3609, %vm3581
        %vm3638 = vmand %vm3610, %vm3582
        %vm3639 = vmand %vm3611, %vm3583
        %vm3640 = vmand %vm3612, %vm3584
        %vm3641 = vmand %vm3613, %vm3585
        %vm3642 = vmand %vm3614, %vm3586
        %vm3643 = vmand %vm3615, %vm3587
        %vm3644 = vmand %vm3616, %vm3588
        %vm3645 = vmand %vm3617, %vm3589
        %vm3646 = vmand %vm3618, %vm3590
        %vm3647 = vmand %vm3619, %vm3591
        %vm3648 = vmand %vm3620, %vm3592
        %vm3649 = vmand %vm3621, %vm3593
        %vm3650 = vmand %vm3622, %vm3594
        %v3651 = vadd.s32 %v3377, 16
        %v3652 = vadd.s32 %v3384, 16
        %v3653 = vadd.s32 %v3391, 16
        %v3654 = vadd.s32 %v3398, 16
        %v3655 = vadd.s32 %v3405, 16
        %v3656 = vadd.s32 %v3412, 16
        %v3657 = vadd.s32 %v3419, 16
        %v3658 = vadd.s32 %v3426, 16
        %v3659 = vadd.s32 %v3433, 16
        %v3660 = vadd.s32 %v3440, 16
        %v3661 = vadd.s32 %v3447, 16
        %v3662 = vadd.s32 %v3454, 16
        %v3663 = vadd.s32 %v3461, 16
        %v3664 = vadd.s32 %v3468, 16
        %v3665 = vadd.s32 %v3475, 16
        %v3666 = vadd.s32 %v3482, 16
        %v3667 = vadd.s32 %v3489, 16
        %v3668 = vadd.s32 %v3496, 16
        %v3669 = vadd.s32 %v3503, 16
        %v3670 = vadd.s32 %v3510, 16
        %v3671 = vadd.s32 %v3517, 16
        %v3672 = vadd.s32 %v3524, 16
        %v3673 = vadd.s32 %v3531, 16
        %v3674 = vadd.s32 %v3538, 16
        %v3675 = vadd.s32 %v3545, 16
        %v3676 = vadd.s32 %v3552, 16
        %v3677 = vadd.s32 %v3559, 16
        %v3678 = vadd.s32 %v3566, 16
        %v3679 = vsel %vm3623, %v3651, %v3377
        %v3680 = vsel %vm3624, %v3652, %v3384
        %v3681 = vsel %vm3625, %v3653, %v3391
        %v3682 = vsel %vm3626, %v3654, %v3398
        %v3683 = vsel %vm3627, %v3655, %v3405
        %v3684 = vsel %vm3628, %v3656, %v3412
        %v3685 = vsel %vm3629, %v3657, %v3419
        %v3686 = vsel %vm3630, %v3658, %v3426
        %v3687 = vsel %vm3631, %v3659, %v3433
        %v3688 = vsel %vm3632, %v3660, %v3440
        %v3689 = vsel %vm3633, %v3661, %v3447
        %v3690 = vsel %vm3634, %v3662, %v3454
        %v3691 = vsel %vm3635, %v3663, %v3461
        %v3692 = vsel %vm3636, %v3664, %v3468
        %v3693 = vsel %vm3637, %v3665, %v3475
        %v3694 = vsel %vm3638, %v3666, %v3482
        %v3695 = vsel %vm3639, %v3667, %v3489
        %v3696 = vsel %vm3640, %v3668, %v3496
        %v3697 = vsel %vm3641, %v3669, %v3503
        %v3698 = vsel %vm3642, %v3670, %v3510
        %v3699 = vsel %vm3643, %v3671, %v3517
        %v3700 = vsel %vm3644, %v3672, %v3524
        %v3701 = vsel %vm3645, %v3673, %v3531
        %v3702 = vsel %vm3646, %v3674, %v3538
        %v3703 = vsel %vm3647, %v3675, %v3545
        %v3704 = vsel %vm3648, %v3676, %v3552
        %v3705 = vsel %vm3649, %v3677, %v3559
        %v3706 = vsel %vm3650, %v3678, %v3566
        %vm3707 = vcmp.lt.s32.totalorder %v3679, 14
        %vm3708 = vcmp.lt.s32.totalorder %v3680, 14
        %vm3709 = vcmp.lt.s32.totalorder %v3681, 14
        %vm3710 = vcmp.lt.s32.totalorder %v3682, 14
        %vm3711 = vcmp.lt.s32.totalorder %v3683, 14
        %vm3712 = vcmp.lt.s32.totalorder %v3684, 14
        %vm3713 = vcmp.lt.s32.totalorder %v3685, 14
        %vm3714 = vcmp.lt.s32.totalorder %v3686, 14
        %vm3715 = vcmp.lt.s32.totalorder %v3687, 14
        %vm3716 = vcmp.lt.s32.totalorder %v3688, 14
        %vm3717 = vcmp.lt.s32.totalorder %v3689, 14
        %vm3718 = vcmp.lt.s32.totalorder %v3690, 14
        %vm3719 = vcmp.lt.s32.totalorder %v3691, 14
        %vm3720 = vcmp.lt.s32.totalorder %v3692, 14
        %vm3721 = vcmp.lt.s32.totalorder %v3693, 14
        %vm3722 = vcmp.lt.s32.totalorder %v3694, 14
        %vm3723 = vcmp.lt.s32.totalorder %v3695, 14
        %vm3724 = vcmp.lt.s32.totalorder %v3696, 14
        %vm3725 = vcmp.lt.s32.totalorder %v3697, 14
        %vm3726 = vcmp.lt.s32.totalorder %v3698, 14
        %vm3727 = vcmp.lt.s32.totalorder %v3699, 14
        %vm3728 = vcmp.lt.s32.totalorder %v3700, 14
        %vm3729 = vcmp.lt.s32.totalorder %v3701, 14
        %vm3730 = vcmp.lt.s32.totalorder %v3702, 14
        %vm3731 = vcmp.lt.s32.totalorder %v3703, 14
        %vm3732 = vcmp.lt.s32.totalorder %v3704, 14
        %vm3733 = vcmp.lt.s32.totalorder %v3705, 14
        %vm3734 = vcmp.lt.s32.totalorder %v3706, 14
        %v3735 = vsel %vm3707, 1, 0
        %v3736 = vsel %vm3708, 1, 0
        %v3737 = vsel %vm3709, 1, 0
        %v3738 = vsel %vm3710, 1, 0
        %v3739 = vsel %vm3711, 1, 0
        %v3740 = vsel %vm3712, 1, 0
        %v3741 = vsel %vm3713, 1, 0
        %v3742 = vsel %vm3714, 1, 0
        %v3743 = vsel %vm3715, 1, 0
        %v3744 = vsel %vm3716, 1, 0
        %v3745 = vsel %vm3717, 1, 0
        %v3746 = vsel %vm3718, 1, 0
        %v3747 = vsel %vm3719, 1, 0
        %v3748 = vsel %vm3720, 1, 0
        %v3749 = vsel %vm3721, 1, 0
        %v3750 = vsel %vm3722, 1, 0
        %v3751 = vsel %vm3723, 1, 0
        %v3752 = vsel %vm3724, 1, 0
        %v3753 = vsel %vm3725, 1, 0
        %v3754 = vsel %vm3726, 1, 0
        %v3755 = vsel %vm3727, 1, 0
        %v3756 = vsel %vm3728, 1, 0
        %v3757 = vsel %vm3729, 1, 0
        %v3758 = vsel %vm3730, 1, 0
        %v3759 = vsel %vm3731, 1, 0
        %v3760 = vsel %vm3732, 1, 0
        %v3761 = vsel %vm3733, 1, 0
        %v3762 = vsel %vm3734, 1, 0
        %vm3763 = vcmp.eq.s32.totalorder %v3735, 1
        %vm3764 = vcmp.eq.s32.totalorder %v3736, 1
        %vm3765 = vcmp.eq.s32.totalorder %v3737, 1
        %vm3766 = vcmp.eq.s32.totalorder %v3738, 1
        %vm3767 = vcmp.eq.s32.totalorder %v3739, 1
        %vm3768 = vcmp.eq.s32.totalorder %v3740, 1
        %vm3769 = vcmp.eq.s32.totalorder %v3741, 1
        %vm3770 = vcmp.eq.s32.totalorder %v3742, 1
        %vm3771 = vcmp.eq.s32.totalorder %v3743, 1
        %vm3772 = vcmp.eq.s32.totalorder %v3744, 1
        %vm3773 = vcmp.eq.s32.totalorder %v3745, 1
        %vm3774 = vcmp.eq.s32.totalorder %v3746, 1
        %vm3775 = vcmp.eq.s32.totalorder %v3747, 1
        %vm3776 = vcmp.eq.s32.totalorder %v3748, 1
        %vm3777 = vcmp.eq.s32.totalorder %v3749, 1
        %vm3778 = vcmp.eq.s32.totalorder %v3750, 1
        %vm3779 = vcmp.eq.s32.totalorder %v3751, 1
        %vm3780 = vcmp.eq.s32.totalorder %v3752, 1
        %vm3781 = vcmp.eq.s32.totalorder %v3753, 1
        %vm3782 = vcmp.eq.s32.totalorder %v3754, 1
        %vm3783 = vcmp.eq.s32.totalorder %v3755, 1
        %vm3784 = vcmp.eq.s32.totalorder %v3756, 1
        %vm3785 = vcmp.eq.s32.totalorder %v3757, 1
        %vm3786 = vcmp.eq.s32.totalorder %v3758, 1
        %vm3787 = vcmp.eq.s32.totalorder %v3759, 1
        %vm3788 = vcmp.eq.s32.totalorder %v3760, 1
        %vm3789 = vcmp.eq.s32.totalorder %v3761, 1
        %vm3790 = vcmp.eq.s32.totalorder %v3762, 1
        %v3791 = vsel %vm3763, %v3092, 0.0
        %v3792 = vsel %vm3764, %v3095, 0.0
        %v3793 = vsel %vm3765, %v3100, 0.0
        %v3794 = vsel %vm3766, %v3103, 0.0
        %v3795 = vsel %vm3767, %v3108, 0.0
        %v3796 = vsel %vm3768, %v3111, 0.0
        %v3797 = vsel %vm3769, %v3116, 0.0
        %v3798 = vsel %vm3770, %v3119, 0.0
        %v3799 = vsel %vm3771, %v3124, 0.0
        %v3800 = vsel %vm3772, %v3127, 0.0
        %v3801 = vsel %vm3773, %v3132, 0.0
        %v3802 = vsel %vm3774, %v3135, 0.0
        %v3803 = vsel %vm3775, %v3140, 0.0
        %v3804 = vsel %vm3776, %v3143, 0.0
        %v3805 = vsel %vm3777, %v3148, 0.0
        %v3806 = vsel %vm3778, %v3151, 0.0
        %v3807 = vsel %vm3779, %v3156, 0.0
        %v3808 = vsel %vm3780, %v3159, 0.0
        %v3809 = vsel %vm3781, %v3164, 0.0
        %v3810 = vsel %vm3782, %v3167, 0.0
        %v3811 = vsel %vm3783, %v3172, 0.0
        %v3812 = vsel %vm3784, %v3175, 0.0
        %v3813 = vsel %vm3785, %v3180, 0.0
        %v3814 = vsel %vm3786, %v3183, 0.0
        %v3815 = vsel %vm3787, %v3188, 0.0
        %v3816 = vsel %vm3788, %v3191, 0.0
        %v3817 = vsel %vm3789, %v3196, 0.0
        %v3818 = vsel %vm3790, %v3199, 0.0
        %v3819 = vadd.f32 %v3791, %v3792
        %v3820 = vadd.f32 %v3819, %v3793
        %v3821 = vadd.f32 %v3820, %v3794
        %v3822 = vadd.f32 %v3821, %v3795
        %v3823 = vadd.f32 %v3822, %v3796
        %v3824 = vadd.f32 %v3823, %v3797
        %v3825 = vadd.f32 %v3824, %v3798
        %v3826 = vadd.f32 %v3825, %v3799
        %v3827 = vadd.f32 %v3826, %v3800
        %v3828 = vadd.f32 %v3827, %v3801
        %v3829 = vadd.f32 %v3828, %v3802
        %v3830 = vadd.f32 %v3829, %v3803
        %v3831 = vadd.f32 %v3830, %v3804
        %v3832 = vadd.f32 %v3831, %v3805
        %v3833 = vadd.f32 %v3832, %v3806
        %v3834 = vadd.f32 %v3833, %v3807
        %v3835 = vadd.f32 %v3834, %v3808
        %v3836 = vadd.f32 %v3835, %v3809
        %v3837 = vadd.f32 %v3836, %v3810
        %v3838 = vadd.f32 %v3837, %v3811
        %v3839 = vadd.f32 %v3838, %v3812
        %v3840 = vadd.f32 %v3839, %v3813
        %v3841 = vadd.f32 %v3840, %v3814
        %v3842 = vadd.f32 %v3841, %v3815
        %v3843 = vadd.f32 %v3842, %v3816
        %v3844 = vadd.f32 %v3843, %v3817
        %v3845 = vadd.f32 %v3844, %v3818
        %v3846 = vrot.slane %v3845, 4
        %v3847 = vadd.f32 %v3845, %v3846
        %v3848 = vrot.slane %v3847, 2
        %v3849 = vadd.f32 %v3847, %v3848
        %v3850 = vrot.slane %v3849, 1
        %v3851 = vadd.f32 %v3849, %v3850
        %v3852 = vmul.f32 %v3791, %v3791
        %v3853 = vmul.f32 %v3792, %v3792
        %v3854 = vmul.f32 %v3793, %v3793
        %v3855 = vmul.f32 %v3794, %v3794
        %v3856 = vmul.f32 %v3795, %v3795
        %v3857 = vmul.f32 %v3796, %v3796
        %v3858 = vmul.f32 %v3797, %v3797
        %v3859 = vmul.f32 %v3798, %v3798
        %v3860 = vmul.f32 %v3799, %v3799
        %v3861 = vmul.f32 %v3800, %v3800
        %v3862 = vmul.f32 %v3801, %v3801
        %v3863 = vmul.f32 %v3802, %v3802
        %v3864 = vmul.f32 %v3803, %v3803
        %v3865 = vmul.f32 %v3804, %v3804
        %v3866 = vmul.f32 %v3805, %v3805
        %v3867 = vmul.f32 %v3806, %v3806
        %v3868 = vmul.f32 %v3807, %v3807
        %v3869 = vmul.f32 %v3808, %v3808
        %v3870 = vmul.f32 %v3809, %v3809
        %v3871 = vmul.f32 %v3810, %v3810
        %v3872 = vmul.f32 %v3811, %v3811
        %v3873 = vmul.f32 %v3812, %v3812
        %v3874 = vmul.f32 %v3813, %v3813
        %v3875 = vmul.f32 %v3814, %v3814
        %v3876 = vmul.f32 %v3815, %v3815
        %v3877 = vmul.f32 %v3816, %v3816
        %v3878 = vmul.f32 %v3817, %v3817
        %v3879 = vmul.f32 %v3818, %v3818
        %v3880 = vadd.f32 %v3852, %v3853
        %v3881 = vadd.f32 %v3880, %v3854
        %v3882 = vadd.f32 %v3881, %v3855
        %v3883 = vadd.f32 %v3882, %v3856
        %v3884 = vadd.f32 %v3883, %v3857
        %v3885 = vadd.f32 %v3884, %v3858
        %v3886 = vadd.f32 %v3885, %v3859
        %v3887 = vadd.f32 %v3886, %v3860
        %v3888 = vadd.f32 %v3887, %v3861
        %v3889 = vadd.f32 %v3888, %v3862
        %v3890 = vadd.f32 %v3889, %v3863
        %v3891 = vadd.f32 %v3890, %v3864
        %v3892 = vadd.f32 %v3891, %v3865
        %v3893 = vadd.f32 %v3892, %v3866
        %v3894 = vadd.f32 %v3893, %v3867
        %v3895 = vadd.f32 %v3894, %v3868
        %v3896 = vadd.f32 %v3895, %v3869
        %v3897 = vadd.f32 %v3896, %v3870
        %v3898 = vadd.f32 %v3897, %v3871
        %v3899 = vadd.f32 %v3898, %v3872
        %v3900 = vadd.f32 %v3899, %v3873
        %v3901 = vadd.f32 %v3900, %v3874
        %v3902 = vadd.f32 %v3901, %v3875
        %v3903 = vadd.f32 %v3902, %v3876
        %v3904 = vadd.f32 %v3903, %v3877
        %v3905 = vadd.f32 %v3904, %v3878
        %v3906 = vadd.f32 %v3905, %v3879
        %v3907 = vrot.slane %v3906, 4
        %v3908 = vadd.f32 %v3906, %v3907
        %v3909 = vrot.slane %v3908, 2
        %v3910 = vadd.f32 %v3908, %v3909
        %v3911 = vrot.slane %v3910, 1
        %v3912 = vadd.f32 %v3910, %v3911
        %vm3913 = vcmask 1040384
        %v3914 = vsel %vm3913, %v3851, %v3912
        %vm3915 = vcmask 1041408
        %v3916 = vsel %vm3915, %v3914, 0.0
        %3917 = vst [vmem:[%s325] sm:$0xff] %v3916
        %s3918 = sand.u32 %s163, 1
        %s3919 = scalar_lea.sflag [#allocation3], %s3918
        %s3920 = sand.u32 %s163, 1
        %s3921 = smul.addr %s3920, 112
        %s3922 = scalar_lea.vmem [#allocation2], %s3921
        %s3923 = sand.u32 %s193, 1
        %s3924 = scalar_lea.sflag [#allocation5], %s3923
        %s3925 = sand.u32 %s193, 1
        %s3926 = smul.addr %s3925, 8
        %s3927 = scalar_lea.vmem [#allocation4], %s3926
        // Predicated region
        $region37: #{tpu_custom_call.1} parent=35 // pred_check
          %p3928 = pneg %p173
        $region38: #{tpu_custom_call.1} parent=35 // pred_check_branch
          %3930 = sbr.rel (%p3928) target = $region40
        $region39: #{tpu_custom_call.1} parent=35 // pred_region
          %s3931 = smul.u32 28, %s30
          %s3933 = ssub.s32 1792, 1792
          %3934 = vsyncadd %s3919, %s3933
          %s3935 = smul.addr %s29, 28
          %s3936 = sadd.s32 %s3931, %s3935
          %s3937 = smul.addr %s28, 168
          %s3938 = sadd.s32 %s3936, %s3937
          %s3939 = smul.addr %s3938, 64
          %s3940 = scalar_lea.hbm %s4, %s3939
          %s3941 = sshll.u32 %s3922, 4
          %s3942 = int_to_ptr.vmem [resolvable:$true] %s3941
          %3947 = dma.vmem_to_hbm [thread:$0]  %s3942, 1792, %s3940, %s3919, 64, 64, 4
        $region40: #{tpu_custom_call.1} parent=35 // pred_fallthru
          _
        // Predicated region
        $region41: #{tpu_custom_call.1} parent=35 // pred_check
          %p3948 = pneg %p203
        $region42: #{tpu_custom_call.1} parent=35 // pred_check_branch
          %3950 = sbr.rel (%p3948) target = $region44
        $region43: #{tpu_custom_call.1} parent=35 // pred_region
          %s3952 = ssub.s32 128, 128
          %3953 = vsyncadd %s3924, %s3952
          %s3954 = sadd.s32 %s30, %s29
          %s3955 = smul.addr %s28, 6
          %s3956 = sadd.s32 %s3954, %s3955
          %s3957 = smul.addr %s3956, 128
          %s3958 = scalar_lea.hbm %s5, %s3957
          %s3960 = sshll.u32 %s3927, 4
          %s3961 = int_to_ptr.vmem [resolvable:$true] %s3960
          %3963 = dma.vmem_to_hbm [thread:$0]  %s3961, 128, %s3958, %s3924
        $region44: #{tpu_custom_call.1} parent=35 // pred_fallthru
          _
      $region36: #{tpu_custom_call.1} parent=5 // pred_fallthru
        _
      %p3964 = scmp.le.s32.totalorder 2, %s18
      // Predicated region
      $region45: #{tpu_custom_call.1} parent=5 // pred_check
        %p3965 = pneg %p3964
      $region46: #{tpu_custom_call.1} parent=5 // pred_check_branch
        %3967 = sbr.rel (%p3965) target = $region48
      $region47: #{tpu_custom_call.1} parent=5 // pred_region
        %s3968 = ssub.s32 %s18, 2
        // Predicated region
        $region49: #{tpu_custom_call.1} parent=47 // pred_check
          %p3969 = pneg %p179
        $region50: #{tpu_custom_call.1} parent=47 // pred_check_branch
          %3971 = sbr.rel (%p3969) target = $region52
        $region51: #{tpu_custom_call.1} parent=47 // pred_region
          %s3972 = sand.u32 %s164, 1
          %s3973 = scalar_lea.sflag [#allocation3], %s3972
          %s3974 = sand.u32 %s164, 1
          %s3975 = smul.addr %s3974, 112
          %s3976 = scalar_lea.vmem [#allocation2], %s3975
          %3977 = dma.done %s3973, 1792
        $region52: #{tpu_custom_call.1} parent=47 // pred_fallthru
          _
        // Predicated region
        $region53: #{tpu_custom_call.1} parent=47 // pred_check
          %p3978 = pneg %p209
        $region54: #{tpu_custom_call.1} parent=47 // pred_check_branch
          %3980 = sbr.rel (%p3978) target = $region56
        $region55: #{tpu_custom_call.1} parent=47 // pred_region
          %s3981 = sand.u32 %s194, 1
          %s3982 = scalar_lea.sflag [#allocation5], %s3981
          %s3983 = sand.u32 %s194, 1
          %s3984 = smul.addr %s3983, 8
          %s3985 = scalar_lea.vmem [#allocation4], %s3984
          %3986 = dma.done %s3982, 128
        $region56: #{tpu_custom_call.1} parent=47 // pred_fallthru
          _
      $region48: #{tpu_custom_call.1} parent=5 // pred_fallthru
        _
    $region6: #{tpu_custom_call.1} parent=1 // loop_footer
      %s22 = sadd.s32 1, %s18
    $region7: #{tpu_custom_call.1} parent=1 // loop_footer_branch
      %17 = sbr.rel target = $region3
    $region8: #{tpu_custom_call.1} parent=1 // loop_exit
      _
    %3987 = vsyncpa [#allocation3], 1
    %s3988 = scalar_lea.sflag [#allocation3], 1
    %3989 = vsyncpa %s3988, 1
    %3990 = vsyncpa [#allocation5], 1
    %s3991 = scalar_lea.sflag [#allocation5], 1
    %3992 = vsyncpa %s3991, 1

</llo_original>
